<compile_context>
chip_gen: v7x
topology: tpu7x:2x2x1
jax: 0.10.0
libtpu: 0.0.40
codegen_flags: <defaults>
</compile_context>

<pallas_src>
import functools
import math

import jax
import jax.numpy as jnp
from jax.experimental import pallas as pl
from jax.experimental.pallas import tpu as pltpu

N_HEADS = 2          # SetTransformerEncoder(n_heads=2)
LN_EPS = 1e-5        # torch.nn.LayerNorm default eps


def _layernorm(x, gamma, beta):
    mu = jnp.mean(x, axis=-1, keepdims=True)
    var = jnp.mean((x - mu) ** 2, axis=-1, keepdims=True)
    return (x - mu) * jax.lax.rsqrt(var + LN_EPS) * gamma + beta


# ---------------------------------------------------------------------------
# Fused kernel: ISAB (MAB1 + MAB2) + GraphConv score, one grid step, all in VMEM.
# ---------------------------------------------------------------------------
def fused_isab_score_kernel(feat_ref, adj_ref, ind_ref, wq_ref, wkv_ref, wo_ref,
                            w1_ref, w2_ref, vecs_ref, sc_ref,
                            ft_out_ref, score_out_ref):
    feat = feat_ref[...]                       # [B, N, D]
    B, N, D = feat.shape
    m = ind_ref.shape[0]
    d_ff = w1_ref.shape[2]
    hd = wq_ref.shape[2]                       # n_heads * d_head (== D here)
    d_head = hd // N_HEADS
    scale = 1.0 / math.sqrt(d_head)

    def mab(idx, xq, xkv3, q_shared):
        # xq: [Lq, D] (batch-invariant) if q_shared else [B, Lq, D]; xkv3: [B, Lk, D]
        Lq, Lk = xq.shape[-2], xkv3.shape[1]
        wq, wkv, wo = wq_ref[idx], wkv_ref[idx], wo_ref[idx]
        w1, w2 = w1_ref[idx], w2_ref[idx]
        vecs = vecs_ref[idx]                   # [6, D]: ln1_g, ln1_b, ln2_g, ln2_b, b2, b1_pad
        ln1_g, ln1_b = vecs[0:1, :], vecs[1:2, :]
        ln2_g, ln2_b = vecs[2:3, :], vecs[3:4, :]
        b2 = vecs[4:5, :]
        b1 = vecs[5:6, :d_ff]

        # Q projection: computed once and broadcast when the query set is shared
        # across the batch (MAB1 inducing points), otherwise on the [B*Lq, D] slab.
        if q_shared:
            q3 = jnp.broadcast_to(
                jnp.dot(xq, wq, preferred_element_type=jnp.float32)[None],
                (B, Lq, hd))
        else:
            q3 = jnp.dot(xq.reshape(B * Lq, D), wq,
                         preferred_element_type=jnp.float32).reshape(B, Lq, hd)

        # K/V projection on the flattened [B*Lk, D] slab (single concatenated weight).
        kv2 = jnp.dot(xkv3.reshape(B * Lk, D), wkv,
                      preferred_element_type=jnp.float32)                 # [B*Lk, 2*hd]
        k3 = kv2[:, :hd].reshape(B, Lk, hd)
        v3 = kv2[:, hd:].reshape(B, Lk, hd)

        # per-graph, per-head attention; head outputs concatenated, Wo applied once
        heads = []
        for h in range(N_HEADS):
            lo, hi = h * d_head, (h + 1) * d_head
            s = jnp.einsum('bqd,bkd->bqk', q3[:, :, lo:hi], k3[:, :, lo:hi],
                           preferred_element_type=jnp.float32) * scale
            s = s - jnp.max(s, axis=-1, keepdims=True)
            p = jnp.exp(s)
            p = p * pl.reciprocal(jnp.sum(p, axis=-1, keepdims=True), approx=True)
            heads.append(jnp.einsum('bqk,bkd->bqd', p, v3[:, :, lo:hi],
                                    preferred_element_type=jnp.float32))
        a2 = jnp.concatenate(heads, axis=-1).reshape(B * Lq, hd)
        o3 = jnp.dot(a2, wo,
                     preferred_element_type=jnp.float32).reshape(B, Lq, D)

        resid3 = o3 + (xq[None] if q_shared else xq)                      # residual
        h1 = _layernorm(resid3.reshape(B * Lq, D), ln1_g, ln1_b)          # norm_in
        f = jnp.dot(h1, w1, preferred_element_type=jnp.float32) + b1
        f = jnp.maximum(f, 0.0)
        f = jnp.dot(f, w2, preferred_element_type=jnp.float32) + b2
        out2 = _layernorm(h1 + f, ln2_g, ln2_b)                           # norm_inter
        return out2.reshape(B, Lq, D)

    # --- ISAB: inducing points attend to nodes, then nodes attend to induced set ---
    h3 = mab(0, ind_ref[...], feat, True)      # [B, m, D]
    ft3 = mab(1, feat, h3, False)              # [B, N, D]
    ft_out_ref[...] = ft3

    # --- GraphConv(in_dim, 1, norm='none') score:  adj @ (X @ w) + b, lane-major ---
    w3 = jnp.broadcast_to(sc_ref[0:1, :][None, :, :], (B, 1, D))          # [B, 1, D]
    xw = jnp.einsum('bkd,bjd->bkj', w3, ft3,
                    preferred_element_type=jnp.float32)                   # [B, 1, N]
    score = jnp.einsum('bkj,bij->bki', xw, adj_ref[...],
                       preferred_element_type=jnp.float32)                # [B, 1, N]
    score_out_ref[...] = score + sc_ref[1:2, 0:1]                         # + bias


def _full_spec(shape):
    nd = len(shape)
    return pl.BlockSpec(shape, lambda i, nd=nd: (0,) * nd)


def fused_isab_score(feature, adj, p):
    B, N, D = feature.shape
    return pl.pallas_call(
        fused_isab_score_kernel,
        out_shape=(jax.ShapeDtypeStruct((B, N, D), jnp.float32),
                   jax.ShapeDtypeStruct((B, 1, N), jnp.float32)),
        grid=(1,),
        in_specs=[
            _full_spec((B, N, D)), _full_spec((B, N, N)),
            _full_spec(p["inducing"].shape),
            _full_spec(p["wq"].shape), _full_spec(p["wkv"].shape),
            _full_spec(p["wo"].shape), _full_spec(p["w1"].shape),
            _full_spec(p["w2"].shape), _full_spec(p["vecs"].shape),
            _full_spec(p["score"].shape),
        ],
        out_specs=(_full_spec((B, N, D)), _full_spec((B, 1, N))),
        compiler_params=pltpu.CompilerParams(dimension_semantics=("arbitrary",)),
    )(feature, adj, p["inducing"], p["wq"], p["wkv"], p["wo"],
      p["w1"], p["w2"], p["vecs"], p["score"])


# ---------------------------------------------------------------------------
# Pooled-feature kernel: feature[perm] * tanh(score[perm]) as ONE one-hot matmul.
# ---------------------------------------------------------------------------
def gather_scale_kernel(perm_ref, x_ref, s_ref, out_ref):
    perm = perm_ref[0]                         # [K, 1] int32
    x = x_ref[0]                               # [N, D]
    sc = s_ref[0]                              # [1, N]  lane-major scores
    K, N = perm.shape[0], x.shape[0]
    iota = jax.lax.broadcasted_iota(jnp.int32, (K, N), 1)
    # one-hot gather and tanh scaling fused: row k has tanh(score[perm[k]]) at col perm[k]
    sel = jnp.where(iota == perm, jnp.tanh(sc), 0.0)                      # [K, N]
    out_ref[0] = jnp.dot(sel, x, preferred_element_type=jnp.float32)      # [K, D]


def gather_scale(x, score_row, perm3):
    B, N, D = x.shape
    K = perm3.shape[1]
    return pl.pallas_call(
        gather_scale_kernel,
        out_shape=jax.ShapeDtypeStruct((B, K, D), jnp.float32),
        grid=(B,),
        in_specs=[
            pl.BlockSpec((1, K, 1), lambda i: (i, 0, 0)),
            pl.BlockSpec((1, N, D), lambda i: (i, 0, 0)),
            pl.BlockSpec((1, 1, N), lambda i: (i, 0, 0)),
        ],
        out_specs=pl.BlockSpec((1, K, D), lambda i: (i, 0, 0)),
        compiler_params=pltpu.CompilerParams(dimension_semantics=("parallel",)),
    )(perm3, x, score_row)


# ---------------------------------------------------------------------------
# Parameters (deterministic synthetic init, packed for the fused kernel).
# ---------------------------------------------------------------------------
def init_params(key, d_model):
    """SetTransformerEncoder(d_model, n_heads=2, d_head=d_model//2, d_ff=d_model//2,
    n_layers=1, 'isab', m=d_model//2) + GraphConv(d_model, 1, norm='none').
    The two MABs of the ISAB are stacked on a leading axis, K/V weights concatenated,
    and all 1-D scale/bias vectors packed into one [2, 6, D] array."""
    d_head = d_model // 2
    d_ff = d_model // 2
    m = d_model // 2
    hd = N_HEADS * d_head                      # == d_model
    ks = jax.random.split(key, 4)
    scale = 0.1

    def mab_mats(k):
        kk = jax.random.split(k, 6)
        wq = jax.random.normal(kk[0], (d_model, hd), jnp.float32) * scale
        wk = jax.random.normal(kk[1], (d_model, hd), jnp.float32) * scale
        wv = jax.random.normal(kk[2], (d_model, hd), jnp.float32) * scale
        wo = jax.random.normal(kk[3], (hd, d_model), jnp.float32) * scale
        w1 = jax.random.normal(kk[4], (d_model, d_ff), jnp.float32) * scale
        w2 = jax.random.normal(kk[5], (d_ff, d_model), jnp.float32) * scale
        ln1_g = jnp.ones((d_model,), jnp.float32)
        ln1_b = jnp.zeros((d_model,), jnp.float32)
        ln2_g = jnp.ones((d_model,), jnp.float32)
        ln2_b = jnp.zeros((d_model,), jnp.float32)
        b1 = jnp.zeros((d_ff,), jnp.float32)
        b2 = jnp.zeros((d_model,), jnp.float32)
        wkv = jnp.concatenate([wk, wv], axis=1)                           # [D, 2*hd]
        vecs = jnp.stack([ln1_g, ln1_b, ln2_g, ln2_b, b2,
                          jnp.pad(b1, (0, d_model - d_ff))])              # [6, D]
        return wq, wkv, wo, w1, w2, vecs

    m1 = mab_mats(ks[1])                       # MAB1: I attends to X
    m2 = mab_mats(ks[2])                       # MAB2: X attends to H
    score_w = jax.random.normal(ks[3], (d_model,), jnp.float32) * scale
    score_b = jnp.float32(0.0)
    score_pack = jnp.stack(
        [score_w, jnp.zeros((d_model,), jnp.float32).at[0].set(score_b)])  # [2, D]

    return dict(
        inducing=jax.random.normal(ks[0], (m, d_model), jnp.float32) * scale,
        wq=jnp.stack([m1[0], m2[0]]),
        wkv=jnp.stack([m1[1], m2[1]]),
        wo=jnp.stack([m1[2], m2[2]]),
        w1=jnp.stack([m1[3], m2[3]]),
        w2=jnp.stack([m1[4], m2[4]]),
        vecs=jnp.stack([m1[5], m2[5]]),
        score=score_pack,
    )


# ---------------------------------------------------------------------------
# Forward pass of TransformerSAGPool.
# ---------------------------------------------------------------------------
@functools.partial(jax.jit, static_argnames=("ratio",))
def transformer_sag_pool(feature, adj, params, ratio=0.5):
    B, N, _ = feature.shape

    # --- fused SetTransformerEncoder (1 ISAB) + SAGPool score layer (one pallas_call) ---
    feature_t, score_row = fused_isab_score(feature, adj, params)  # [B,N,D], [B,1,N]

    # --- top-k (glue-level, kept in JAX) ---
    score = score_row[:, 0, :]                                     # [B, N]
    K = int(math.ceil(ratio * N))
    _, perm = jax.lax.top_k(score, K)                              # per-graph node indices
    perm = perm.astype(jnp.int32)

    # --- feature_transform: feature[perm] * tanh(score[perm]) (second pallas_call) ---
    pooled = gather_scale(feature_t, score_row, perm[..., None])   # [B, K, D]

    next_batch_num_nodes = jnp.full((B,), K, jnp.int32)
    # TODO(synk): dgl.node_subgraph / torch.histogram edge bookkeeping (batch_num_edges)
    # operates on dynamic sparse graph structure and has no dense Pallas equivalent;
    # we return perm and next_batch_num_nodes instead of a rebuilt DGLGraph.
    return pooled, perm, next_batch_num_nodes


if __name__ == "__main__":
    key = jax.random.PRNGKey(0)
    B, N, D_IN = 2, 8, 32
    k_feat, k_adj, k_p = jax.random.split(key, 3)

    feature = jax.random.normal(k_feat, (B, N, D_IN), jnp.float32)
    adj = jax.random.bernoulli(k_adj, 0.4, (B, N, N)).astype(jnp.float32)
    params = init_params(k_p, D_IN)

    pooled, perm, next_nodes = transformer_sag_pool(feature, adj, params, ratio=0.5)
    jax.block_until_ready((pooled, perm, next_nodes))

    assert pooled.shape == (B, 4, D_IN)
    assert perm.shape == (B, 4)
    print("KERNEL_OK")
</pallas_src>

<mosaic_0001>
module attributes {stable_mosaic.version = 11 : i64} {
  func.func @fused_isab_score_kernel(%arg0: i32, %arg1: memref<2x8x32xf32, #tpu.memory_space<vmem>>, %arg2: memref<2x8x8xf32, #tpu.memory_space<vmem>>, %arg3: memref<16x32xf32, #tpu.memory_space<vmem>>, %arg4: memref<2x32x32xf32, #tpu.memory_space<vmem>>, %arg5: memref<2x32x64xf32, #tpu.memory_space<vmem>>, %arg6: memref<2x32x32xf32, #tpu.memory_space<vmem>>, %arg7: memref<2x32x16xf32, #tpu.memory_space<vmem>>, %arg8: memref<2x16x32xf32, #tpu.memory_space<vmem>>, %arg9: memref<2x6x32xf32, #tpu.memory_space<vmem>>, %arg10: memref<2x32xf32, #tpu.memory_space<vmem>>, %arg11: memref<2x8x32xf32, #tpu.memory_space<vmem>>, %arg12: memref<2x1x8xf32, #tpu.memory_space<vmem>>) attributes {dimension_semantics = [#tpu.dimension_semantics<arbitrary>], iteration_bounds = array<i64: 1>, scalar_prefetch = 0 : i64, scratch_operands = 0 : i64, tpu.core_type = #tpu.core_type<tc>, window_params = [{pipeline_mode = #tpu.pipeline_mode<synchronous>, transform_indices = @transform_0, window_bounds = array<i64: 2, 8, 32>}, {pipeline_mode = #tpu.pipeline_mode<synchronous>, transform_indices = @transform_1, window_bounds = array<i64: 2, 8, 8>}, {pipeline_mode = #tpu.pipeline_mode<synchronous>, transform_indices = @transform_2, window_bounds = array<i64: 16, 32>}, {pipeline_mode = #tpu.pipeline_mode<synchronous>, transform_indices = @transform_3, window_bounds = array<i64: 2, 32, 32>}, {pipeline_mode = #tpu.pipeline_mode<synchronous>, transform_indices = @transform_4, window_bounds = array<i64: 2, 32, 64>}, {pipeline_mode = #tpu.pipeline_mode<synchronous>, transform_indices = @transform_5, window_bounds = array<i64: 2, 32, 32>}, {pipeline_mode = #tpu.pipeline_mode<synchronous>, transform_indices = @transform_6, window_bounds = array<i64: 2, 32, 16>}, {pipeline_mode = #tpu.pipeline_mode<synchronous>, transform_indices = @transform_7, window_bounds = array<i64: 2, 16, 32>}, {pipeline_mode = #tpu.pipeline_mode<synchronous>, transform_indices = @transform_8, window_bounds = array<i64: 2, 6, 32>}, {pipeline_mode = #tpu.pipeline_mode<synchronous>, transform_indices = @transform_9, window_bounds = array<i64: 2, 32>}, {pipeline_mode = #tpu.pipeline_mode<synchronous>, transform_indices = @transform_10, window_bounds = array<i64: 2, 8, 32>}, {pipeline_mode = #tpu.pipeline_mode<synchronous>, transform_indices = @transform_11, window_bounds = array<i64: 2, 1, 8>}]} {
    %c0 = arith.constant 0 : index
    %c0_0 = arith.constant 0 : index
    %c0_1 = arith.constant 0 : index
    %0 = vector.load %arg1[%c0, %c0_0, %c0_1] : memref<2x8x32xf32, #tpu.memory_space<vmem>>, vector<2x8x32xf32>
    %c0_2 = arith.constant 0 : index
    %c0_3 = arith.constant 0 : index
    %1 = vector.load %arg3[%c0_2, %c0_3] : memref<16x32xf32, #tpu.memory_space<vmem>>, vector<16x32xf32>
    %c0_4 = arith.constant 0 : index
    %c0_5 = arith.constant 0 : index
    %c0_6 = arith.constant 0 : index
    %2 = vector.load %arg4[%c0_4, %c0_5, %c0_6] : memref<2x32x32xf32, #tpu.memory_space<vmem>>, vector<1x32x32xf32>
    %3 = vector.shape_cast %2 : vector<1x32x32xf32> to vector<32x32xf32>
    %c0_7 = arith.constant 0 : index
    %c0_8 = arith.constant 0 : index
    %c0_9 = arith.constant 0 : index
    %4 = vector.load %arg5[%c0_7, %c0_8, %c0_9] : memref<2x32x64xf32, #tpu.memory_space<vmem>>, vector<1x32x64xf32>
    %5 = vector.shape_cast %4 : vector<1x32x64xf32> to vector<32x64xf32>
    %c0_10 = arith.constant 0 : index
    %c0_11 = arith.constant 0 : index
    %c0_12 = arith.constant 0 : index
    %6 = vector.load %arg6[%c0_10, %c0_11, %c0_12] : memref<2x32x32xf32, #tpu.memory_space<vmem>>, vector<1x32x32xf32>
    %7 = vector.shape_cast %6 : vector<1x32x32xf32> to vector<32x32xf32>
    %c0_13 = arith.constant 0 : index
    %c0_14 = arith.constant 0 : index
    %c0_15 = arith.constant 0 : index
    %8 = vector.load %arg7[%c0_13, %c0_14, %c0_15] : memref<2x32x16xf32, #tpu.memory_space<vmem>>, vector<1x32x16xf32>
    %9 = vector.shape_cast %8 : vector<1x32x16xf32> to vector<32x16xf32>
    %c0_16 = arith.constant 0 : index
    %c0_17 = arith.constant 0 : index
    %c0_18 = arith.constant 0 : index
    %10 = vector.load %arg8[%c0_16, %c0_17, %c0_18] : memref<2x16x32xf32, #tpu.memory_space<vmem>>, vector<1x16x32xf32>
    %11 = vector.shape_cast %10 : vector<1x16x32xf32> to vector<16x32xf32>
    %c0_19 = arith.constant 0 : index
    %c0_20 = arith.constant 0 : index
    %c0_21 = arith.constant 0 : index
    %12 = vector.load %arg9[%c0_19, %c0_20, %c0_21] : memref<2x6x32xf32, #tpu.memory_space<vmem>>, vector<1x6x32xf32>
    %13 = vector.shape_cast %12 : vector<1x6x32xf32> to vector<6x32xf32>
    %14 = vector.extract_strided_slice %13 {offsets = [0, 0], sizes = [1, 32], strides = [1, 1]} : vector<6x32xf32> to vector<1x32xf32>
    %15 = vector.extract_strided_slice %13 {offsets = [1, 0], sizes = [1, 32], strides = [1, 1]} : vector<6x32xf32> to vector<1x32xf32>
    %16 = vector.extract_strided_slice %13 {offsets = [2, 0], sizes = [1, 32], strides = [1, 1]} : vector<6x32xf32> to vector<1x32xf32>
    %17 = vector.extract_strided_slice %13 {offsets = [3, 0], sizes = [1, 32], strides = [1, 1]} : vector<6x32xf32> to vector<1x32xf32>
    %18 = vector.extract_strided_slice %13 {offsets = [4, 0], sizes = [1, 32], strides = [1, 1]} : vector<6x32xf32> to vector<1x32xf32>
    %19 = vector.extract_strided_slice %13 {offsets = [5, 0], sizes = [1, 16], strides = [1, 1]} : vector<6x32xf32> to vector<1x16xf32>
    %cst = arith.constant dense<0.000000e+00> : vector<16x32xf32>
    %20 = tpu.matmul %1, %3, %cst {dimension_numbers = #tpu.dot_dimension_numbers<[1], [0], [0], [1], [0, 0, 1, 1], [], []>} : vector<16x32xf32>, vector<32x32xf32>, vector<16x32xf32> -> vector<16x32xf32>
    %21 = vector.shape_cast %20 : vector<16x32xf32> to vector<1x16x32xf32>
    %22 = vector.shape_cast %21 : vector<1x16x32xf32> to vector<1x16x32xf32>
    %23 = vector.broadcast %22 : vector<1x16x32xf32> to vector<2x16x32xf32>
    %24 = vector.shape_cast %0 : vector<2x8x32xf32> to vector<16x32xf32>
    %cst_22 = arith.constant dense<0.000000e+00> : vector<16x64xf32>
    %25 = tpu.matmul %24, %5, %cst_22 {dimension_numbers = #tpu.dot_dimension_numbers<[1], [0], [0], [1], [0, 0, 1, 1], [], []>} : vector<16x32xf32>, vector<32x64xf32>, vector<16x64xf32> -> vector<16x64xf32>
    %26 = vector.extract_strided_slice %25 {offsets = [0, 0], sizes = [16, 32], strides = [1, 1]} : vector<16x64xf32> to vector<16x32xf32>
    %27 = vector.shape_cast %26 : vector<16x32xf32> to vector<2x8x32xf32>
    %28 = vector.extract_strided_slice %25 {offsets = [0, 32], sizes = [16, 32], strides = [1, 1]} : vector<16x64xf32> to vector<16x32xf32>
    %29 = vector.shape_cast %28 : vector<16x32xf32> to vector<2x8x32xf32>
    %30 = vector.extract_strided_slice %23 {offsets = [0, 0, 0], sizes = [2, 16, 16], strides = [1, 1, 1]} : vector<2x16x32xf32> to vector<2x16x16xf32>
    %31 = vector.extract_strided_slice %27 {offsets = [0, 0, 0], sizes = [2, 8, 16], strides = [1, 1, 1]} : vector<2x8x32xf32> to vector<2x8x16xf32>
    "tpu.trace_start"() <{level = 10 : i32, message = "bqd,bkd->bqk"}> : () -> ()
    %cst_23 = arith.constant dense<0.000000e+00> : vector<2x16x8xf32>
    %32 = tpu.matmul %30, %31, %cst_23 {dimension_numbers = #tpu.dot_dimension_numbers<[2], [2], [1], [1], [0, 0, 0, 1, 1, 1], [0], [0]>} : vector<2x16x16xf32>, vector<2x8x16xf32>, vector<2x16x8xf32> -> vector<2x16x8xf32>
    "tpu.trace_stop"() : () -> ()
    %cst_24 = arith.constant 2.500000e-01 : f32
    %33 = vector.broadcast %cst_24 : f32 to vector<2x16x8xf32>
    %34 = arith.mulf %32, %33 : vector<2x16x8xf32>
    %cst_25 = arith.constant dense<0xFF800000> : vector<2x16xf32>
    %35 = vector.multi_reduction <maximumf>, %34, %cst_25 [2] : vector<2x16x8xf32> to vector<2x16xf32>
    %36 = vector.shape_cast %35 : vector<2x16xf32> to vector<2x16x1xf32>
    %37 = vector.broadcast %36 : vector<2x16x1xf32> to vector<2x16x8xf32>
    %38 = arith.subf %34, %37 : vector<2x16x8xf32>
    %39 = math.exp %38 : vector<2x16x8xf32>
    %cst_26 = arith.constant dense<0.000000e+00> : vector<2x16xf32>
    %40 = vector.multi_reduction <add>, %39, %cst_26 [2] : vector<2x16x8xf32> to vector<2x16xf32>
    %41 = vector.shape_cast %40 : vector<2x16xf32> to vector<2x16x1xf32>
    %42 = tpu.reciprocal %41 {approx = true} : vector<2x16x1xf32> -> vector<2x16x1xf32>
    %43 = vector.broadcast %42 : vector<2x16x1xf32> to vector<2x16x8xf32>
    %44 = arith.mulf %39, %43 : vector<2x16x8xf32>
    %45 = vector.extract_strided_slice %29 {offsets = [0, 0, 0], sizes = [2, 8, 16], strides = [1, 1, 1]} : vector<2x8x32xf32> to vector<2x8x16xf32>
    "tpu.trace_start"() <{level = 10 : i32, message = "bqk,bkd->bqd"}> : () -> ()
    %cst_27 = arith.constant dense<0.000000e+00> : vector<2x16x16xf32>
    %46 = tpu.matmul %44, %45, %cst_27 {dimension_numbers = #tpu.dot_dimension_numbers<[2], [1], [1], [2], [0, 0, 0, 1, 1, 2], [0], [0]>} : vector<2x16x8xf32>, vector<2x8x16xf32>, vector<2x16x16xf32> -> vector<2x16x16xf32>
    "tpu.trace_stop"() : () -> ()
    %47 = vector.extract_strided_slice %23 {offsets = [0, 0, 16], sizes = [2, 16, 16], strides = [1, 1, 1]} : vector<2x16x32xf32> to vector<2x16x16xf32>
    %48 = vector.extract_strided_slice %27 {offsets = [0, 0, 16], sizes = [2, 8, 16], strides = [1, 1, 1]} : vector<2x8x32xf32> to vector<2x8x16xf32>
    "tpu.trace_start"() <{level = 10 : i32, message = "bqd,bkd->bqk"}> : () -> ()
    %cst_28 = arith.constant dense<0.000000e+00> : vector<2x16x8xf32>
    %49 = tpu.matmul %47, %48, %cst_28 {dimension_numbers = #tpu.dot_dimension_numbers<[2], [2], [1], [1], [0, 0, 0, 1, 1, 1], [0], [0]>} : vector<2x16x16xf32>, vector<2x8x16xf32>, vector<2x16x8xf32> -> vector<2x16x8xf32>
    "tpu.trace_stop"() : () -> ()
    %cst_29 = arith.constant 2.500000e-01 : f32
    %50 = vector.broadcast %cst_29 : f32 to vector<2x16x8xf32>
    %51 = arith.mulf %49, %50 : vector<2x16x8xf32>
    %cst_30 = arith.constant dense<0xFF800000> : vector<2x16xf32>
    %52 = vector.multi_reduction <maximumf>, %51, %cst_30 [2] : vector<2x16x8xf32> to vector<2x16xf32>
    %53 = vector.shape_cast %52 : vector<2x16xf32> to vector<2x16x1xf32>
    %54 = vector.broadcast %53 : vector<2x16x1xf32> to vector<2x16x8xf32>
    %55 = arith.subf %51, %54 : vector<2x16x8xf32>
    %56 = math.exp %55 : vector<2x16x8xf32>
    %cst_31 = arith.constant dense<0.000000e+00> : vector<2x16xf32>
    %57 = vector.multi_reduction <add>, %56, %cst_31 [2] : vector<2x16x8xf32> to vector<2x16xf32>
    %58 = vector.shape_cast %57 : vector<2x16xf32> to vector<2x16x1xf32>
    %59 = tpu.reciprocal %58 {approx = true} : vector<2x16x1xf32> -> vector<2x16x1xf32>
    %60 = vector.broadcast %59 : vector<2x16x1xf32> to vector<2x16x8xf32>
    %61 = arith.mulf %56, %60 : vector<2x16x8xf32>
    %62 = vector.extract_strided_slice %29 {offsets = [0, 0, 16], sizes = [2, 8, 16], strides = [1, 1, 1]} : vector<2x8x32xf32> to vector<2x8x16xf32>
    "tpu.trace_start"() <{level = 10 : i32, message = "bqk,bkd->bqd"}> : () -> ()
    %cst_32 = arith.constant dense<0.000000e+00> : vector<2x16x16xf32>
    %63 = tpu.matmul %61, %62, %cst_32 {dimension_numbers = #tpu.dot_dimension_numbers<[2], [1], [1], [2], [0, 0, 0, 1, 1, 2], [0], [0]>} : vector<2x16x8xf32>, vector<2x8x16xf32>, vector<2x16x16xf32> -> vector<2x16x16xf32>
    "tpu.trace_stop"() : () -> ()
    %64 = tpu.concatenate %46, %63 in 2 : vector<2x16x16xf32>, vector<2x16x16xf32> -> vector<2x16x32xf32>
    %65 = vector.shape_cast %64 : vector<2x16x32xf32> to vector<32x32xf32>
    %cst_33 = arith.constant dense<0.000000e+00> : vector<32x32xf32>
    %66 = tpu.matmul %65, %7, %cst_33 {dimension_numbers = #tpu.dot_dimension_numbers<[1], [0], [0], [1], [0, 0, 1, 1], [], []>} : vector<32x32xf32>, vector<32x32xf32>, vector<32x32xf32> -> vector<32x32xf32>
    %67 = vector.shape_cast %66 : vector<32x32xf32> to vector<2x16x32xf32>
    %68 = vector.shape_cast %1 : vector<16x32xf32> to vector<1x16x32xf32>
    %69 = vector.broadcast %68 : vector<1x16x32xf32> to vector<2x16x32xf32>
    %70 = arith.addf %67, %69 : vector<2x16x32xf32>
    %71 = vector.shape_cast %70 : vector<2x16x32xf32> to vector<32x32xf32>
    %cst_34 = arith.constant dense<0.000000e+00> : vector<32xf32>
    %72 = vector.multi_reduction <add>, %71, %cst_34 [1] : vector<32x32xf32> to vector<32xf32>
    %73 = vector.shape_cast %72 : vector<32xf32> to vector<32x1xf32>
    %cst_35 = arith.constant 3.200000e+01 : f32
    %74 = vector.broadcast %cst_35 : f32 to vector<32x1xf32>
    %75 = arith.divf %73, %74 : vector<32x1xf32>
    %76 = vector.broadcast %75 : vector<32x1xf32> to vector<32x32xf32>
    %77 = arith.subf %71, %76 : vector<32x32xf32>
    %78 = arith.mulf %77, %77 : vector<32x32xf32>
    %cst_36 = arith.constant dense<0.000000e+00> : vector<32xf32>
    %79 = vector.multi_reduction <add>, %78, %cst_36 [1] : vector<32x32xf32> to vector<32xf32>
    %80 = vector.shape_cast %79 : vector<32xf32> to vector<32x1xf32>
    %cst_37 = arith.constant 3.200000e+01 : f32
    %81 = vector.broadcast %cst_37 : f32 to vector<32x1xf32>
    %82 = arith.divf %80, %81 : vector<32x1xf32>
    %83 = vector.broadcast %75 : vector<32x1xf32> to vector<32x32xf32>
    %84 = arith.subf %71, %83 : vector<32x32xf32>
    %cst_38 = arith.constant 9.99999974E-6 : f32
    %85 = vector.broadcast %cst_38 : f32 to vector<32x1xf32>
    %86 = arith.addf %82, %85 : vector<32x1xf32>
    %87 = math.rsqrt %86 : vector<32x1xf32>
    %88 = vector.broadcast %87 : vector<32x1xf32> to vector<32x32xf32>
    %89 = arith.mulf %84, %88 : vector<32x32xf32>
    %90 = vector.broadcast %14 : vector<1x32xf32> to vector<32x32xf32>
    %91 = arith.mulf %89, %90 : vector<32x32xf32>
    %92 = vector.broadcast %15 : vector<1x32xf32> to vector<32x32xf32>
    %93 = arith.addf %91, %92 : vector<32x32xf32>
    %cst_39 = arith.constant dense<0.000000e+00> : vector<32x16xf32>
    %94 = tpu.matmul %93, %9, %cst_39 {dimension_numbers = #tpu.dot_dimension_numbers<[1], [0], [0], [1], [0, 0, 1, 1], [], []>} : vector<32x32xf32>, vector<32x16xf32>, vector<32x16xf32> -> vector<32x16xf32>
    %95 = vector.broadcast %19 : vector<1x16xf32> to vector<32x16xf32>
    %96 = arith.addf %94, %95 : vector<32x16xf32>
    %cst_40 = arith.constant 0.000000e+00 : f32
    %97 = vector.broadcast %cst_40 : f32 to vector<32x16xf32>
    %98 = arith.maximumf %96, %97 : vector<32x16xf32>
    %cst_41 = arith.constant dense<0.000000e+00> : vector<32x32xf32>
    %99 = tpu.matmul %98, %11, %cst_41 {dimension_numbers = #tpu.dot_dimension_numbers<[1], [0], [0], [1], [0, 0, 1, 1], [], []>} : vector<32x16xf32>, vector<16x32xf32>, vector<32x32xf32> -> vector<32x32xf32>
    %100 = vector.broadcast %18 : vector<1x32xf32> to vector<32x32xf32>
    %101 = arith.addf %99, %100 : vector<32x32xf32>
    %102 = arith.addf %93, %101 : vector<32x32xf32>
    %cst_42 = arith.constant dense<0.000000e+00> : vector<32xf32>
    %103 = vector.multi_reduction <add>, %102, %cst_42 [1] : vector<32x32xf32> to vector<32xf32>
    %104 = vector.shape_cast %103 : vector<32xf32> to vector<32x1xf32>
    %cst_43 = arith.constant 3.200000e+01 : f32
    %105 = vector.broadcast %cst_43 : f32 to vector<32x1xf32>
    %106 = arith.divf %104, %105 : vector<32x1xf32>
    %107 = vector.broadcast %106 : vector<32x1xf32> to vector<32x32xf32>
    %108 = arith.subf %102, %107 : vector<32x32xf32>
    %109 = arith.mulf %108, %108 : vector<32x32xf32>
    %cst_44 = arith.constant dense<0.000000e+00> : vector<32xf32>
    %110 = vector.multi_reduction <add>, %109, %cst_44 [1] : vector<32x32xf32> to vector<32xf32>
    %111 = vector.shape_cast %110 : vector<32xf32> to vector<32x1xf32>
    %cst_45 = arith.constant 3.200000e+01 : f32
    %112 = vector.broadcast %cst_45 : f32 to vector<32x1xf32>
    %113 = arith.divf %111, %112 : vector<32x1xf32>
    %114 = vector.broadcast %106 : vector<32x1xf32> to vector<32x32xf32>
    %115 = arith.subf %102, %114 : vector<32x32xf32>
    %cst_46 = arith.constant 9.99999974E-6 : f32
    %116 = vector.broadcast %cst_46 : f32 to vector<32x1xf32>
    %117 = arith.addf %113, %116 : vector<32x1xf32>
    %118 = math.rsqrt %117 : vector<32x1xf32>
    %119 = vector.broadcast %118 : vector<32x1xf32> to vector<32x32xf32>
    %120 = arith.mulf %115, %119 : vector<32x32xf32>
    %121 = vector.broadcast %16 : vector<1x32xf32> to vector<32x32xf32>
    %122 = arith.mulf %120, %121 : vector<32x32xf32>
    %123 = vector.broadcast %17 : vector<1x32xf32> to vector<32x32xf32>
    %124 = arith.addf %122, %123 : vector<32x32xf32>
    %125 = vector.shape_cast %124 : vector<32x32xf32> to vector<2x16x32xf32>
    %c1 = arith.constant 1 : index
    %c0_47 = arith.constant 0 : index
    %c0_48 = arith.constant 0 : index
    %126 = vector.load %arg4[%c1, %c0_47, %c0_48] : memref<2x32x32xf32, #tpu.memory_space<vmem>>, vector<1x32x32xf32>
    %127 = vector.shape_cast %126 : vector<1x32x32xf32> to vector<32x32xf32>
    %c1_49 = arith.constant 1 : index
    %c0_50 = arith.constant 0 : index
    %c0_51 = arith.constant 0 : index
    %128 = vector.load %arg5[%c1_49, %c0_50, %c0_51] : memref<2x32x64xf32, #tpu.memory_space<vmem>>, vector<1x32x64xf32>
    %129 = vector.shape_cast %128 : vector<1x32x64xf32> to vector<32x64xf32>
    %c1_52 = arith.constant 1 : index
    %c0_53 = arith.constant 0 : index
    %c0_54 = arith.constant 0 : index
    %130 = vector.load %arg6[%c1_52, %c0_53, %c0_54] : memref<2x32x32xf32, #tpu.memory_space<vmem>>, vector<1x32x32xf32>
    %131 = vector.shape_cast %130 : vector<1x32x32xf32> to vector<32x32xf32>
    %c1_55 = arith.constant 1 : index
    %c0_56 = arith.constant 0 : index
    %c0_57 = arith.constant 0 : index
    %132 = vector.load %arg7[%c1_55, %c0_56, %c0_57] : memref<2x32x16xf32, #tpu.memory_space<vmem>>, vector<1x32x16xf32>
    %133 = vector.shape_cast %132 : vector<1x32x16xf32> to vector<32x16xf32>
    %c1_58 = arith.constant 1 : index
    %c0_59 = arith.constant 0 : index
    %c0_60 = arith.constant 0 : index
    %134 = vector.load %arg8[%c1_58, %c0_59, %c0_60] : memref<2x16x32xf32, #tpu.memory_space<vmem>>, vector<1x16x32xf32>
    %135 = vector.shape_cast %134 : vector<1x16x32xf32> to vector<16x32xf32>
    %c1_61 = arith.constant 1 : index
    %c0_62 = arith.constant 0 : index
    %c0_63 = arith.constant 0 : index
    %136 = vector.load %arg9[%c1_61, %c0_62, %c0_63] : memref<2x6x32xf32, #tpu.memory_space<vmem>>, vector<1x6x32xf32>
    %137 = vector.shape_cast %136 : vector<1x6x32xf32> to vector<6x32xf32>
    %138 = vector.extract_strided_slice %137 {offsets = [0, 0], sizes = [1, 32], strides = [1, 1]} : vector<6x32xf32> to vector<1x32xf32>
    %139 = vector.extract_strided_slice %137 {offsets = [1, 0], sizes = [1, 32], strides = [1, 1]} : vector<6x32xf32> to vector<1x32xf32>
    %140 = vector.extract_strided_slice %137 {offsets = [2, 0], sizes = [1, 32], strides = [1, 1]} : vector<6x32xf32> to vector<1x32xf32>
    %141 = vector.extract_strided_slice %137 {offsets = [3, 0], sizes = [1, 32], strides = [1, 1]} : vector<6x32xf32> to vector<1x32xf32>
    %142 = vector.extract_strided_slice %137 {offsets = [4, 0], sizes = [1, 32], strides = [1, 1]} : vector<6x32xf32> to vector<1x32xf32>
    %143 = vector.extract_strided_slice %137 {offsets = [5, 0], sizes = [1, 16], strides = [1, 1]} : vector<6x32xf32> to vector<1x16xf32>
    %144 = vector.shape_cast %0 : vector<2x8x32xf32> to vector<16x32xf32>
    %cst_64 = arith.constant dense<0.000000e+00> : vector<16x32xf32>
    %145 = tpu.matmul %144, %127, %cst_64 {dimension_numbers = #tpu.dot_dimension_numbers<[1], [0], [0], [1], [0, 0, 1, 1], [], []>} : vector<16x32xf32>, vector<32x32xf32>, vector<16x32xf32> -> vector<16x32xf32>
    %146 = vector.shape_cast %145 : vector<16x32xf32> to vector<2x8x32xf32>
    %147 = vector.shape_cast %125 : vector<2x16x32xf32> to vector<32x32xf32>
    %cst_65 = arith.constant dense<0.000000e+00> : vector<32x64xf32>
    %148 = tpu.matmul %147, %129, %cst_65 {dimension_numbers = #tpu.dot_dimension_numbers<[1], [0], [0], [1], [0, 0, 1, 1], [], []>} : vector<32x32xf32>, vector<32x64xf32>, vector<32x64xf32> -> vector<32x64xf32>
    %149 = vector.extract_strided_slice %148 {offsets = [0, 0], sizes = [32, 32], strides = [1, 1]} : vector<32x64xf32> to vector<32x32xf32>
    %150 = vector.shape_cast %149 : vector<32x32xf32> to vector<2x16x32xf32>
    %151 = vector.extract_strided_slice %148 {offsets = [0, 32], sizes = [32, 32], strides = [1, 1]} : vector<32x64xf32> to vector<32x32xf32>
    %152 = vector.shape_cast %151 : vector<32x32xf32> to vector<2x16x32xf32>
    %153 = vector.extract_strided_slice %146 {offsets = [0, 0, 0], sizes = [2, 8, 16], strides = [1, 1, 1]} : vector<2x8x32xf32> to vector<2x8x16xf32>
    %154 = vector.extract_strided_slice %150 {offsets = [0, 0, 0], sizes = [2, 16, 16], strides = [1, 1, 1]} : vector<2x16x32xf32> to vector<2x16x16xf32>
    "tpu.trace_start"() <{level = 10 : i32, message = "bqd,bkd->bqk"}> : () -> ()
    %cst_66 = arith.constant dense<0.000000e+00> : vector<2x8x16xf32>
    %155 = tpu.matmul %153, %154, %cst_66 {dimension_numbers = #tpu.dot_dimension_numbers<[2], [2], [1], [1], [0, 0, 0, 1, 1, 1], [0], [0]>} : vector<2x8x16xf32>, vector<2x16x16xf32>, vector<2x8x16xf32> -> vector<2x8x16xf32>
    "tpu.trace_stop"() : () -> ()
    %cst_67 = arith.constant 2.500000e-01 : f32
    %156 = vector.broadcast %cst_67 : f32 to vector<2x8x16xf32>
    %157 = arith.mulf %155, %156 : vector<2x8x16xf32>
    %cst_68 = arith.constant dense<0xFF800000> : vector<2x8xf32>
    %158 = vector.multi_reduction <maximumf>, %157, %cst_68 [2] : vector<2x8x16xf32> to vector<2x8xf32>
    %159 = vector.shape_cast %158 : vector<2x8xf32> to vector<2x8x1xf32>
    %160 = vector.broadcast %159 : vector<2x8x1xf32> to vector<2x8x16xf32>
    %161 = arith.subf %157, %160 : vector<2x8x16xf32>
    %162 = math.exp %161 : vector<2x8x16xf32>
    %cst_69 = arith.constant dense<0.000000e+00> : vector<2x8xf32>
    %163 = vector.multi_reduction <add>, %162, %cst_69 [2] : vector<2x8x16xf32> to vector<2x8xf32>
    %164 = vector.shape_cast %163 : vector<2x8xf32> to vector<2x8x1xf32>
    %165 = tpu.reciprocal %164 {approx = true} : vector<2x8x1xf32> -> vector<2x8x1xf32>
    %166 = vector.broadcast %165 : vector<2x8x1xf32> to vector<2x8x16xf32>
    %167 = arith.mulf %162, %166 : vector<2x8x16xf32>
    %168 = vector.extract_strided_slice %152 {offsets = [0, 0, 0], sizes = [2, 16, 16], strides = [1, 1, 1]} : vector<2x16x32xf32> to vector<2x16x16xf32>
    "tpu.trace_start"() <{level = 10 : i32, message = "bqk,bkd->bqd"}> : () -> ()
    %cst_70 = arith.constant dense<0.000000e+00> : vector<2x8x16xf32>
    %169 = tpu.matmul %167, %168, %cst_70 {dimension_numbers = #tpu.dot_dimension_numbers<[2], [1], [1], [2], [0, 0, 0, 1, 1, 2], [0], [0]>} : vector<2x8x16xf32>, vector<2x16x16xf32>, vector<2x8x16xf32> -> vector<2x8x16xf32>
    "tpu.trace_stop"() : () -> ()
    %170 = vector.extract_strided_slice %146 {offsets = [0, 0, 16], sizes = [2, 8, 16], strides = [1, 1, 1]} : vector<2x8x32xf32> to vector<2x8x16xf32>
    %171 = vector.extract_strided_slice %150 {offsets = [0, 0, 16], sizes = [2, 16, 16], strides = [1, 1, 1]} : vector<2x16x32xf32> to vector<2x16x16xf32>
    "tpu.trace_start"() <{level = 10 : i32, message = "bqd,bkd->bqk"}> : () -> ()
    %cst_71 = arith.constant dense<0.000000e+00> : vector<2x8x16xf32>
    %172 = tpu.matmul %170, %171, %cst_71 {dimension_numbers = #tpu.dot_dimension_numbers<[2], [2], [1], [1], [0, 0, 0, 1, 1, 1], [0], [0]>} : vector<2x8x16xf32>, vector<2x16x16xf32>, vector<2x8x16xf32> -> vector<2x8x16xf32>
    "tpu.trace_stop"() : () -> ()
    %cst_72 = arith.constant 2.500000e-01 : f32
    %173 = vector.broadcast %cst_72 : f32 to vector<2x8x16xf32>
    %174 = arith.mulf %172, %173 : vector<2x8x16xf32>
    %cst_73 = arith.constant dense<0xFF800000> : vector<2x8xf32>
    %175 = vector.multi_reduction <maximumf>, %174, %cst_73 [2] : vector<2x8x16xf32> to vector<2x8xf32>
    %176 = vector.shape_cast %175 : vector<2x8xf32> to vector<2x8x1xf32>
    %177 = vector.broadcast %176 : vector<2x8x1xf32> to vector<2x8x16xf32>
    %178 = arith.subf %174, %177 : vector<2x8x16xf32>
    %179 = math.exp %178 : vector<2x8x16xf32>
    %cst_74 = arith.constant dense<0.000000e+00> : vector<2x8xf32>
    %180 = vector.multi_reduction <add>, %179, %cst_74 [2] : vector<2x8x16xf32> to vector<2x8xf32>
    %181 = vector.shape_cast %180 : vector<2x8xf32> to vector<2x8x1xf32>
    %182 = tpu.reciprocal %181 {approx = true} : vector<2x8x1xf32> -> vector<2x8x1xf32>
    %183 = vector.broadcast %182 : vector<2x8x1xf32> to vector<2x8x16xf32>
    %184 = arith.mulf %179, %183 : vector<2x8x16xf32>
    %185 = vector.extract_strided_slice %152 {offsets = [0, 0, 16], sizes = [2, 16, 16], strides = [1, 1, 1]} : vector<2x16x32xf32> to vector<2x16x16xf32>
    "tpu.trace_start"() <{level = 10 : i32, message = "bqk,bkd->bqd"}> : () -> ()
    %cst_75 = arith.constant dense<0.000000e+00> : vector<2x8x16xf32>
    %186 = tpu.matmul %184, %185, %cst_75 {dimension_numbers = #tpu.dot_dimension_numbers<[2], [1], [1], [2], [0, 0, 0, 1, 1, 2], [0], [0]>} : vector<2x8x16xf32>, vector<2x16x16xf32>, vector<2x8x16xf32> -> vector<2x8x16xf32>
    "tpu.trace_stop"() : () -> ()
    %187 = tpu.concatenate %169, %186 in 2 : vector<2x8x16xf32>, vector<2x8x16xf32> -> vector<2x8x32xf32>
    %188 = vector.shape_cast %187 : vector<2x8x32xf32> to vector<16x32xf32>
    %cst_76 = arith.constant dense<0.000000e+00> : vector<16x32xf32>
    %189 = tpu.matmul %188, %131, %cst_76 {dimension_numbers = #tpu.dot_dimension_numbers<[1], [0], [0], [1], [0, 0, 1, 1], [], []>} : vector<16x32xf32>, vector<32x32xf32>, vector<16x32xf32> -> vector<16x32xf32>
    %190 = vector.shape_cast %189 : vector<16x32xf32> to vector<2x8x32xf32>
    %191 = arith.addf %190, %0 : vector<2x8x32xf32>
    %192 = vector.shape_cast %191 : vector<2x8x32xf32> to vector<16x32xf32>
    %cst_77 = arith.constant dense<0.000000e+00> : vector<16xf32>
    %193 = vector.multi_reduction <add>, %192, %cst_77 [1] : vector<16x32xf32> to vector<16xf32>
    %194 = vector.shape_cast %193 : vector<16xf32> to vector<16x1xf32>
    %cst_78 = arith.constant 3.200000e+01 : f32
    %195 = vector.broadcast %cst_78 : f32 to vector<16x1xf32>
    %196 = arith.divf %194, %195 : vector<16x1xf32>
    %197 = vector.broadcast %196 : vector<16x1xf32> to vector<16x32xf32>
    %198 = arith.subf %192, %197 : vector<16x32xf32>
    %199 = arith.mulf %198, %198 : vector<16x32xf32>
    %cst_79 = arith.constant dense<0.000000e+00> : vector<16xf32>
    %200 = vector.multi_reduction <add>, %199, %cst_79 [1] : vector<16x32xf32> to vector<16xf32>
    %201 = vector.shape_cast %200 : vector<16xf32> to vector<16x1xf32>
    %cst_80 = arith.constant 3.200000e+01 : f32
    %202 = vector.broadcast %cst_80 : f32 to vector<16x1xf32>
    %203 = arith.divf %201, %202 : vector<16x1xf32>
    %204 = vector.broadcast %196 : vector<16x1xf32> to vector<16x32xf32>
    %205 = arith.subf %192, %204 : vector<16x32xf32>
    %cst_81 = arith.constant 9.99999974E-6 : f32
    %206 = vector.broadcast %cst_81 : f32 to vector<16x1xf32>
    %207 = arith.addf %203, %206 : vector<16x1xf32>
    %208 = math.rsqrt %207 : vector<16x1xf32>
    %209 = vector.broadcast %208 : vector<16x1xf32> to vector<16x32xf32>
    %210 = arith.mulf %205, %209 : vector<16x32xf32>
    %211 = vector.broadcast %138 : vector<1x32xf32> to vector<16x32xf32>
    %212 = arith.mulf %210, %211 : vector<16x32xf32>
    %213 = vector.broadcast %139 : vector<1x32xf32> to vector<16x32xf32>
    %214 = arith.addf %212, %213 : vector<16x32xf32>
    %cst_82 = arith.constant dense<0.000000e+00> : vector<16x16xf32>
    %215 = tpu.matmul %214, %133, %cst_82 {dimension_numbers = #tpu.dot_dimension_numbers<[1], [0], [0], [1], [0, 0, 1, 1], [], []>} : vector<16x32xf32>, vector<32x16xf32>, vector<16x16xf32> -> vector<16x16xf32>
    %216 = vector.broadcast %143 : vector<1x16xf32> to vector<16x16xf32>
    %217 = arith.addf %215, %216 : vector<16x16xf32>
    %cst_83 = arith.constant 0.000000e+00 : f32
    %218 = vector.broadcast %cst_83 : f32 to vector<16x16xf32>
    %219 = arith.maximumf %217, %218 : vector<16x16xf32>
    %cst_84 = arith.constant dense<0.000000e+00> : vector<16x32xf32>
    %220 = tpu.matmul %219, %135, %cst_84 {dimension_numbers = #tpu.dot_dimension_numbers<[1], [0], [0], [1], [0, 0, 1, 1], [], []>} : vector<16x16xf32>, vector<16x32xf32>, vector<16x32xf32> -> vector<16x32xf32>
    %221 = vector.broadcast %142 : vector<1x32xf32> to vector<16x32xf32>
    %222 = arith.addf %220, %221 : vector<16x32xf32>
    %223 = arith.addf %214, %222 : vector<16x32xf32>
    %cst_85 = arith.constant dense<0.000000e+00> : vector<16xf32>
    %224 = vector.multi_reduction <add>, %223, %cst_85 [1] : vector<16x32xf32> to vector<16xf32>
    %225 = vector.shape_cast %224 : vector<16xf32> to vector<16x1xf32>
    %cst_86 = arith.constant 3.200000e+01 : f32
    %226 = vector.broadcast %cst_86 : f32 to vector<16x1xf32>
    %227 = arith.divf %225, %226 : vector<16x1xf32>
    %228 = vector.broadcast %227 : vector<16x1xf32> to vector<16x32xf32>
    %229 = arith.subf %223, %228 : vector<16x32xf32>
    %230 = arith.mulf %229, %229 : vector<16x32xf32>
    %cst_87 = arith.constant dense<0.000000e+00> : vector<16xf32>
    %231 = vector.multi_reduction <add>, %230, %cst_87 [1] : vector<16x32xf32> to vector<16xf32>
    %232 = vector.shape_cast %231 : vector<16xf32> to vector<16x1xf32>
    %cst_88 = arith.constant 3.200000e+01 : f32
    %233 = vector.broadcast %cst_88 : f32 to vector<16x1xf32>
    %234 = arith.divf %232, %233 : vector<16x1xf32>
    %235 = vector.broadcast %227 : vector<16x1xf32> to vector<16x32xf32>
    %236 = arith.subf %223, %235 : vector<16x32xf32>
    %cst_89 = arith.constant 9.99999974E-6 : f32
    %237 = vector.broadcast %cst_89 : f32 to vector<16x1xf32>
    %238 = arith.addf %234, %237 : vector<16x1xf32>
    %239 = math.rsqrt %238 : vector<16x1xf32>
    %240 = vector.broadcast %239 : vector<16x1xf32> to vector<16x32xf32>
    %241 = arith.mulf %236, %240 : vector<16x32xf32>
    %242 = vector.broadcast %140 : vector<1x32xf32> to vector<16x32xf32>
    %243 = arith.mulf %241, %242 : vector<16x32xf32>
    %244 = vector.broadcast %141 : vector<1x32xf32> to vector<16x32xf32>
    %245 = arith.addf %243, %244 : vector<16x32xf32>
    %246 = vector.shape_cast %245 : vector<16x32xf32> to vector<2x8x32xf32>
    %c0_90 = arith.constant 0 : index
    %c0_91 = arith.constant 0 : index
    %c0_92 = arith.constant 0 : index
    %247 = vector.load %arg11[%c0_90, %c0_91, %c0_92] : memref<2x8x32xf32, #tpu.memory_space<vmem>>, vector<2x8x32xf32>
    tpu.vector_store %arg11[%c0_90, %c0_91, %c0_92], %246 {strides = array<i32>} : memref<2x8x32xf32, #tpu.memory_space<vmem>>, vector<2x8x32xf32>,
    %c0_93 = arith.constant 0 : index
    %c0_94 = arith.constant 0 : index
    %248 = vector.load %arg10[%c0_93, %c0_94] : memref<2x32xf32, #tpu.memory_space<vmem>>, vector<1x32xf32>
    %249 = vector.shape_cast %248 : vector<1x32xf32> to vector<1x1x32xf32>
    %250 = vector.shape_cast %249 : vector<1x1x32xf32> to vector<1x1x32xf32>
    %251 = vector.broadcast %250 : vector<1x1x32xf32> to vector<2x1x32xf32>
    "tpu.trace_start"() <{level = 10 : i32, message = "bkd,bjd->bkj"}> : () -> ()
    %cst_95 = arith.constant dense<0.000000e+00> : vector<2x1x8xf32>
    %252 = tpu.matmul %251, %246, %cst_95 {dimension_numbers = #tpu.dot_dimension_numbers<[2], [2], [1], [1], [0, 0, 0, 1, 1, 1], [0], [0]>} : vector<2x1x32xf32>, vector<2x8x32xf32>, vector<2x1x8xf32> -> vector<2x1x8xf32>
    "tpu.trace_stop"() : () -> ()
    %c0_96 = arith.constant 0 : index
    %c0_97 = arith.constant 0 : index
    %c0_98 = arith.constant 0 : index
    %253 = vector.load %arg2[%c0_96, %c0_97, %c0_98] : memref<2x8x8xf32, #tpu.memory_space<vmem>>, vector<2x8x8xf32>
    "tpu.trace_start"() <{level = 10 : i32, message = "bkj,bij->bki"}> : () -> ()
    %cst_99 = arith.constant dense<0.000000e+00> : vector<2x1x8xf32>
    %254 = tpu.matmul %252, %253, %cst_99 {dimension_numbers = #tpu.dot_dimension_numbers<[2], [2], [1], [1], [0, 0, 0, 1, 1, 1], [0], [0]>} : vector<2x1x8xf32>, vector<2x8x8xf32>, vector<2x1x8xf32> -> vector<2x1x8xf32>
    "tpu.trace_stop"() : () -> ()
    %c1_100 = arith.constant 1 : index
    %c0_101 = arith.constant 0 : index
    %255 = vector.load %arg10[%c1_100, %c0_101] : memref<2x32xf32, #tpu.memory_space<vmem>>, vector<1x1xf32>
    %256 = vector.shape_cast %255 : vector<1x1xf32> to vector<1x1x1xf32>
    %257 = vector.broadcast %256 : vector<1x1x1xf32> to vector<2x1x8xf32>
    %258 = arith.addf %254, %257 : vector<2x1x8xf32>
    %c0_102 = arith.constant 0 : index
    %c0_103 = arith.constant 0 : index
    %c0_104 = arith.constant 0 : index
    %259 = vector.load %arg12[%c0_102, %c0_103, %c0_104] : memref<2x1x8xf32, #tpu.memory_space<vmem>>, vector<2x1x8xf32>
    tpu.vector_store %arg12[%c0_102, %c0_103, %c0_104], %258 {strides = array<i32>} : memref<2x1x8xf32, #tpu.memory_space<vmem>>, vector<2x1x8xf32>,
    return
  }
  func.func @transform_0(%arg0: i32) -> (i32, i32, i32) {
    %c0_i32 = arith.constant 0 : i32
    %c0_i32_0 = arith.constant 0 : i32
    %c0_i32_1 = arith.constant 0 : i32
    %c0_i32_2 = arith.constant 0 : i32
    return %c0_i32, %c0_i32_0, %c0_i32_1 : i32, i32, i32
  }
  func.func @transform_1(%arg0: i32) -> (i32, i32, i32) {
    %c0_i32 = arith.constant 0 : i32
    %c0_i32_0 = arith.constant 0 : i32
    %c0_i32_1 = arith.constant 0 : i32
    %c0_i32_2 = arith.constant 0 : i32
    return %c0_i32, %c0_i32_0, %c0_i32_1 : i32, i32, i32
  }
  func.func @transform_2(%arg0: i32) -> (i32, i32) {
    %c0_i32 = arith.constant 0 : i32
    %c0_i32_0 = arith.constant 0 : i32
    %c0_i32_1 = arith.constant 0 : i32
    return %c0_i32, %c0_i32_0 : i32, i32
  }
  func.func @transform_3(%arg0: i32) -> (i32, i32, i32) {
    %c0_i32 = arith.constant 0 : i32
    %c0_i32_0 = arith.constant 0 : i32
    %c0_i32_1 = arith.constant 0 : i32
    %c0_i32_2 = arith.constant 0 : i32
    return %c0_i32, %c0_i32_0, %c0_i32_1 : i32, i32, i32
  }
  func.func @transform_4(%arg0: i32) -> (i32, i32, i32) {
    %c0_i32 = arith.constant 0 : i32
    %c0_i32_0 = arith.constant 0 : i32
    %c0_i32_1 = arith.constant 0 : i32
    %c0_i32_2 = arith.constant 0 : i32
    return %c0_i32, %c0_i32_0, %c0_i32_1 : i32, i32, i32
  }
  func.func @transform_5(%arg0: i32) -> (i32, i32, i32) {
    %c0_i32 = arith.constant 0 : i32
    %c0_i32_0 = arith.constant 0 : i32
    %c0_i32_1 = arith.constant 0 : i32
    %c0_i32_2 = arith.constant 0 : i32
    return %c0_i32, %c0_i32_0, %c0_i32_1 : i32, i32, i32
  }
  func.func @transform_6(%arg0: i32) -> (i32, i32, i32) {
    %c0_i32 = arith.constant 0 : i32
    %c0_i32_0 = arith.constant 0 : i32
    %c0_i32_1 = arith.constant 0 : i32
    %c0_i32_2 = arith.constant 0 : i32
    return %c0_i32, %c0_i32_0, %c0_i32_1 : i32, i32, i32
  }
  func.func @transform_7(%arg0: i32) -> (i32, i32, i32) {
    %c0_i32 = arith.constant 0 : i32
    %c0_i32_0 = arith.constant 0 : i32
    %c0_i32_1 = arith.constant 0 : i32
    %c0_i32_2 = arith.constant 0 : i32
    return %c0_i32, %c0_i32_0, %c0_i32_1 : i32, i32, i32
  }
  func.func @transform_8(%arg0: i32) -> (i32, i32, i32) {
    %c0_i32 = arith.constant 0 : i32
    %c0_i32_0 = arith.constant 0 : i32
    %c0_i32_1 = arith.constant 0 : i32
    %c0_i32_2 = arith.constant 0 : i32
    return %c0_i32, %c0_i32_0, %c0_i32_1 : i32, i32, i32
  }
  func.func @transform_9(%arg0: i32) -> (i32, i32) {
    %c0_i32 = arith.constant 0 : i32
    %c0_i32_0 = arith.constant 0 : i32
    %c0_i32_1 = arith.constant 0 : i32
    return %c0_i32, %c0_i32_0 : i32, i32
  }
  func.func @transform_10(%arg0: i32) -> (i32, i32, i32) {
    %c0_i32 = arith.constant 0 : i32
    %c0_i32_0 = arith.constant 0 : i32
    %c0_i32_1 = arith.constant 0 : i32
    %c0_i32_2 = arith.constant 0 : i32
    return %c0_i32, %c0_i32_0, %c0_i32_1 : i32, i32, i32
  }
  func.func @transform_11(%arg0: i32) -> (i32, i32, i32) {
    %c0_i32 = arith.constant 0 : i32
    %c0_i32_0 = arith.constant 0 : i32
    %c0_i32_1 = arith.constant 0 : i32
    %c0_i32_2 = arith.constant 0 : i32
    return %c0_i32, %c0_i32_0, %c0_i32_1 : i32, i32, i32
  }
}

module attributes {stable_mosaic.version = 11 : i64} {
  func.func @gather_scale_kernel(%arg0: i32, %arg1: memref<1x4x1xi32, #tpu.memory_space<vmem>>, %arg2: memref<1x8x32xf32, #tpu.memory_space<vmem>>, %arg3: memref<1x1x8xf32, #tpu.memory_space<vmem>>, %arg4: memref<1x4x32xf32, #tpu.memory_space<vmem>>) attributes {dimension_semantics = [#tpu.dimension_semantics<parallel>], iteration_bounds = array<i64: 2>, scalar_prefetch = 0 : i64, scratch_operands = 0 : i64, tpu.core_type = #tpu.core_type<tc>, window_params = [{transform_indices = @transform_0, window_bounds = array<i64: 1, 4, 1>}, {transform_indices = @transform_1, window_bounds = array<i64: 1, 8, 32>}, {transform_indices = @transform_2, window_bounds = array<i64: 1, 1, 8>}, {transform_indices = @transform_3, window_bounds = array<i64: 1, 4, 32>}]} {
    %c0 = arith.constant 0 : index
    %c0_0 = arith.constant 0 : index
    %c0_1 = arith.constant 0 : index
    %0 = vector.load %arg1[%c0, %c0_0, %c0_1] : memref<1x4x1xi32, #tpu.memory_space<vmem>>, vector<1x4x1xi32>
    %1 = vector.shape_cast %0 : vector<1x4x1xi32> to vector<4x1xi32>
    %c0_2 = arith.constant 0 : index
    %c0_3 = arith.constant 0 : index
    %c0_4 = arith.constant 0 : index
    %2 = vector.load %arg2[%c0_2, %c0_3, %c0_4] : memref<1x8x32xf32, #tpu.memory_space<vmem>>, vector<1x8x32xf32>
    %3 = vector.shape_cast %2 : vector<1x8x32xf32> to vector<8x32xf32>
    %c0_5 = arith.constant 0 : index
    %c0_6 = arith.constant 0 : index
    %c0_7 = arith.constant 0 : index
    %4 = vector.load %arg3[%c0_5, %c0_6, %c0_7] : memref<1x1x8xf32, #tpu.memory_space<vmem>>, vector<1x1x8xf32>
    %5 = vector.shape_cast %4 : vector<1x1x8xf32> to vector<1x8xf32>
    %6 = tpu.iota {dimensions = array<i32: 1>} : vector<4x8xi32>
    %7 = vector.broadcast %1 : vector<4x1xi32> to vector<4x8xi32>
    %8 = arith.cmpi eq, %6, %7 : vector<4x8xi32>
    %9 = math.tanh %5 : vector<1x8xf32>
    %cst = arith.constant 0.000000e+00 : f32
    %10 = vector.shape_cast %9 : vector<1x8xf32> to vector<1x8xf32>
    %11 = vector.broadcast %10 : vector<1x8xf32> to vector<4x8xf32>
    %12 = vector.broadcast %cst : f32 to vector<4x8xf32>
    %13 = arith.select %8, %11, %12 : vector<4x8xi1>, vector<4x8xf32>
    %cst_8 = arith.constant dense<0.000000e+00> : vector<4x32xf32>
    %14 = tpu.matmul %13, %3, %cst_8 {dimension_numbers = #tpu.dot_dimension_numbers<[1], [0], [0], [1], [0, 0, 1, 1], [], []>} : vector<4x8xf32>, vector<8x32xf32>, vector<4x32xf32> -> vector<4x32xf32>
    %c0_9 = arith.constant 0 : index
    %c0_10 = arith.constant 0 : index
    %c0_11 = arith.constant 0 : index
    %15 = vector.load %arg4[%c0_9, %c0_10, %c0_11] : memref<1x4x32xf32, #tpu.memory_space<vmem>>, vector<1x4x32xf32>
    %16 = vector.shape_cast %15 : vector<1x4x32xf32> to vector<4x32xf32>
    %17 = vector.shape_cast %14 : vector<4x32xf32> to vector<1x4x32xf32>
    tpu.vector_store %arg4[%c0_9, %c0_10, %c0_11], %17 {strides = array<i32>} : memref<1x4x32xf32, #tpu.memory_space<vmem>>, vector<1x4x32xf32>,
    return
  }
  func.func @transform_0(%arg0: i32) -> (i32, i32, i32) {
    %c0_i32 = arith.constant 0 : i32
    %c0_i32_0 = arith.constant 0 : i32
    %c0_i32_1 = arith.constant 0 : i32
    return %arg0, %c0_i32, %c0_i32_0 : i32, i32, i32
  }
  func.func @transform_1(%arg0: i32) -> (i32, i32, i32) {
    %c0_i32 = arith.constant 0 : i32
    %c0_i32_0 = arith.constant 0 : i32
    %c0_i32_1 = arith.constant 0 : i32
    return %arg0, %c0_i32, %c0_i32_0 : i32, i32, i32
  }
  func.func @transform_2(%arg0: i32) -> (i32, i32, i32) {
    %c0_i32 = arith.constant 0 : i32
    %c0_i32_0 = arith.constant 0 : i32
    %c0_i32_1 = arith.constant 0 : i32
    return %arg0, %c0_i32, %c0_i32_0 : i32, i32, i32
  }
  func.func @transform_3(%arg0: i32) -> (i32, i32, i32) {
    %c0_i32 = arith.constant 0 : i32
    %c0_i32_0 = arith.constant 0 : i32
    %c0_i32_1 = arith.constant 0 : i32
    return %arg0, %c0_i32, %c0_i32_0 : i32, i32, i32
  }
}

</mosaic_0001>

<llo_original>
// kernel: transformer_sag_pool.3
$region0: #{transformer_sag_pool.3}
  #allocation0 [shape = 'u32[]', space=smem, size = 0x4, offset = 0x4, fixed_abs, tag = 'smem constant byte address 0x4 - core index']
  #allocation1 [shape = 'u32[144,128]{1,0:T(1,128)}', space=vmem, size = 0x12000, scoped, tag = 'internal scratch']
  %s0 = inlined_call_operand.vmem [shape: s32[2,4,1], index: 0, kind: input, shape index: {}]
  %s1 = inlined_call_operand.vmem [shape: f32[2,8,32], index: 1, kind: input, shape index: {}]
  %s2 = inlined_call_operand.vmem [shape: f32[2,1,8], index: 2, kind: input, shape index: {}]
  %s3 = inlined_call_operand.hbm [shape: f32[2,4,32], index: 3, kind: output, shape index: {}]
  %s4 = sld [smem:[#allocation0]]
  $region45: #{transformer_sag_pool.3} parent=0
    _
  %s6 = ssub.s32 1, %s4
  %s7 = scalar_select 0, %s6, %s4
  $region1: #{transformer_sag_pool.3} parent=0
    #allocation2 [shape = 'u8[4096]{0}', space=vmem, size = 0x1000, scoped, tag = 'output window, operand 0']
    #allocation3 [shape = 's32[2]{0}', space=sflag, size = 0x8, scoped, tag = 'scoped memory for transformer_sag_pool.3']
    %8 = vsyncpa [#allocation3], 0
    %s9 = scalar_lea.sflag [#allocation3], 1
    %10 = vsyncpa %s9, 0
    loop: start=0, step=1, limit=4
    $region2: #{transformer_sag_pool.3} parent=1 // loop_pre_header
      _
    $region3: #{transformer_sag_pool.3} parent=1 // loop_header
      %s12 = sphi 0, %s16
      %p13 = scmp.ge.s32.totalorder %s12, 4
      %s22 = sphi 0, %s24
      %s25 = sphi 0, %s22
      %s26 = sphi 0, %s25
      %s42 = sphi 0, %s26
      %s48 = sphi 0, %s50
      %s51 = sphi 0, %s48
      %s52 = sphi 0, %s51
      %s68 = sphi 0, %s52
      %s74 = sphi 0, %s76
      %s77 = sphi 0, %s74
      %s78 = sphi 0, %s77
      %s94 = sphi 0, %s78
      %s100 = sphi 0, %s102
      %s103 = sphi 0, %s100
      %s104 = sphi 0, %s103
      %s120 = sphi 0, %s104
    $region4: #{transformer_sag_pool.3} parent=1 // loop_header_branch
      %15 = sbr.rel (%p13) target = $region8
    $region5: #{transformer_sag_pool.3} parent=1 // loop_body
      %s17 = ssub.s32 %s12, 1
      %s18 = ssub.s32 %s12, 2
      %s19 = sadd.s32 %s12, 1
      %s20 = ssub.s32 %s12, %s19
      %p21 = scmp.eq.s32.totalorder %s20, 0
      %s23 = sadd.s32 %s22, 1
      %s24 = scalar_select %p21, %s22, %s23
      %p27 = pneg %p21
      %p28 = scmp.eq.s32.totalorder %s12, 1
      %p29 = por %p27, %p28
      %p30 = scmp.ne.s32.totalorder %s22, %s25
      %p31 = scmp.eq.s32.totalorder %s12, 0
      %p32 = por %p30, %p31
      %p33 = scmp.ne.s32.totalorder %s22, %s25
      %p34 = scmp.eq.s32.totalorder %s17, 1
      %p35 = por %p33, %p34
      %p36 = scmp.ne.s32.totalorder %s25, %s26
      %p37 = scmp.eq.s32.totalorder %s17, 0
      %p38 = por %p36, %p37
      %p39 = scmp.ne.s32.totalorder %s25, %s26
      %p40 = scmp.eq.s32.totalorder %s18, 1
      %p41 = por %p39, %p40
      %p43 = scmp.ne.s32.totalorder %s26, %s42
      %p44 = scmp.eq.s32.totalorder %s18, 0
      %p45 = por %p43, %p44
      %s46 = ssub.s32 %s12, %s19
      %p47 = scmp.eq.s32.totalorder %s46, 0
      %s49 = sadd.s32 %s48, 1
      %s50 = scalar_select %p47, %s48, %s49
      %p53 = pneg %p47
      %p54 = scmp.eq.s32.totalorder %s12, 1
      %p55 = por %p53, %p54
      %p56 = scmp.ne.s32.totalorder %s48, %s51
      %p57 = scmp.eq.s32.totalorder %s12, 0
      %p58 = por %p56, %p57
      %p59 = scmp.ne.s32.totalorder %s48, %s51
      %p60 = scmp.eq.s32.totalorder %s17, 1
      %p61 = por %p59, %p60
      %p62 = scmp.ne.s32.totalorder %s51, %s52
      %p63 = scmp.eq.s32.totalorder %s17, 0
      %p64 = por %p62, %p63
      %p65 = scmp.ne.s32.totalorder %s51, %s52
      %p66 = scmp.eq.s32.totalorder %s18, 1
      %p67 = por %p65, %p66
      %p69 = scmp.ne.s32.totalorder %s52, %s68
      %p70 = scmp.eq.s32.totalorder %s18, 0
      %p71 = por %p69, %p70
      %s72 = ssub.s32 %s12, %s19
      %p73 = scmp.eq.s32.totalorder %s72, 0
      %s75 = sadd.s32 %s74, 1
      %s76 = scalar_select %p73, %s74, %s75
      %p79 = pneg %p73
      %p80 = scmp.eq.s32.totalorder %s12, 1
      %p81 = por %p79, %p80
      %p82 = scmp.ne.s32.totalorder %s74, %s77
      %p83 = scmp.eq.s32.totalorder %s12, 0
      %p84 = por %p82, %p83
      %p85 = scmp.ne.s32.totalorder %s74, %s77
      %p86 = scmp.eq.s32.totalorder %s17, 1
      %p87 = por %p85, %p86
      %p88 = scmp.ne.s32.totalorder %s77, %s78
      %p89 = scmp.eq.s32.totalorder %s17, 0
      %p90 = por %p88, %p89
      %p91 = scmp.ne.s32.totalorder %s77, %s78
      %p92 = scmp.eq.s32.totalorder %s18, 1
      %p93 = por %p91, %p92
      %p95 = scmp.ne.s32.totalorder %s78, %s94
      %p96 = scmp.eq.s32.totalorder %s18, 0
      %p97 = por %p95, %p96
      %s98 = ssub.s32 %s12, %s19
      %p99 = scmp.eq.s32.totalorder %s98, 0
      %s101 = sadd.s32 %s100, 1
      %s102 = scalar_select %p99, %s100, %s101
      %p105 = pneg %p99
      %p106 = scmp.eq.s32.totalorder %s12, 1
      %p107 = por %p105, %p106
      %p108 = scmp.ne.s32.totalorder %s100, %s103
      %p109 = scmp.eq.s32.totalorder %s12, 0
      %p110 = por %p108, %p109
      %p111 = scmp.ne.s32.totalorder %s100, %s103
      %p112 = scmp.eq.s32.totalorder %s17, 1
      %p113 = por %p111, %p112
      %p114 = scmp.ne.s32.totalorder %s103, %s104
      %p115 = scmp.eq.s32.totalorder %s17, 0
      %p116 = por %p114, %p115
      %p117 = scmp.ne.s32.totalorder %s103, %s104
      %p118 = scmp.eq.s32.totalorder %s18, 1
      %p119 = por %p117, %p118
      %p121 = scmp.ne.s32.totalorder %s104, %s120
      %p122 = scmp.eq.s32.totalorder %s18, 0
      %p123 = por %p121, %p122
      %p124 = scmp.le.s32.totalorder 1, %s12
      %p125 = scmp.lt.s32.totalorder %s12, 3
      %p126 = pnand %p124, %p125
      %p127 = pneg %p126
      // Predicated region
      $region9: #{transformer_sag_pool.3} parent=5 // pred_check
        _
      $region10: #{transformer_sag_pool.3} parent=5 // pred_check_branch
        %129 = sbr.rel (%p126) target = $region12
      $region11: #{transformer_sag_pool.3} parent=5 // pred_region
        %s130 = ssub.s32 %s12, 1
      $region12: #{transformer_sag_pool.3} parent=5 // pred_fallthru
        _
      %p131 = scmp.lt.s32.totalorder %s12, 2
      // Predicated region
      $region13: #{transformer_sag_pool.3} parent=5 // pred_check
        %p132 = pneg %p131
      $region14: #{transformer_sag_pool.3} parent=5 // pred_check_branch
        %134 = sbr.rel (%p132) target = $region16
      $region15: #{transformer_sag_pool.3} parent=5 // pred_region
        // Predicated region
        $region17: #{transformer_sag_pool.3} parent=15 // pred_check
          %p135 = pneg %p32
        $region18: #{transformer_sag_pool.3} parent=15 // pred_check_branch
          %137 = sbr.rel (%p135) target = $region20
        $region19: #{transformer_sag_pool.3} parent=15 // pred_region
          %p138 = scmp.lt.s32.totalorder %s12, 1
          %s139 = scalar_select %p138, %s12, 1
          %s140 = smul.addr %s139, 4
          %s141 = scalar_lea.vmem %s0, %s140
        $region20: #{transformer_sag_pool.3} parent=15 // pred_fallthru
          _
        // Predicated region
        $region21: #{transformer_sag_pool.3} parent=15 // pred_check
          %p142 = pneg %p58
        $region22: #{transformer_sag_pool.3} parent=15 // pred_check_branch
          %144 = sbr.rel (%p142) target = $region24
        $region23: #{transformer_sag_pool.3} parent=15 // pred_region
          %p145 = scmp.lt.s32.totalorder %s12, 1
          %s146 = scalar_select %p145, %s12, 1
          %s147 = smul.addr %s146, 8
          %s148 = scalar_lea.vmem %s1, %s147
        $region24: #{transformer_sag_pool.3} parent=15 // pred_fallthru
          _
        // Predicated region
        $region25: #{transformer_sag_pool.3} parent=15 // pred_check
          %p149 = pneg %p84
        $region26: #{transformer_sag_pool.3} parent=15 // pred_check_branch
          %151 = sbr.rel (%p149) target = $region28
        $region27: #{transformer_sag_pool.3} parent=15 // pred_region
          %p152 = scmp.lt.s32.totalorder %s12, 1
          %s153 = scalar_select %p152, %s12, 1
          %s154 = scalar_lea.vmem %s2, %s153
        $region28: #{transformer_sag_pool.3} parent=15 // pred_fallthru
          _
      $region16: #{transformer_sag_pool.3} parent=5 // pred_fallthru
        _
      %p155 = scmp.le.s32.totalorder 1, %s12
      %p156 = scmp.lt.s32.totalorder %s12, 3
      %p157 = pnand %p155, %p156
      %p158 = pneg %p157
      // Predicated region
      $region29: #{transformer_sag_pool.3} parent=5 // pred_check
        _
      $region30: #{transformer_sag_pool.3} parent=5 // pred_check_branch
        %160 = sbr.rel (%p157) target = $region32
      $region31: #{transformer_sag_pool.3} parent=5 // pred_region
        %s161 = ssub.s32 %s12, 1
        %p162 = scmp.lt.s32.totalorder %s17, 1
        %s163 = scalar_select %p162, %s17, 1
        %s164 = smul.addr %s163, 4
        %s165 = scalar_lea.vmem %s0, %s164
        %p166 = pneg %p38
        %p167 = pneg %p35
        %p168 = scmp.lt.s32.totalorder %s17, 1
        %s169 = scalar_select %p168, %s17, 1
        %s170 = smul.addr %s169, 8
        %s171 = scalar_lea.vmem %s1, %s170
        %p172 = pneg %p64
        %p173 = pneg %p61
        %p174 = scmp.lt.s32.totalorder %s17, 1
        %s175 = scalar_select %p174, %s17, 1
        %s176 = scalar_lea.vmem %s2, %s175
        %p177 = pneg %p90
        %p178 = pneg %p87
        %p179 = pneg %p116
        %p180 = pneg %p113
        %s181 = sand.u32 %s103, 1
        %s182 = scalar_lea.sflag [#allocation3], %s181
        %s183 = sand.u32 %s103, 1
        %s184 = smul.addr %s183, 4
        %s185 = scalar_lea.vmem [#allocation2], %s184
        %p186 = scmp.lt.s32.totalorder %s17, 1
        %s187 = scalar_select %p186, %s17, 1
        %s188 = smul.addr %s187, 4
        %s189 = scalar_lea.vmem %s0, %s188
        %p190 = scmp.lt.s32.totalorder %s17, 1
        %s191 = scalar_select %p190, %s17, 1
        %s192 = smul.addr %s191, 8
        %s193 = scalar_lea.vmem %s1, %s192
        %p194 = scmp.lt.s32.totalorder %s17, 1
        %s195 = scalar_select %p194, %s17, 1
        %s196 = scalar_lea.vmem %s2, %s195
        %v197 = vld [vmem:[%s189] sm:$0xf]
        %v198 = vld [vmem:[%s193] sm:$0xff]
        %v199 = vld [vmem:[%s196] sm:$0x1]
        %v200 = vlaneseq
        %v201 = vand.u32 %v200, 127
        %202 = vset.pattern.permute.xlu0 0
        %203 = vperm.xlu0 %202, %v197
        %v204 = vpop.permute.xlu0 %203
        %vm205 = vcmp.eq.s32.totalorder %v201, %v204
        %v206 = vtanh.pop %v199
        %v208 = vlaneseq
        %v209 = vshrl.u32 %v208, 7
        %v210 = vsub.s32 0, %v209
        %v211 = vrot.slane %v206, %v210
        %v213 = vsel %vm205, %v211, 0.0
        %vm214 = vcmask 64512
        %v216 = vsel %vm214, %v213, 0
        %218 = vmatprep.subr.mxu0 0.0
        %219 = vmatpush1.msra.mxu0 %v198
        %220 = vmatprep.subr.mxu0 0.0
        %221 = vmatpush1.msra.mxu0 0.0
        %222 = vmatprep.subr.mxu0 0.0
        %223 = vmatpush1.msra.mxu0 0.0
        %224 = vmatprep.subr.mxu0 0.0
        %225 = vmatpush1.msra.mxu0 0.0
        %226 = vmatprep.subr.mxu0 0.0
        %227 = vmatpush1.msra.mxu0 0.0
        %228 = vmatprep.subr.mxu0 0.0
        %229 = vmatpush1.msra.mxu0 0.0
        %230 = vmatprep.subr.mxu0 0.0
        %231 = vmatpush1.msra.mxu0 0.0
        %232 = vmatprep.subr.mxu0 0.0
        %233 = vmatpush1.msra.mxu0 0.0
        %234 = vmatprep.subr.mxu0 0.0
        %235 = vmatpush1.msra.mxu0 0.0
        %236 = vmatprep.subr.mxu0 0.0
        %237 = vmatpush1.msra.mxu0 0.0
        %238 = vmatprep.subr.mxu0 0.0
        %239 = vmatpush1.msra.mxu0 0.0
        %240 = vmatprep.subr.mxu0 0.0
        %241 = vmatpush1.msra.mxu0 0.0
        %242 = vmatprep.subr.mxu0 0.0
        %243 = vmatpush1.msra.mxu0 0.0
        %244 = vmatprep.subr.mxu0 0.0
        %245 = vmatpush1.msra.mxu0 0.0
        %246 = vmatprep.subr.mxu0 0.0
        %247 = vmatpush1.msra.mxu0 0.0
        %248 = vmatprep.subr.mxu0 0.0
        %249 = vmatpush1.msra.mxu0 0.0
        %250 = vmatprep.subr.mxu0 0.0
        %251 = vmatpush1.msra.mxu0 0.0
        %252 = vmatprep.subr.mxu0 0.0
        %253 = vmatpush1.msra.mxu0 0.0
        %254 = vmatprep.subr.mxu0 0.0
        %255 = vmatpush1.msra.mxu0 0.0
        %256 = vmatprep.subr.mxu0 0.0
        %257 = vmatpush1.msra.mxu0 0.0
        %258 = vmatprep.subr.mxu0 0.0
        %259 = vmatpush1.msra.mxu0 0.0
        %260 = vmatprep.subr.mxu0 0.0
        %261 = vmatpush1.msra.mxu0 0.0
        %262 = vmatprep.subr.mxu0 0.0
        %263 = vmatpush1.msra.mxu0 0.0
        %264 = vmatprep.subr.mxu0 0.0
        %265 = vmatpush1.msra.mxu0 0.0
        %266 = vmatprep.subr.mxu0 0.0
        %267 = vmatpush1.msra.mxu0 0.0
        %268 = vmatprep.subr.mxu0 0.0
        %269 = vmatpush1.msra.mxu0 0.0
        %270 = vmatprep.subr.mxu0 0.0
        %271 = vmatpush1.msra.mxu0 0.0
        %272 = vmatprep.subr.mxu0 0.0
        %273 = vmatpush1.msra.mxu0 0.0
        %274 = vmatprep.subr.mxu0 0.0
        %275 = vmatpush1.msra.mxu0 0.0
        %276 = vmatprep.subr.mxu0 0.0
        %277 = vmatpush1.msra.mxu0 0.0
        %278 = vmatprep.subr.mxu0 0.0
        %279 = vmatpush1.msra.mxu0 0.0
        %280 = vmatprep.subr.mxu0 0.0
        %281 = vmatpush1.msra.mxu0 0.0
        %282 = vmatprep.mubr.f32.mxu0 0.0
        %283 = vmatmul.mubr.f32.gmra.mrb[0].mxu0 %v216
        %v284 = vpop.f32.mrb[0].mxu0
        %v285 = vadd.f32 0.0, %v284
        %v286 = vpop.f32.mrb[0].mxu0
        %287 = vdwg.mxu0
        %vm288 = vcmask 257024
        %289 = vst.msk [vmem:[%s185] sm:$0xf] %vm288, %v285
        %s290 = sand.u32 %s103, 1
        %s291 = scalar_lea.sflag [#allocation3], %s290
        %s292 = sand.u32 %s103, 1
        %s293 = smul.addr %s292, 4
        %s294 = scalar_lea.vmem [#allocation2], %s293
        // Predicated region
        $region33: #{transformer_sag_pool.3} parent=31 // pred_check
          %p295 = pneg %p113
        $region34: #{transformer_sag_pool.3} parent=31 // pred_check_branch
          %297 = sbr.rel (%p295) target = $region36
        $region35: #{transformer_sag_pool.3} parent=31 // pred_region
          %s299 = ssub.s32 64, 64
          %300 = vsyncadd %s291, %s299
          %s301 = smul.addr %s17, 64
          %s302 = scalar_lea.hbm %s3, %s301
          %s304 = sshll.u32 %s294, 4
          %s305 = int_to_ptr.vmem [resolvable:$true] %s304
          %307 = dma.vmem_to_hbm [thread:$0]  %s305, 64, %s302, %s291
        $region36: #{transformer_sag_pool.3} parent=31 // pred_fallthru
          _
      $region32: #{transformer_sag_pool.3} parent=5 // pred_fallthru
        _
      %p308 = scmp.le.s32.totalorder 2, %s12
      // Predicated region
      $region37: #{transformer_sag_pool.3} parent=5 // pred_check
        %p309 = pneg %p308
      $region38: #{transformer_sag_pool.3} parent=5 // pred_check_branch
        %311 = sbr.rel (%p309) target = $region40
      $region39: #{transformer_sag_pool.3} parent=5 // pred_region
        %s312 = ssub.s32 %s12, 2
        // Predicated region
        $region41: #{transformer_sag_pool.3} parent=39 // pred_check
          %p313 = pneg %p119
        $region42: #{transformer_sag_pool.3} parent=39 // pred_check_branch
          %315 = sbr.rel (%p313) target = $region44
        $region43: #{transformer_sag_pool.3} parent=39 // pred_region
          %s316 = sand.u32 %s104, 1
          %s317 = scalar_lea.sflag [#allocation3], %s316
          %s318 = sand.u32 %s104, 1
          %s319 = smul.addr %s318, 4
          %s320 = scalar_lea.vmem [#allocation2], %s319
          %321 = dma.done %s317, 64
        $region44: #{transformer_sag_pool.3} parent=39 // pred_fallthru
          _
      $region40: #{transformer_sag_pool.3} parent=5 // pred_fallthru
        _
    $region6: #{transformer_sag_pool.3} parent=1 // loop_footer
      %s16 = sadd.s32 1, %s12
    $region7: #{transformer_sag_pool.3} parent=1 // loop_footer_branch
      %11 = sbr.rel target = $region3
    $region8: #{transformer_sag_pool.3} parent=1 // loop_exit
      _
    %322 = vsyncpa [#allocation3], 1
    %s323 = scalar_lea.sflag [#allocation3], 1
    %324 = vsyncpa %s323, 1

// kernel: transformer_sag_pool.2
$region0: #{transformer_sag_pool.2}
  #allocation0 [shape = 'u32[]', space=smem, size = 0x4, offset = 0x4, fixed_abs, tag = 'smem constant byte address 0x4 - core index']
  #allocation1 [shape = 'u32[144,128]{1,0:T(1,128)}', space=vmem, size = 0x12000, scoped, tag = 'internal scratch']
  %s0 = inlined_call_operand.vmem [shape: f32[2,8,32], index: 0, kind: input, shape index: {}]
  %s1 = inlined_call_operand.hbm [shape: f32[2,8,8], index: 1, kind: input, shape index: {}]
  %s2 = inlined_call_operand.hbm [shape: f32[16,32], index: 2, kind: input, shape index: {}]
  %s3 = inlined_call_operand.vmem [shape: f32[2,32,32], index: 3, kind: input, shape index: {}]
  %s4 = inlined_call_operand.vmem [shape: f32[2,32,64], index: 4, kind: input, shape index: {}]
  %s5 = inlined_call_operand.hbm [shape: f32[2,32,32], index: 5, kind: input, shape index: {}]
  %s6 = inlined_call_operand.vmem [shape: f32[2,32,16], index: 6, kind: input, shape index: {}]
  %s7 = inlined_call_operand.hbm [shape: f32[2,16,32], index: 7, kind: input, shape index: {}]
  %s8 = inlined_call_operand.vmem [shape: f32[2,6,32], index: 8, kind: input, shape index: {}]
  %s9 = inlined_call_operand.vmem [shape: f32[2,32], index: 9, kind: input, shape index: {}]
  %s10 = inlined_call_operand.vmem [shape: f32[2,8,32], index: 10, kind: output, shape index: {0}]
  %s11 = inlined_call_operand.vmem [shape: f32[2,1,8], index: 11, kind: output, shape index: {1}]
  %12 = xla_tuple %s10, %s11
  %s13 = sld [smem:[#allocation0]]
  $region74: #{transformer_sag_pool.2} parent=0
    _
  %s15 = ssub.s32 1, %s13
  %s16 = scalar_select 0, %s15, %s13
  $region1: #{transformer_sag_pool.2} parent=0
    #allocation2 [shape = 'u8[8192]{0}', space=vmem, size = 0x2000, scoped, tag = 'input window, operand 1, single buffered']
    #allocation3 [shape = 's32[1]{0}', space=sflag, size = 0x4, scoped, tag = 'scoped memory for transformer_sag_pool.2']
    #allocation4 [shape = 'u8[8192]{0}', space=vmem, size = 0x2000, scoped, tag = 'input window, operand 2, single buffered']
    #allocation5 [shape = 's32[1]{0}', space=sflag, size = 0x4, scoped, tag = 'scoped memory for transformer_sag_pool.2']
    #allocation6 [shape = 'u8[32768]{0}', space=vmem, size = 0x8000, scoped, tag = 'input window, operand 5, single buffered']
    #allocation7 [shape = 'u8[16384]{0}', space=vmem, size = 0x4000, scoped, tag = 'input window, operand 7, single buffered']
    #allocation8 [shape = 's32[1]{0}', space=sflag, size = 0x4, scoped, tag = 'scoped memory for transformer_sag_pool.2']
    %17 = vsyncpa [#allocation3], 0
    %18 = vsyncpa [#allocation5], 0
    %19 = vsyncpa [#allocation8], 0
    // Predicated region
    $region2: #{transformer_sag_pool.2} parent=1 // pred_check
      _
    $region3: #{transformer_sag_pool.2} parent=1 // pred_check_branch
      %21 = sbr.rel (0) target = $region5
    $region4: #{transformer_sag_pool.2} parent=1 // pred_region
      _
    $region5: #{transformer_sag_pool.2} parent=1 // pred_fallthru
      _
    // Predicated region
    $region6: #{transformer_sag_pool.2} parent=1 // pred_check
      _
    $region7: #{transformer_sag_pool.2} parent=1 // pred_check_branch
      %23 = sbr.rel (0) target = $region9
    $region8: #{transformer_sag_pool.2} parent=1 // pred_region
      %s25 = ssub.s32 256, 256
      %26 = vsyncadd [#allocation3], %s25
      %s27 = sshll.u32 [#allocation2], 4
      %s28 = int_to_ptr.vmem [resolvable:$true] %s27
      %33 = dma.hbm_to_vmem [thread:$0]  %s1, 256, %s28, [#allocation3], 128, 128, 8
    $region9: #{transformer_sag_pool.2} parent=1 // pred_fallthru
      _
    // Predicated region
    $region10: #{transformer_sag_pool.2} parent=1 // pred_check
      _
    $region11: #{transformer_sag_pool.2} parent=1 // pred_check_branch
      %35 = sbr.rel (0) target = $region13
    $region12: #{transformer_sag_pool.2} parent=1 // pred_region
      %s37 = ssub.s32 256, 256
      %38 = vsyncadd [#allocation5], %s37
      %s39 = sshll.u32 [#allocation4], 4
      %s40 = int_to_ptr.vmem [resolvable:$true] %s39
      %45 = dma.hbm_to_vmem [thread:$0]  %s2, 256, %s40, [#allocation5], 128, 128, 8
    $region13: #{transformer_sag_pool.2} parent=1 // pred_fallthru
      _
    // Predicated region
    $region14: #{transformer_sag_pool.2} parent=1 // pred_check
      _
    $region15: #{transformer_sag_pool.2} parent=1 // pred_check_branch
      %47 = sbr.rel (0) target = $region17
    $region16: #{transformer_sag_pool.2} parent=1 // pred_region
      _
    $region17: #{transformer_sag_pool.2} parent=1 // pred_fallthru
      _
    // Predicated region
    $region18: #{transformer_sag_pool.2} parent=1 // pred_check
      _
    $region19: #{transformer_sag_pool.2} parent=1 // pred_check_branch
      %49 = sbr.rel (0) target = $region21
    $region20: #{transformer_sag_pool.2} parent=1 // pred_region
      _
    $region21: #{transformer_sag_pool.2} parent=1 // pred_fallthru
      _
    // Predicated region
    $region22: #{transformer_sag_pool.2} parent=1 // pred_check
      _
    $region23: #{transformer_sag_pool.2} parent=1 // pred_check_branch
      %51 = sbr.rel (0) target = $region25
    $region24: #{transformer_sag_pool.2} parent=1 // pred_region
      %s53 = ssub.s32 1024, 1024
      %54 = vsyncadd [#allocation5], %s53
      %s55 = sshll.u32 [#allocation6], 4
      %s56 = int_to_ptr.vmem [resolvable:$true] %s55
      %61 = dma.hbm_to_vmem [thread:$0]  %s5, 1024, %s56, [#allocation5], 128, 128, 8
    $region25: #{transformer_sag_pool.2} parent=1 // pred_fallthru
      _
    // Predicated region
    $region26: #{transformer_sag_pool.2} parent=1 // pred_check
      _
    $region27: #{transformer_sag_pool.2} parent=1 // pred_check_branch
      %63 = sbr.rel (0) target = $region29
    $region28: #{transformer_sag_pool.2} parent=1 // pred_region
      _
    $region29: #{transformer_sag_pool.2} parent=1 // pred_fallthru
      _
    // Predicated region
    $region30: #{transformer_sag_pool.2} parent=1 // pred_check
      _
    $region31: #{transformer_sag_pool.2} parent=1 // pred_check_branch
      %65 = sbr.rel (0) target = $region33
    $region32: #{transformer_sag_pool.2} parent=1 // pred_region
      %s67 = ssub.s32 512, 512
      %68 = vsyncadd [#allocation8], %s67
      %s69 = sshll.u32 [#allocation7], 4
      %s70 = int_to_ptr.vmem [resolvable:$true] %s69
      %75 = dma.hbm_to_vmem [thread:$0]  %s7, 512, %s70, [#allocation8], 128, 128, 8
    $region33: #{transformer_sag_pool.2} parent=1 // pred_fallthru
      _
    // Predicated region
    $region34: #{transformer_sag_pool.2} parent=1 // pred_check
      _
    $region35: #{transformer_sag_pool.2} parent=1 // pred_check_branch
      %77 = sbr.rel (0) target = $region37
    $region36: #{transformer_sag_pool.2} parent=1 // pred_region
      _
    $region37: #{transformer_sag_pool.2} parent=1 // pred_fallthru
      _
    // Predicated region
    $region38: #{transformer_sag_pool.2} parent=1 // pred_check
      _
    $region39: #{transformer_sag_pool.2} parent=1 // pred_check_branch
      %79 = sbr.rel (0) target = $region41
    $region40: #{transformer_sag_pool.2} parent=1 // pred_region
      _
    $region41: #{transformer_sag_pool.2} parent=1 // pred_fallthru
      _
    // Predicated region
    $region42: #{transformer_sag_pool.2} parent=1 // pred_check
      _
    $region43: #{transformer_sag_pool.2} parent=1 // pred_check_branch
      %81 = sbr.rel (0) target = $region45
    $region44: #{transformer_sag_pool.2} parent=1 // pred_region
      %82 = dma.done [#allocation3], 256
    $region45: #{transformer_sag_pool.2} parent=1 // pred_fallthru
      _
    // Predicated region
    $region46: #{transformer_sag_pool.2} parent=1 // pred_check
      _
    $region47: #{transformer_sag_pool.2} parent=1 // pred_check_branch
      %84 = sbr.rel (0) target = $region49
    $region48: #{transformer_sag_pool.2} parent=1 // pred_region
      %85 = dma.done [#allocation5], 256
    $region49: #{transformer_sag_pool.2} parent=1 // pred_fallthru
      _
    // Predicated region
    $region50: #{transformer_sag_pool.2} parent=1 // pred_check
      _
    $region51: #{transformer_sag_pool.2} parent=1 // pred_check_branch
      %87 = sbr.rel (0) target = $region53
    $region52: #{transformer_sag_pool.2} parent=1 // pred_region
      %88 = dma.done [#allocation5], 1024
    $region53: #{transformer_sag_pool.2} parent=1 // pred_fallthru
      _
    // Predicated region
    $region54: #{transformer_sag_pool.2} parent=1 // pred_check
      _
    $region55: #{transformer_sag_pool.2} parent=1 // pred_check_branch
      %90 = sbr.rel (0) target = $region57
    $region56: #{transformer_sag_pool.2} parent=1 // pred_region
      %91 = dma.done [#allocation8], 512
    $region57: #{transformer_sag_pool.2} parent=1 // pred_fallthru
      _
    %v92 = vld [vmem:[%s0] sm:$0xff]
    %v93 = vld [vmem:[%s0 + $0x8] sm:$0xff]
    %v94 = vld [vmem:[#allocation4] sm:$0xff]
    %v95 = vld [vmem:[#allocation4 + $0x8] sm:$0xff]
    %v96 = vld [vmem:[%s3] sm:$0xff]
    %v97 = vld [vmem:[%s3 + $0x8] sm:$0xff]
    %v98 = vld [vmem:[%s3 + $0x10] sm:$0xff]
    %v99 = vld [vmem:[%s3 + $0x18] sm:$0xff]
    %v100 = vld [vmem:[%s4] sm:$0xff]
    %v101 = vld [vmem:[%s4 + $0x8] sm:$0xff]
    %v102 = vld [vmem:[%s4 + $0x10] sm:$0xff]
    %v103 = vld [vmem:[%s4 + $0x18] sm:$0xff]
    %v104 = vld [vmem:[#allocation6] sm:$0xff]
    %v105 = vld [vmem:[#allocation6 + $0x8] sm:$0xff]
    %v106 = vld [vmem:[#allocation6 + $0x10] sm:$0xff]
    %v107 = vld [vmem:[#allocation6 + $0x18] sm:$0xff]
    %v108 = vld [vmem:[%s6] sm:$0xff]
    %v109 = vld [vmem:[%s6 + $0x8] sm:$0xff]
    %v110 = vld [vmem:[%s6 + $0x10] sm:$0xff]
    %v111 = vld [vmem:[%s6 + $0x18] sm:$0xff]
    %v112 = vld [vmem:[#allocation7] sm:$0xff]
    %v113 = vld [vmem:[#allocation7 + $0x8] sm:$0xff]
    %v114 = vld [vmem:[%s8] sm:$0x3f]
    %vm115 = vcmask 261120
    %v117 = vsel %vm115, %v94, 0
    %v120 = vsel %vm115, %v95, 0
    %122 = vmatprep.subr.mxu0 0.0
    %123 = vmatpush1.msra.mxu0 %v96
    %124 = vmatprep.subr.mxu0 0.0
    %125 = vmatpush1.msra.mxu0 %v97
    %126 = vmatprep.subr.mxu0 0.0
    %127 = vmatpush1.msra.mxu0 %v98
    %128 = vmatprep.subr.mxu0 0.0
    %129 = vmatpush1.msra.mxu0 %v99
    %130 = vmatprep.subr.mxu0 0.0
    %131 = vmatpush1.msra.mxu0 0.0
    %132 = vmatprep.subr.mxu0 0.0
    %133 = vmatpush1.msra.mxu0 0.0
    %134 = vmatprep.subr.mxu0 0.0
    %135 = vmatpush1.msra.mxu0 0.0
    %136 = vmatprep.subr.mxu0 0.0
    %137 = vmatpush1.msra.mxu0 0.0
    %138 = vmatprep.subr.mxu0 0.0
    %139 = vmatpush1.msra.mxu0 0.0
    %140 = vmatprep.subr.mxu0 0.0
    %141 = vmatpush1.msra.mxu0 0.0
    %142 = vmatprep.subr.mxu0 0.0
    %143 = vmatpush1.msra.mxu0 0.0
    %144 = vmatprep.subr.mxu0 0.0
    %145 = vmatpush1.msra.mxu0 0.0
    %146 = vmatprep.subr.mxu0 0.0
    %147 = vmatpush1.msra.mxu0 0.0
    %148 = vmatprep.subr.mxu0 0.0
    %149 = vmatpush1.msra.mxu0 0.0
    %150 = vmatprep.subr.mxu0 0.0
    %151 = vmatpush1.msra.mxu0 0.0
    %152 = vmatprep.subr.mxu0 0.0
    %153 = vmatpush1.msra.mxu0 0.0
    %154 = vmatprep.subr.mxu0 0.0
    %155 = vmatpush1.msra.mxu0 0.0
    %156 = vmatprep.subr.mxu0 0.0
    %157 = vmatpush1.msra.mxu0 0.0
    %158 = vmatprep.subr.mxu0 0.0
    %159 = vmatpush1.msra.mxu0 0.0
    %160 = vmatprep.subr.mxu0 0.0
    %161 = vmatpush1.msra.mxu0 0.0
    %162 = vmatprep.subr.mxu0 0.0
    %163 = vmatpush1.msra.mxu0 0.0
    %164 = vmatprep.subr.mxu0 0.0
    %165 = vmatpush1.msra.mxu0 0.0
    %166 = vmatprep.subr.mxu0 0.0
    %167 = vmatpush1.msra.mxu0 0.0
    %168 = vmatprep.subr.mxu0 0.0
    %169 = vmatpush1.msra.mxu0 0.0
    %170 = vmatprep.subr.mxu0 0.0
    %171 = vmatpush1.msra.mxu0 0.0
    %172 = vmatprep.subr.mxu0 0.0
    %173 = vmatpush1.msra.mxu0 0.0
    %174 = vmatprep.subr.mxu0 0.0
    %175 = vmatpush1.msra.mxu0 0.0
    %176 = vmatprep.subr.mxu0 0.0
    %177 = vmatpush1.msra.mxu0 0.0
    %178 = vmatprep.subr.mxu0 0.0
    %179 = vmatpush1.msra.mxu0 0.0
    %180 = vmatprep.subr.mxu0 0.0
    %181 = vmatpush1.msra.mxu0 0.0
    %182 = vmatprep.subr.mxu0 0.0
    %183 = vmatpush1.msra.mxu0 0.0
    %184 = vmatprep.subr.mxu0 0.0
    %185 = vmatpush1.msra.mxu0 0.0
    %186 = vmatprep.mubr.f32.mxu0 0.0
    %187 = vmatmul.mubr.f32.gmra.mrb[0].mxu0 %v117
    %v188 = vpop.f32.mrb[0].mxu0
    %v189 = vadd.f32 0.0, %v188
    %v190 = vpop.f32.mrb[0].mxu0
    %191 = vmatprep.mubr.f32.mxu0 0.0
    %192 = vmatmul.mubr.f32.gmra.mrb[0].mxu0 %v120
    %v193 = vpop.f32.mrb[0].mxu0
    %v194 = vadd.f32 0.0, %v193
    %v195 = vpop.f32.mrb[0].mxu0
    %196 = vdwg.mxu0
    %v198 = vsel %vm115, %v92, 0
    %v201 = vsel %vm115, %v93, 0
    %203 = vmatprep.subr.mxu0 0.0
    %204 = vmatpush1.msra.mxu0 %v100
    %205 = vmatprep.subr.mxu0 0.0
    %206 = vmatpush1.msra.mxu0 %v101
    %207 = vmatprep.subr.mxu0 0.0
    %208 = vmatpush1.msra.mxu0 %v102
    %209 = vmatprep.subr.mxu0 0.0
    %210 = vmatpush1.msra.mxu0 %v103
    %211 = vmatprep.subr.mxu0 0.0
    %212 = vmatpush1.msra.mxu0 0.0
    %213 = vmatprep.subr.mxu0 0.0
    %214 = vmatpush1.msra.mxu0 0.0
    %215 = vmatprep.subr.mxu0 0.0
    %216 = vmatpush1.msra.mxu0 0.0
    %217 = vmatprep.subr.mxu0 0.0
    %218 = vmatpush1.msra.mxu0 0.0
    %219 = vmatprep.subr.mxu0 0.0
    %220 = vmatpush1.msra.mxu0 0.0
    %221 = vmatprep.subr.mxu0 0.0
    %222 = vmatpush1.msra.mxu0 0.0
    %223 = vmatprep.subr.mxu0 0.0
    %224 = vmatpush1.msra.mxu0 0.0
    %225 = vmatprep.subr.mxu0 0.0
    %226 = vmatpush1.msra.mxu0 0.0
    %227 = vmatprep.subr.mxu0 0.0
    %228 = vmatpush1.msra.mxu0 0.0
    %229 = vmatprep.subr.mxu0 0.0
    %230 = vmatpush1.msra.mxu0 0.0
    %231 = vmatprep.subr.mxu0 0.0
    %232 = vmatpush1.msra.mxu0 0.0
    %233 = vmatprep.subr.mxu0 0.0
    %234 = vmatpush1.msra.mxu0 0.0
    %235 = vmatprep.subr.mxu0 0.0
    %236 = vmatpush1.msra.mxu0 0.0
    %237 = vmatprep.subr.mxu0 0.0
    %238 = vmatpush1.msra.mxu0 0.0
    %239 = vmatprep.subr.mxu0 0.0
    %240 = vmatpush1.msra.mxu0 0.0
    %241 = vmatprep.subr.mxu0 0.0
    %242 = vmatpush1.msra.mxu0 0.0
    %243 = vmatprep.subr.mxu0 0.0
    %244 = vmatpush1.msra.mxu0 0.0
    %245 = vmatprep.subr.mxu0 0.0
    %246 = vmatpush1.msra.mxu0 0.0
    %247 = vmatprep.subr.mxu0 0.0
    %248 = vmatpush1.msra.mxu0 0.0
    %249 = vmatprep.subr.mxu0 0.0
    %250 = vmatpush1.msra.mxu0 0.0
    %251 = vmatprep.subr.mxu0 0.0
    %252 = vmatpush1.msra.mxu0 0.0
    %253 = vmatprep.subr.mxu0 0.0
    %254 = vmatpush1.msra.mxu0 0.0
    %255 = vmatprep.subr.mxu0 0.0
    %256 = vmatpush1.msra.mxu0 0.0
    %257 = vmatprep.subr.mxu0 0.0
    %258 = vmatpush1.msra.mxu0 0.0
    %259 = vmatprep.subr.mxu0 0.0
    %260 = vmatpush1.msra.mxu0 0.0
    %261 = vmatprep.subr.mxu0 0.0
    %262 = vmatpush1.msra.mxu0 0.0
    %263 = vmatprep.subr.mxu0 0.0
    %264 = vmatpush1.msra.mxu0 0.0
    %265 = vmatprep.subr.mxu0 0.0
    %266 = vmatpush1.msra.mxu0 0.0
    %267 = vmatprep.mubr.f32.mxu0 0.0
    %268 = vmatmul.mubr.f32.gmra.mrb[0].mxu0 %v198
    %v269 = vpop.f32.mrb[0].mxu0
    %v270 = vadd.f32 0.0, %v269
    %v271 = vpop.f32.mrb[0].mxu0
    %272 = vmatprep.mubr.f32.mxu0 0.0
    %273 = vmatmul.mubr.f32.gmra.mrb[0].mxu0 %v201
    %v274 = vpop.f32.mrb[0].mxu0
    %v275 = vadd.f32 0.0, %v274
    %v276 = vpop.f32.mrb[0].mxu0
    %277 = vdwg.mxu0
    %vm278 = vcmask 130048
    %v280 = vsel %vm278, %v189, 0
    %v283 = vsel %vm278, %v194, 0
    %v286 = vsel %vm278, %v270, 0
    %288 = vmatprep.subr.mxu0 0.0
    %289 = vmatpush1.xpose.msra.mxu0 %v286
    %290 = vmatprep.subr.mxu0 0.0
    %291 = vmatpush1.xpose.msra.mxu0 0.0
    %292 = vmatprep.subr.mxu0 0.0
    %293 = vmatpush1.xpose.msra.mxu0 0.0
    %294 = vmatprep.subr.mxu0 0.0
    %295 = vmatpush1.xpose.msra.mxu0 0.0
    %296 = vmatprep.subr.mxu0 0.0
    %297 = vmatpush1.xpose.msra.mxu0 0.0
    %298 = vmatprep.subr.mxu0 0.0
    %299 = vmatpush1.xpose.msra.mxu0 0.0
    %300 = vmatprep.subr.mxu0 0.0
    %301 = vmatpush1.xpose.msra.mxu0 0.0
    %302 = vmatprep.subr.mxu0 0.0
    %303 = vmatpush1.xpose.msra.mxu0 0.0
    %304 = vmatprep.subr.mxu0 0.0
    %305 = vmatpush1.xpose.msra.mxu0 0.0
    %306 = vmatprep.subr.mxu0 0.0
    %307 = vmatpush1.xpose.msra.mxu0 0.0
    %308 = vmatprep.subr.mxu0 0.0
    %309 = vmatpush1.xpose.msra.mxu0 0.0
    %310 = vmatprep.subr.mxu0 0.0
    %311 = vmatpush1.xpose.msra.mxu0 0.0
    %312 = vmatprep.subr.mxu0 0.0
    %313 = vmatpush1.xpose.msra.mxu0 0.0
    %314 = vmatprep.subr.mxu0 0.0
    %315 = vmatpush1.xpose.msra.mxu0 0.0
    %316 = vmatprep.subr.mxu0 0.0
    %317 = vmatpush1.xpose.msra.mxu0 0.0
    %318 = vmatprep.subr.mxu0 0.0
    %319 = vmatpush1.xpose.msra.mxu0 0.0
    %320 = vmatprep.subr.mxu0 0.0
    %321 = vmatpush1.xpose.msra.mxu0 0.0
    %322 = vmatprep.subr.mxu0 0.0
    %323 = vmatpush1.xpose.msra.mxu0 0.0
    %324 = vmatprep.subr.mxu0 0.0
    %325 = vmatpush1.xpose.msra.mxu0 0.0
    %326 = vmatprep.subr.mxu0 0.0
    %327 = vmatpush1.xpose.msra.mxu0 0.0
    %328 = vmatprep.subr.mxu0 0.0
    %329 = vmatpush1.xpose.msra.mxu0 0.0
    %330 = vmatprep.subr.mxu0 0.0
    %331 = vmatpush1.xpose.msra.mxu0 0.0
    %332 = vmatprep.subr.mxu0 0.0
    %333 = vmatpush1.xpose.msra.mxu0 0.0
    %334 = vmatprep.subr.mxu0 0.0
    %335 = vmatpush1.xpose.msra.mxu0 0.0
    %336 = vmatprep.subr.mxu0 0.0
    %337 = vmatpush1.xpose.msra.mxu0 0.0
    %338 = vmatprep.subr.mxu0 0.0
    %339 = vmatpush1.xpose.msra.mxu0 0.0
    %340 = vmatprep.subr.mxu0 0.0
    %341 = vmatpush1.xpose.msra.mxu0 0.0
    %342 = vmatprep.subr.mxu0 0.0
    %343 = vmatpush1.xpose.msra.mxu0 0.0
    %344 = vmatprep.subr.mxu0 0.0
    %345 = vmatpush1.xpose.msra.mxu0 0.0
    %346 = vmatprep.subr.mxu0 0.0
    %347 = vmatpush1.xpose.msra.mxu0 0.0
    %348 = vmatprep.subr.mxu0 0.0
    %349 = vmatpush1.xpose.msra.mxu0 0.0
    %350 = vmatprep.subr.mxu0 0.0
    %351 = vmatpush1.xpose.msra.mxu0 0.0
    %352 = vmatprep.mubr.f32.mxu0 0.0
    %353 = vmatmul.mubr.f32.gmra.mrb[0].mxu0 %v280
    %v354 = vpop.f32.mrb[0].mxu0
    %v355 = vadd.f32 0.0, %v354
    %v356 = vpop.f32.mrb[0].mxu0
    %357 = vmatprep.mubr.f32.mxu0 0.0
    %358 = vmatmul.mubr.f32.gmra.mrb[0].mxu0 %v283
    %v359 = vpop.f32.mrb[0].mxu0
    %v360 = vadd.f32 0.0, %v359
    %v361 = vpop.f32.mrb[0].mxu0
    %362 = vdwg.mxu0
    %v364 = vsel %vm278, %v275, 0
    %366 = vmatprep.subr.mxu0 0.0
    %367 = vmatpush1.xpose.msra.mxu0 %v364
    %368 = vmatprep.subr.mxu0 0.0
    %369 = vmatpush1.xpose.msra.mxu0 0.0
    %370 = vmatprep.subr.mxu0 0.0
    %371 = vmatpush1.xpose.msra.mxu0 0.0
    %372 = vmatprep.subr.mxu0 0.0
    %373 = vmatpush1.xpose.msra.mxu0 0.0
    %374 = vmatprep.subr.mxu0 0.0
    %375 = vmatpush1.xpose.msra.mxu0 0.0
    %376 = vmatprep.subr.mxu0 0.0
    %377 = vmatpush1.xpose.msra.mxu0 0.0
    %378 = vmatprep.subr.mxu0 0.0
    %379 = vmatpush1.xpose.msra.mxu0 0.0
    %380 = vmatprep.subr.mxu0 0.0
    %381 = vmatpush1.xpose.msra.mxu0 0.0
    %382 = vmatprep.subr.mxu0 0.0
    %383 = vmatpush1.xpose.msra.mxu0 0.0
    %384 = vmatprep.subr.mxu0 0.0
    %385 = vmatpush1.xpose.msra.mxu0 0.0
    %386 = vmatprep.subr.mxu0 0.0
    %387 = vmatpush1.xpose.msra.mxu0 0.0
    %388 = vmatprep.subr.mxu0 0.0
    %389 = vmatpush1.xpose.msra.mxu0 0.0
    %390 = vmatprep.subr.mxu0 0.0
    %391 = vmatpush1.xpose.msra.mxu0 0.0
    %392 = vmatprep.subr.mxu0 0.0
    %393 = vmatpush1.xpose.msra.mxu0 0.0
    %394 = vmatprep.subr.mxu0 0.0
    %395 = vmatpush1.xpose.msra.mxu0 0.0
    %396 = vmatprep.subr.mxu0 0.0
    %397 = vmatpush1.xpose.msra.mxu0 0.0
    %398 = vmatprep.subr.mxu0 0.0
    %399 = vmatpush1.xpose.msra.mxu0 0.0
    %400 = vmatprep.subr.mxu0 0.0
    %401 = vmatpush1.xpose.msra.mxu0 0.0
    %402 = vmatprep.subr.mxu0 0.0
    %403 = vmatpush1.xpose.msra.mxu0 0.0
    %404 = vmatprep.subr.mxu0 0.0
    %405 = vmatpush1.xpose.msra.mxu0 0.0
    %406 = vmatprep.subr.mxu0 0.0
    %407 = vmatpush1.xpose.msra.mxu0 0.0
    %408 = vmatprep.subr.mxu0 0.0
    %409 = vmatpush1.xpose.msra.mxu0 0.0
    %410 = vmatprep.subr.mxu0 0.0
    %411 = vmatpush1.xpose.msra.mxu0 0.0
    %412 = vmatprep.subr.mxu0 0.0
    %413 = vmatpush1.xpose.msra.mxu0 0.0
    %414 = vmatprep.subr.mxu0 0.0
    %415 = vmatpush1.xpose.msra.mxu0 0.0
    %416 = vmatprep.subr.mxu0 0.0
    %417 = vmatpush1.xpose.msra.mxu0 0.0
    %418 = vmatprep.subr.mxu0 0.0
    %419 = vmatpush1.xpose.msra.mxu0 0.0
    %420 = vmatprep.subr.mxu0 0.0
    %421 = vmatpush1.xpose.msra.mxu0 0.0
    %422 = vmatprep.subr.mxu0 0.0
    %423 = vmatpush1.xpose.msra.mxu0 0.0
    %424 = vmatprep.subr.mxu0 0.0
    %425 = vmatpush1.xpose.msra.mxu0 0.0
    %426 = vmatprep.subr.mxu0 0.0
    %427 = vmatpush1.xpose.msra.mxu0 0.0
    %428 = vmatprep.subr.mxu0 0.0
    %429 = vmatpush1.xpose.msra.mxu0 0.0
    %430 = vmatprep.mubr.f32.mxu0 0.0
    %431 = vmatmul.mubr.f32.gmra.mrb[0].mxu0 %v280
    %v432 = vpop.f32.mrb[0].mxu0
    %v433 = vadd.f32 0.0, %v432
    %v434 = vpop.f32.mrb[0].mxu0
    %435 = vmatprep.mubr.f32.mxu0 0.0
    %436 = vmatmul.mubr.f32.gmra.mrb[0].mxu0 %v283
    %v437 = vpop.f32.mrb[0].mxu0
    %v438 = vadd.f32 0.0, %v437
    %v439 = vpop.f32.mrb[0].mxu0
    %440 = vdwg.mxu0
    %v441 = vmul.f32 %v355, 0.25
    %v442 = vmul.f32 %v360, 0.25
    %v443 = vmul.f32 %v433, 0.25
    %v444 = vmul.f32 %v438, 0.25
    %vm445 = vcmask 64512
    %v446 = vsel %vm445, %v441, -inf
    %447 = vmax.xlane.f32.xlu0 %v446
    %v448 = vpop.xlane.xlu0 %447
    %v449 = vsel %vm445, %v442, -inf
    %450 = vmax.xlane.f32.xlu0 %v449
    %v451 = vpop.xlane.xlu0 %450
    %v452 = vsel %vm445, %v443, -inf
    %453 = vmax.xlane.f32.xlu0 %v452
    %v454 = vpop.xlane.xlu0 %453
    %v455 = vsel %vm445, %v444, -inf
    %456 = vmax.xlane.f32.xlu0 %v455
    %v457 = vpop.xlane.xlu0 %456
    %v458 = vsub.f32 %v441, %v448
    %v459 = vsub.f32 %v442, %v451
    %v460 = vsub.f32 %v443, %v454
    %v461 = vsub.f32 %v444, %v457
    %v462 = vmul.f32 %v458, 1.442695
    %v463 = vpow.pop %v462
    %v464 = vmul.f32 %v459, 1.442695
    %v465 = vpow.pop %v464
    %v466 = vmul.f32 %v460, 1.442695
    %v467 = vpow.pop %v466
    %v468 = vmul.f32 %v461, 1.442695
    %v469 = vpow.pop %v468
    %v470 = vsel %vm445, %v463, 0.0
    %471 = vadd.xlane.f32.xlu0 %v470
    %v472 = vpop.xlane.xlu0 %471
    %v473 = vsel %vm445, %v465, 0.0
    %474 = vadd.xlane.f32.xlu0 %v473
    %v475 = vpop.xlane.xlu0 %474
    %v476 = vsel %vm445, %v467, 0.0
    %477 = vadd.xlane.f32.xlu0 %v476
    %v478 = vpop.xlane.xlu0 %477
    %v479 = vsel %vm445, %v469, 0.0
    %480 = vadd.xlane.f32.xlu0 %v479
    %v481 = vpop.xlane.xlu0 %480
    %v482 = vrcp.pop %v472
    %v483 = vrcp.pop %v475
    %v484 = vrcp.pop %v478
    %v485 = vrcp.pop %v481
    %v486 = vmul.f32 %v463, %v482
    %v487 = vmul.f32 %v465, %v483
    %v488 = vmul.f32 %v467, %v484
    %v489 = vmul.f32 %v469, %v485
    %490 = vrot.lane.b32.xlu0 %v270, 96
    %v491 = vpop.permute.xlu0 %490
    %v494 = vsel %vm445, %v486, 0
    %v497 = vsel %vm445, %v487, 0
    %499 = vmatprep.subr.mxu0 0.0
    %500 = vmatpush1.msra.mxu0 %v491
    %501 = vmatprep.subr.mxu0 0.0
    %502 = vmatpush1.msra.mxu0 0.0
    %503 = vmatprep.subr.mxu0 0.0
    %504 = vmatpush1.msra.mxu0 0.0
    %505 = vmatprep.subr.mxu0 0.0
    %506 = vmatpush1.msra.mxu0 0.0
    %507 = vmatprep.subr.mxu0 0.0
    %508 = vmatpush1.msra.mxu0 0.0
    %509 = vmatprep.subr.mxu0 0.0
    %510 = vmatpush1.msra.mxu0 0.0
    %511 = vmatprep.subr.mxu0 0.0
    %512 = vmatpush1.msra.mxu0 0.0
    %513 = vmatprep.subr.mxu0 0.0
    %514 = vmatpush1.msra.mxu0 0.0
    %515 = vmatprep.subr.mxu0 0.0
    %516 = vmatpush1.msra.mxu0 0.0
    %517 = vmatprep.subr.mxu0 0.0
    %518 = vmatpush1.msra.mxu0 0.0
    %519 = vmatprep.subr.mxu0 0.0
    %520 = vmatpush1.msra.mxu0 0.0
    %521 = vmatprep.subr.mxu0 0.0
    %522 = vmatpush1.msra.mxu0 0.0
    %523 = vmatprep.subr.mxu0 0.0
    %524 = vmatpush1.msra.mxu0 0.0
    %525 = vmatprep.subr.mxu0 0.0
    %526 = vmatpush1.msra.mxu0 0.0
    %527 = vmatprep.subr.mxu0 0.0
    %528 = vmatpush1.msra.mxu0 0.0
    %529 = vmatprep.subr.mxu0 0.0
    %530 = vmatpush1.msra.mxu0 0.0
    %531 = vmatprep.subr.mxu0 0.0
    %532 = vmatpush1.msra.mxu0 0.0
    %533 = vmatprep.subr.mxu0 0.0
    %534 = vmatpush1.msra.mxu0 0.0
    %535 = vmatprep.subr.mxu0 0.0
    %536 = vmatpush1.msra.mxu0 0.0
    %537 = vmatprep.subr.mxu0 0.0
    %538 = vmatpush1.msra.mxu0 0.0
    %539 = vmatprep.subr.mxu0 0.0
    %540 = vmatpush1.msra.mxu0 0.0
    %541 = vmatprep.subr.mxu0 0.0
    %542 = vmatpush1.msra.mxu0 0.0
    %543 = vmatprep.subr.mxu0 0.0
    %544 = vmatpush1.msra.mxu0 0.0
    %545 = vmatprep.subr.mxu0 0.0
    %546 = vmatpush1.msra.mxu0 0.0
    %547 = vmatprep.subr.mxu0 0.0
    %548 = vmatpush1.msra.mxu0 0.0
    %549 = vmatprep.subr.mxu0 0.0
    %550 = vmatpush1.msra.mxu0 0.0
    %551 = vmatprep.subr.mxu0 0.0
    %552 = vmatpush1.msra.mxu0 0.0
    %553 = vmatprep.subr.mxu0 0.0
    %554 = vmatpush1.msra.mxu0 0.0
    %555 = vmatprep.subr.mxu0 0.0
    %556 = vmatpush1.msra.mxu0 0.0
    %557 = vmatprep.subr.mxu0 0.0
    %558 = vmatpush1.msra.mxu0 0.0
    %559 = vmatprep.subr.mxu0 0.0
    %560 = vmatpush1.msra.mxu0 0.0
    %561 = vmatprep.subr.mxu0 0.0
    %562 = vmatpush1.msra.mxu0 0.0
    %563 = vmatprep.mubr.f32.mxu0 0.0
    %564 = vmatmul.mubr.f32.gmra.mrb[0].mxu0 %v494
    %v565 = vpop.f32.mrb[0].mxu0
    %v566 = vadd.f32 0.0, %v565
    %v567 = vpop.f32.mrb[0].mxu0
    %568 = vmatprep.mubr.f32.mxu0 0.0
    %569 = vmatmul.mubr.f32.gmra.mrb[0].mxu0 %v497
    %v570 = vpop.f32.mrb[0].mxu0
    %v571 = vadd.f32 0.0, %v570
    %v572 = vpop.f32.mrb[0].mxu0
    %573 = vdwg.mxu0
    %574 = vrot.lane.b32.xlu0 %v275, 96
    %v575 = vpop.permute.xlu0 %574
    %v578 = vsel %vm445, %v488, 0
    %v581 = vsel %vm445, %v489, 0
    %583 = vmatprep.subr.mxu0 0.0
    %584 = vmatpush1.msra.mxu0 %v575
    %585 = vmatprep.subr.mxu0 0.0
    %586 = vmatpush1.msra.mxu0 0.0
    %587 = vmatprep.subr.mxu0 0.0
    %588 = vmatpush1.msra.mxu0 0.0
    %589 = vmatprep.subr.mxu0 0.0
    %590 = vmatpush1.msra.mxu0 0.0
    %591 = vmatprep.subr.mxu0 0.0
    %592 = vmatpush1.msra.mxu0 0.0
    %593 = vmatprep.subr.mxu0 0.0
    %594 = vmatpush1.msra.mxu0 0.0
    %595 = vmatprep.subr.mxu0 0.0
    %596 = vmatpush1.msra.mxu0 0.0
    %597 = vmatprep.subr.mxu0 0.0
    %598 = vmatpush1.msra.mxu0 0.0
    %599 = vmatprep.subr.mxu0 0.0
    %600 = vmatpush1.msra.mxu0 0.0
    %601 = vmatprep.subr.mxu0 0.0
    %602 = vmatpush1.msra.mxu0 0.0
    %603 = vmatprep.subr.mxu0 0.0
    %604 = vmatpush1.msra.mxu0 0.0
    %605 = vmatprep.subr.mxu0 0.0
    %606 = vmatpush1.msra.mxu0 0.0
    %607 = vmatprep.subr.mxu0 0.0
    %608 = vmatpush1.msra.mxu0 0.0
    %609 = vmatprep.subr.mxu0 0.0
    %610 = vmatpush1.msra.mxu0 0.0
    %611 = vmatprep.subr.mxu0 0.0
    %612 = vmatpush1.msra.mxu0 0.0
    %613 = vmatprep.subr.mxu0 0.0
    %614 = vmatpush1.msra.mxu0 0.0
    %615 = vmatprep.subr.mxu0 0.0
    %616 = vmatpush1.msra.mxu0 0.0
    %617 = vmatprep.subr.mxu0 0.0
    %618 = vmatpush1.msra.mxu0 0.0
    %619 = vmatprep.subr.mxu0 0.0
    %620 = vmatpush1.msra.mxu0 0.0
    %621 = vmatprep.subr.mxu0 0.0
    %622 = vmatpush1.msra.mxu0 0.0
    %623 = vmatprep.subr.mxu0 0.0
    %624 = vmatpush1.msra.mxu0 0.0
    %625 = vmatprep.subr.mxu0 0.0
    %626 = vmatpush1.msra.mxu0 0.0
    %627 = vmatprep.subr.mxu0 0.0
    %628 = vmatpush1.msra.mxu0 0.0
    %629 = vmatprep.subr.mxu0 0.0
    %630 = vmatpush1.msra.mxu0 0.0
    %631 = vmatprep.subr.mxu0 0.0
    %632 = vmatpush1.msra.mxu0 0.0
    %633 = vmatprep.subr.mxu0 0.0
    %634 = vmatpush1.msra.mxu0 0.0
    %635 = vmatprep.subr.mxu0 0.0
    %636 = vmatpush1.msra.mxu0 0.0
    %637 = vmatprep.subr.mxu0 0.0
    %638 = vmatpush1.msra.mxu0 0.0
    %639 = vmatprep.subr.mxu0 0.0
    %640 = vmatpush1.msra.mxu0 0.0
    %641 = vmatprep.subr.mxu0 0.0
    %642 = vmatpush1.msra.mxu0 0.0
    %643 = vmatprep.subr.mxu0 0.0
    %644 = vmatpush1.msra.mxu0 0.0
    %645 = vmatprep.subr.mxu0 0.0
    %646 = vmatpush1.msra.mxu0 0.0
    %647 = vmatprep.mubr.f32.mxu0 0.0
    %648 = vmatmul.mubr.f32.gmra.mrb[0].mxu0 %v578
    %v649 = vpop.f32.mrb[0].mxu0
    %v650 = vadd.f32 0.0, %v649
    %v651 = vpop.f32.mrb[0].mxu0
    %652 = vmatprep.mubr.f32.mxu0 0.0
    %653 = vmatmul.mubr.f32.gmra.mrb[0].mxu0 %v581
    %v654 = vpop.f32.mrb[0].mxu0
    %v655 = vadd.f32 0.0, %v654
    %v656 = vpop.f32.mrb[0].mxu0
    %657 = vdwg.mxu0
    %658 = vrot.lane.b32.xlu0 %v189, 112
    %v659 = vpop.permute.xlu0 %658
    %660 = vrot.lane.b32.xlu0 %v194, 112
    %v661 = vpop.permute.xlu0 %660
    %662 = vrot.lane.b32.xlu0 %v270, 112
    %v663 = vpop.permute.xlu0 %662
    %v664 = vsel %vm278, %v659, 0
    %v666 = vsel %vm278, %v661, 0
    %v668 = vsel %vm278, %v663, 0
    %670 = vmatprep.subr.mxu0 0.0
    %671 = vmatpush1.xpose.msra.mxu0 %v668
    %672 = vmatprep.subr.mxu0 0.0
    %673 = vmatpush1.xpose.msra.mxu0 0.0
    %674 = vmatprep.subr.mxu0 0.0
    %675 = vmatpush1.xpose.msra.mxu0 0.0
    %676 = vmatprep.subr.mxu0 0.0
    %677 = vmatpush1.xpose.msra.mxu0 0.0
    %678 = vmatprep.subr.mxu0 0.0
    %679 = vmatpush1.xpose.msra.mxu0 0.0
    %680 = vmatprep.subr.mxu0 0.0
    %681 = vmatpush1.xpose.msra.mxu0 0.0
    %682 = vmatprep.subr.mxu0 0.0
    %683 = vmatpush1.xpose.msra.mxu0 0.0
    %684 = vmatprep.subr.mxu0 0.0
    %685 = vmatpush1.xpose.msra.mxu0 0.0
    %686 = vmatprep.subr.mxu0 0.0
    %687 = vmatpush1.xpose.msra.mxu0 0.0
    %688 = vmatprep.subr.mxu0 0.0
    %689 = vmatpush1.xpose.msra.mxu0 0.0
    %690 = vmatprep.subr.mxu0 0.0
    %691 = vmatpush1.xpose.msra.mxu0 0.0
    %692 = vmatprep.subr.mxu0 0.0
    %693 = vmatpush1.xpose.msra.mxu0 0.0
    %694 = vmatprep.subr.mxu0 0.0
    %695 = vmatpush1.xpose.msra.mxu0 0.0
    %696 = vmatprep.subr.mxu0 0.0
    %697 = vmatpush1.xpose.msra.mxu0 0.0
    %698 = vmatprep.subr.mxu0 0.0
    %699 = vmatpush1.xpose.msra.mxu0 0.0
    %700 = vmatprep.subr.mxu0 0.0
    %701 = vmatpush1.xpose.msra.mxu0 0.0
    %702 = vmatprep.subr.mxu0 0.0
    %703 = vmatpush1.xpose.msra.mxu0 0.0
    %704 = vmatprep.subr.mxu0 0.0
    %705 = vmatpush1.xpose.msra.mxu0 0.0
    %706 = vmatprep.subr.mxu0 0.0
    %707 = vmatpush1.xpose.msra.mxu0 0.0
    %708 = vmatprep.subr.mxu0 0.0
    %709 = vmatpush1.xpose.msra.mxu0 0.0
    %710 = vmatprep.subr.mxu0 0.0
    %711 = vmatpush1.xpose.msra.mxu0 0.0
    %712 = vmatprep.subr.mxu0 0.0
    %713 = vmatpush1.xpose.msra.mxu0 0.0
    %714 = vmatprep.subr.mxu0 0.0
    %715 = vmatpush1.xpose.msra.mxu0 0.0
    %716 = vmatprep.subr.mxu0 0.0
    %717 = vmatpush1.xpose.msra.mxu0 0.0
    %718 = vmatprep.subr.mxu0 0.0
    %719 = vmatpush1.xpose.msra.mxu0 0.0
    %720 = vmatprep.subr.mxu0 0.0
    %721 = vmatpush1.xpose.msra.mxu0 0.0
    %722 = vmatprep.subr.mxu0 0.0
    %723 = vmatpush1.xpose.msra.mxu0 0.0
    %724 = vmatprep.subr.mxu0 0.0
    %725 = vmatpush1.xpose.msra.mxu0 0.0
    %726 = vmatprep.subr.mxu0 0.0
    %727 = vmatpush1.xpose.msra.mxu0 0.0
    %728 = vmatprep.subr.mxu0 0.0
    %729 = vmatpush1.xpose.msra.mxu0 0.0
    %730 = vmatprep.subr.mxu0 0.0
    %731 = vmatpush1.xpose.msra.mxu0 0.0
    %732 = vmatprep.subr.mxu0 0.0
    %733 = vmatpush1.xpose.msra.mxu0 0.0
    %734 = vmatprep.mubr.f32.mxu0 0.0
    %735 = vmatmul.mubr.f32.gmra.mrb[0].mxu0 %v664
    %v736 = vpop.f32.mrb[0].mxu0
    %v737 = vadd.f32 0.0, %v736
    %v738 = vpop.f32.mrb[0].mxu0
    %739 = vmatprep.mubr.f32.mxu0 0.0
    %740 = vmatmul.mubr.f32.gmra.mrb[0].mxu0 %v666
    %v741 = vpop.f32.mrb[0].mxu0
    %v742 = vadd.f32 0.0, %v741
    %v743 = vpop.f32.mrb[0].mxu0
    %744 = vdwg.mxu0
    %745 = vrot.lane.b32.xlu0 %v275, 112
    %v746 = vpop.permute.xlu0 %745
    %v747 = vsel %vm278, %v746, 0
    %749 = vmatprep.subr.mxu0 0.0
    %750 = vmatpush1.xpose.msra.mxu0 %v747
    %751 = vmatprep.subr.mxu0 0.0
    %752 = vmatpush1.xpose.msra.mxu0 0.0
    %753 = vmatprep.subr.mxu0 0.0
    %754 = vmatpush1.xpose.msra.mxu0 0.0
    %755 = vmatprep.subr.mxu0 0.0
    %756 = vmatpush1.xpose.msra.mxu0 0.0
    %757 = vmatprep.subr.mxu0 0.0
    %758 = vmatpush1.xpose.msra.mxu0 0.0
    %759 = vmatprep.subr.mxu0 0.0
    %760 = vmatpush1.xpose.msra.mxu0 0.0
    %761 = vmatprep.subr.mxu0 0.0
    %762 = vmatpush1.xpose.msra.mxu0 0.0
    %763 = vmatprep.subr.mxu0 0.0
    %764 = vmatpush1.xpose.msra.mxu0 0.0
    %765 = vmatprep.subr.mxu0 0.0
    %766 = vmatpush1.xpose.msra.mxu0 0.0
    %767 = vmatprep.subr.mxu0 0.0
    %768 = vmatpush1.xpose.msra.mxu0 0.0
    %769 = vmatprep.subr.mxu0 0.0
    %770 = vmatpush1.xpose.msra.mxu0 0.0
    %771 = vmatprep.subr.mxu0 0.0
    %772 = vmatpush1.xpose.msra.mxu0 0.0
    %773 = vmatprep.subr.mxu0 0.0
    %774 = vmatpush1.xpose.msra.mxu0 0.0
    %775 = vmatprep.subr.mxu0 0.0
    %776 = vmatpush1.xpose.msra.mxu0 0.0
    %777 = vmatprep.subr.mxu0 0.0
    %778 = vmatpush1.xpose.msra.mxu0 0.0
    %779 = vmatprep.subr.mxu0 0.0
    %780 = vmatpush1.xpose.msra.mxu0 0.0
    %781 = vmatprep.subr.mxu0 0.0
    %782 = vmatpush1.xpose.msra.mxu0 0.0
    %783 = vmatprep.subr.mxu0 0.0
    %784 = vmatpush1.xpose.msra.mxu0 0.0
    %785 = vmatprep.subr.mxu0 0.0
    %786 = vmatpush1.xpose.msra.mxu0 0.0
    %787 = vmatprep.subr.mxu0 0.0
    %788 = vmatpush1.xpose.msra.mxu0 0.0
    %789 = vmatprep.subr.mxu0 0.0
    %790 = vmatpush1.xpose.msra.mxu0 0.0
    %791 = vmatprep.subr.mxu0 0.0
    %792 = vmatpush1.xpose.msra.mxu0 0.0
    %793 = vmatprep.subr.mxu0 0.0
    %794 = vmatpush1.xpose.msra.mxu0 0.0
    %795 = vmatprep.subr.mxu0 0.0
    %796 = vmatpush1.xpose.msra.mxu0 0.0
    %797 = vmatprep.subr.mxu0 0.0
    %798 = vmatpush1.xpose.msra.mxu0 0.0
    %799 = vmatprep.subr.mxu0 0.0
    %800 = vmatpush1.xpose.msra.mxu0 0.0
    %801 = vmatprep.subr.mxu0 0.0
    %802 = vmatpush1.xpose.msra.mxu0 0.0
    %803 = vmatprep.subr.mxu0 0.0
    %804 = vmatpush1.xpose.msra.mxu0 0.0
    %805 = vmatprep.subr.mxu0 0.0
    %806 = vmatpush1.xpose.msra.mxu0 0.0
    %807 = vmatprep.subr.mxu0 0.0
    %808 = vmatpush1.xpose.msra.mxu0 0.0
    %809 = vmatprep.subr.mxu0 0.0
    %810 = vmatpush1.xpose.msra.mxu0 0.0
    %811 = vmatprep.subr.mxu0 0.0
    %812 = vmatpush1.xpose.msra.mxu0 0.0
    %813 = vmatprep.mubr.f32.mxu0 0.0
    %814 = vmatmul.mubr.f32.gmra.mrb[0].mxu0 %v664
    %v815 = vpop.f32.mrb[0].mxu0
    %v816 = vadd.f32 0.0, %v815
    %v817 = vpop.f32.mrb[0].mxu0
    %818 = vmatprep.mubr.f32.mxu0 0.0
    %819 = vmatmul.mubr.f32.gmra.mrb[0].mxu0 %v666
    %v820 = vpop.f32.mrb[0].mxu0
    %v821 = vadd.f32 0.0, %v820
    %v822 = vpop.f32.mrb[0].mxu0
    %823 = vdwg.mxu0
    %v824 = vmul.f32 %v737, 0.25
    %v825 = vmul.f32 %v742, 0.25
    %v826 = vmul.f32 %v816, 0.25
    %v827 = vmul.f32 %v821, 0.25
    %v828 = vsel %vm445, %v824, -inf
    %829 = vmax.xlane.f32.xlu0 %v828
    %v830 = vpop.xlane.xlu0 %829
    %v831 = vsel %vm445, %v825, -inf
    %832 = vmax.xlane.f32.xlu0 %v831
    %v833 = vpop.xlane.xlu0 %832
    %v834 = vsel %vm445, %v826, -inf
    %835 = vmax.xlane.f32.xlu0 %v834
    %v836 = vpop.xlane.xlu0 %835
    %v837 = vsel %vm445, %v827, -inf
    %838 = vmax.xlane.f32.xlu0 %v837
    %v839 = vpop.xlane.xlu0 %838
    %v840 = vsub.f32 %v824, %v830
    %v841 = vsub.f32 %v825, %v833
    %v842 = vsub.f32 %v826, %v836
    %v843 = vsub.f32 %v827, %v839
    %v844 = vmul.f32 %v840, 1.442695
    %v845 = vpow.pop %v844
    %v846 = vmul.f32 %v841, 1.442695
    %v847 = vpow.pop %v846
    %v848 = vmul.f32 %v842, 1.442695
    %v849 = vpow.pop %v848
    %v850 = vmul.f32 %v843, 1.442695
    %v851 = vpow.pop %v850
    %v852 = vsel %vm445, %v845, 0.0
    %853 = vadd.xlane.f32.xlu0 %v852
    %v854 = vpop.xlane.xlu0 %853
    %v855 = vsel %vm445, %v847, 0.0
    %856 = vadd.xlane.f32.xlu0 %v855
    %v857 = vpop.xlane.xlu0 %856
    %v858 = vsel %vm445, %v849, 0.0
    %859 = vadd.xlane.f32.xlu0 %v858
    %v860 = vpop.xlane.xlu0 %859
    %v861 = vsel %vm445, %v851, 0.0
    %862 = vadd.xlane.f32.xlu0 %v861
    %v863 = vpop.xlane.xlu0 %862
    %v864 = vrcp.pop %v854
    %v865 = vrcp.pop %v857
    %v866 = vrcp.pop %v860
    %v867 = vrcp.pop %v863
    %v868 = vmul.f32 %v845, %v864
    %v869 = vmul.f32 %v847, %v865
    %v870 = vmul.f32 %v849, %v866
    %v871 = vmul.f32 %v851, %v867
    %872 = vrot.lane.b32.xlu0 %v270, 80
    %v873 = vpop.permute.xlu0 %872
    %v876 = vsel %vm445, %v868, 0
    %v879 = vsel %vm445, %v869, 0
    %881 = vmatprep.subr.mxu0 0.0
    %882 = vmatpush1.msra.mxu0 %v873
    %883 = vmatprep.subr.mxu0 0.0
    %884 = vmatpush1.msra.mxu0 0.0
    %885 = vmatprep.subr.mxu0 0.0
    %886 = vmatpush1.msra.mxu0 0.0
    %887 = vmatprep.subr.mxu0 0.0
    %888 = vmatpush1.msra.mxu0 0.0
    %889 = vmatprep.subr.mxu0 0.0
    %890 = vmatpush1.msra.mxu0 0.0
    %891 = vmatprep.subr.mxu0 0.0
    %892 = vmatpush1.msra.mxu0 0.0
    %893 = vmatprep.subr.mxu0 0.0
    %894 = vmatpush1.msra.mxu0 0.0
    %895 = vmatprep.subr.mxu0 0.0
    %896 = vmatpush1.msra.mxu0 0.0
    %897 = vmatprep.subr.mxu0 0.0
    %898 = vmatpush1.msra.mxu0 0.0
    %899 = vmatprep.subr.mxu0 0.0
    %900 = vmatpush1.msra.mxu0 0.0
    %901 = vmatprep.subr.mxu0 0.0
    %902 = vmatpush1.msra.mxu0 0.0
    %903 = vmatprep.subr.mxu0 0.0
    %904 = vmatpush1.msra.mxu0 0.0
    %905 = vmatprep.subr.mxu0 0.0
    %906 = vmatpush1.msra.mxu0 0.0
    %907 = vmatprep.subr.mxu0 0.0
    %908 = vmatpush1.msra.mxu0 0.0
    %909 = vmatprep.subr.mxu0 0.0
    %910 = vmatpush1.msra.mxu0 0.0
    %911 = vmatprep.subr.mxu0 0.0
    %912 = vmatpush1.msra.mxu0 0.0
    %913 = vmatprep.subr.mxu0 0.0
    %914 = vmatpush1.msra.mxu0 0.0
    %915 = vmatprep.subr.mxu0 0.0
    %916 = vmatpush1.msra.mxu0 0.0
    %917 = vmatprep.subr.mxu0 0.0
    %918 = vmatpush1.msra.mxu0 0.0
    %919 = vmatprep.subr.mxu0 0.0
    %920 = vmatpush1.msra.mxu0 0.0
    %921 = vmatprep.subr.mxu0 0.0
    %922 = vmatpush1.msra.mxu0 0.0
    %923 = vmatprep.subr.mxu0 0.0
    %924 = vmatpush1.msra.mxu0 0.0
    %925 = vmatprep.subr.mxu0 0.0
    %926 = vmatpush1.msra.mxu0 0.0
    %927 = vmatprep.subr.mxu0 0.0
    %928 = vmatpush1.msra.mxu0 0.0
    %929 = vmatprep.subr.mxu0 0.0
    %930 = vmatpush1.msra.mxu0 0.0
    %931 = vmatprep.subr.mxu0 0.0
    %932 = vmatpush1.msra.mxu0 0.0
    %933 = vmatprep.subr.mxu0 0.0
    %934 = vmatpush1.msra.mxu0 0.0
    %935 = vmatprep.subr.mxu0 0.0
    %936 = vmatpush1.msra.mxu0 0.0
    %937 = vmatprep.subr.mxu0 0.0
    %938 = vmatpush1.msra.mxu0 0.0
    %939 = vmatprep.subr.mxu0 0.0
    %940 = vmatpush1.msra.mxu0 0.0
    %941 = vmatprep.subr.mxu0 0.0
    %942 = vmatpush1.msra.mxu0 0.0
    %943 = vmatprep.subr.mxu0 0.0
    %944 = vmatpush1.msra.mxu0 0.0
    %945 = vmatprep.mubr.f32.mxu0 0.0
    %946 = vmatmul.mubr.f32.gmra.mrb[0].mxu0 %v876
    %v947 = vpop.f32.mrb[0].mxu0
    %v948 = vadd.f32 0.0, %v947
    %v949 = vpop.f32.mrb[0].mxu0
    %950 = vmatprep.mubr.f32.mxu0 0.0
    %951 = vmatmul.mubr.f32.gmra.mrb[0].mxu0 %v879
    %v952 = vpop.f32.mrb[0].mxu0
    %v953 = vadd.f32 0.0, %v952
    %v954 = vpop.f32.mrb[0].mxu0
    %955 = vdwg.mxu0
    %956 = vrot.lane.b32.xlu0 %v275, 80
    %v957 = vpop.permute.xlu0 %956
    %v960 = vsel %vm445, %v870, 0
    %v963 = vsel %vm445, %v871, 0
    %965 = vmatprep.subr.mxu0 0.0
    %966 = vmatpush1.msra.mxu0 %v957
    %967 = vmatprep.subr.mxu0 0.0
    %968 = vmatpush1.msra.mxu0 0.0
    %969 = vmatprep.subr.mxu0 0.0
    %970 = vmatpush1.msra.mxu0 0.0
    %971 = vmatprep.subr.mxu0 0.0
    %972 = vmatpush1.msra.mxu0 0.0
    %973 = vmatprep.subr.mxu0 0.0
    %974 = vmatpush1.msra.mxu0 0.0
    %975 = vmatprep.subr.mxu0 0.0
    %976 = vmatpush1.msra.mxu0 0.0
    %977 = vmatprep.subr.mxu0 0.0
    %978 = vmatpush1.msra.mxu0 0.0
    %979 = vmatprep.subr.mxu0 0.0
    %980 = vmatpush1.msra.mxu0 0.0
    %981 = vmatprep.subr.mxu0 0.0
    %982 = vmatpush1.msra.mxu0 0.0
    %983 = vmatprep.subr.mxu0 0.0
    %984 = vmatpush1.msra.mxu0 0.0
    %985 = vmatprep.subr.mxu0 0.0
    %986 = vmatpush1.msra.mxu0 0.0
    %987 = vmatprep.subr.mxu0 0.0
    %988 = vmatpush1.msra.mxu0 0.0
    %989 = vmatprep.subr.mxu0 0.0
    %990 = vmatpush1.msra.mxu0 0.0
    %991 = vmatprep.subr.mxu0 0.0
    %992 = vmatpush1.msra.mxu0 0.0
    %993 = vmatprep.subr.mxu0 0.0
    %994 = vmatpush1.msra.mxu0 0.0
    %995 = vmatprep.subr.mxu0 0.0
    %996 = vmatpush1.msra.mxu0 0.0
    %997 = vmatprep.subr.mxu0 0.0
    %998 = vmatpush1.msra.mxu0 0.0
    %999 = vmatprep.subr.mxu0 0.0
    %1000 = vmatpush1.msra.mxu0 0.0
    %1001 = vmatprep.subr.mxu0 0.0
    %1002 = vmatpush1.msra.mxu0 0.0
    %1003 = vmatprep.subr.mxu0 0.0
    %1004 = vmatpush1.msra.mxu0 0.0
    %1005 = vmatprep.subr.mxu0 0.0
    %1006 = vmatpush1.msra.mxu0 0.0
    %1007 = vmatprep.subr.mxu0 0.0
    %1008 = vmatpush1.msra.mxu0 0.0
    %1009 = vmatprep.subr.mxu0 0.0
    %1010 = vmatpush1.msra.mxu0 0.0
    %1011 = vmatprep.subr.mxu0 0.0
    %1012 = vmatpush1.msra.mxu0 0.0
    %1013 = vmatprep.subr.mxu0 0.0
    %1014 = vmatpush1.msra.mxu0 0.0
    %1015 = vmatprep.subr.mxu0 0.0
    %1016 = vmatpush1.msra.mxu0 0.0
    %1017 = vmatprep.subr.mxu0 0.0
    %1018 = vmatpush1.msra.mxu0 0.0
    %1019 = vmatprep.subr.mxu0 0.0
    %1020 = vmatpush1.msra.mxu0 0.0
    %1021 = vmatprep.subr.mxu0 0.0
    %1022 = vmatpush1.msra.mxu0 0.0
    %1023 = vmatprep.subr.mxu0 0.0
    %1024 = vmatpush1.msra.mxu0 0.0
    %1025 = vmatprep.subr.mxu0 0.0
    %1026 = vmatpush1.msra.mxu0 0.0
    %1027 = vmatprep.subr.mxu0 0.0
    %1028 = vmatpush1.msra.mxu0 0.0
    %1029 = vmatprep.mubr.f32.mxu0 0.0
    %1030 = vmatmul.mubr.f32.gmra.mrb[0].mxu0 %v960
    %v1031 = vpop.f32.mrb[0].mxu0
    %v1032 = vadd.f32 0.0, %v1031
    %v1033 = vpop.f32.mrb[0].mxu0
    %1034 = vmatprep.mubr.f32.mxu0 0.0
    %1035 = vmatmul.mubr.f32.gmra.mrb[0].mxu0 %v963
    %v1036 = vpop.f32.mrb[0].mxu0
    %v1037 = vadd.f32 0.0, %v1036
    %v1038 = vpop.f32.mrb[0].mxu0
    %1039 = vdwg.mxu0
    %1044 = vrot.lane.b32.xlu0 %v948, 16
    %v1045 = vpop.permute.xlu0 %1044
    %1046 = vrot.lane.b32.xlu0 %v953, 16
    %v1047 = vpop.permute.xlu0 %1046
    %1048 = vrot.lane.b32.xlu0 %v1032, 16
    %v1049 = vpop.permute.xlu0 %1048
    %1050 = vrot.lane.b32.xlu0 %v1037, 16
    %v1051 = vpop.permute.xlu0 %1050
    %v1056 = vsel %vm278, %v566, %v1045
    %v1057 = vsel %vm278, %v571, %v1047
    %v1058 = vsel %vm278, %v650, %v1049
    %v1059 = vsel %vm278, %v655, %v1051
    %v1061 = vsel %vm115, %v1056, 0
    %v1064 = vsel %vm115, %v1057, 0
    %v1067 = vsel %vm115, %v1058, 0
    %v1070 = vsel %vm115, %v1059, 0
    %1072 = vmatprep.subr.mxu0 0.0
    %1073 = vmatpush1.msra.mxu0 %v104
    %1074 = vmatprep.subr.mxu0 0.0
    %1075 = vmatpush1.msra.mxu0 %v105
    %1076 = vmatprep.subr.mxu0 0.0
    %1077 = vmatpush1.msra.mxu0 %v106
    %1078 = vmatprep.subr.mxu0 0.0
    %1079 = vmatpush1.msra.mxu0 %v107
    %1080 = vmatprep.subr.mxu0 0.0
    %1081 = vmatpush1.msra.mxu0 0.0
    %1082 = vmatprep.subr.mxu0 0.0
    %1083 = vmatpush1.msra.mxu0 0.0
    %1084 = vmatprep.subr.mxu0 0.0
    %1085 = vmatpush1.msra.mxu0 0.0
    %1086 = vmatprep.subr.mxu0 0.0
    %1087 = vmatpush1.msra.mxu0 0.0
    %1088 = vmatprep.subr.mxu0 0.0
    %1089 = vmatpush1.msra.mxu0 0.0
    %1090 = vmatprep.subr.mxu0 0.0
    %1091 = vmatpush1.msra.mxu0 0.0
    %1092 = vmatprep.subr.mxu0 0.0
    %1093 = vmatpush1.msra.mxu0 0.0
    %1094 = vmatprep.subr.mxu0 0.0
    %1095 = vmatpush1.msra.mxu0 0.0
    %1096 = vmatprep.subr.mxu0 0.0
    %1097 = vmatpush1.msra.mxu0 0.0
    %1098 = vmatprep.subr.mxu0 0.0
    %1099 = vmatpush1.msra.mxu0 0.0
    %1100 = vmatprep.subr.mxu0 0.0
    %1101 = vmatpush1.msra.mxu0 0.0
    %1102 = vmatprep.subr.mxu0 0.0
    %1103 = vmatpush1.msra.mxu0 0.0
    %1104 = vmatprep.subr.mxu0 0.0
    %1105 = vmatpush1.msra.mxu0 0.0
    %1106 = vmatprep.subr.mxu0 0.0
    %1107 = vmatpush1.msra.mxu0 0.0
    %1108 = vmatprep.subr.mxu0 0.0
    %1109 = vmatpush1.msra.mxu0 0.0
    %1110 = vmatprep.subr.mxu0 0.0
    %1111 = vmatpush1.msra.mxu0 0.0
    %1112 = vmatprep.subr.mxu0 0.0
    %1113 = vmatpush1.msra.mxu0 0.0
    %1114 = vmatprep.subr.mxu0 0.0
    %1115 = vmatpush1.msra.mxu0 0.0
    %1116 = vmatprep.subr.mxu0 0.0
    %1117 = vmatpush1.msra.mxu0 0.0
    %1118 = vmatprep.subr.mxu0 0.0
    %1119 = vmatpush1.msra.mxu0 0.0
    %1120 = vmatprep.subr.mxu0 0.0
    %1121 = vmatpush1.msra.mxu0 0.0
    %1122 = vmatprep.subr.mxu0 0.0
    %1123 = vmatpush1.msra.mxu0 0.0
    %1124 = vmatprep.subr.mxu0 0.0
    %1125 = vmatpush1.msra.mxu0 0.0
    %1126 = vmatprep.subr.mxu0 0.0
    %1127 = vmatpush1.msra.mxu0 0.0
    %1128 = vmatprep.subr.mxu0 0.0
    %1129 = vmatpush1.msra.mxu0 0.0
    %1130 = vmatprep.subr.mxu0 0.0
    %1131 = vmatpush1.msra.mxu0 0.0
    %1132 = vmatprep.subr.mxu0 0.0
    %1133 = vmatpush1.msra.mxu0 0.0
    %1134 = vmatprep.subr.mxu0 0.0
    %1135 = vmatpush1.msra.mxu0 0.0
    %1136 = vmatprep.mubr.f32.mxu0 0.0
    %1137 = vmatmul.mubr.f32.gmra.mrb[0].mxu0 %v1061
    %v1138 = vpop.f32.mrb[0].mxu0
    %v1139 = vadd.f32 0.0, %v1138
    %v1140 = vpop.f32.mrb[0].mxu0
    %1141 = vmatprep.mubr.f32.mxu0 0.0
    %1142 = vmatmul.mubr.f32.gmra.mrb[0].mxu0 %v1064
    %v1143 = vpop.f32.mrb[0].mxu0
    %v1144 = vadd.f32 0.0, %v1143
    %v1145 = vpop.f32.mrb[0].mxu0
    %1146 = vmatprep.mubr.f32.mxu0 0.0
    %1147 = vmatmul.mubr.f32.gmra.mrb[0].mxu0 %v1067
    %v1148 = vpop.f32.mrb[0].mxu0
    %v1149 = vadd.f32 0.0, %v1148
    %v1150 = vpop.f32.mrb[0].mxu0
    %1151 = vmatprep.mubr.f32.mxu0 0.0
    %1152 = vmatmul.mubr.f32.gmra.mrb[0].mxu0 %v1070
    %v1153 = vpop.f32.mrb[0].mxu0
    %v1154 = vadd.f32 0.0, %v1153
    %v1155 = vpop.f32.mrb[0].mxu0
    %1156 = vdwg.mxu0
    %v1157 = vadd.f32 %v1139, %v94
    %v1158 = vadd.f32 %v1144, %v95
    %v1159 = vadd.f32 %v1149, %v94
    %v1160 = vadd.f32 %v1154, %v95
    %v1161 = vsel %vm115, %v1157, 0.0
    %1162 = vadd.xlane.f32.xlu0 %v1161
    %v1163 = vpop.xlane.xlu0 %1162
    %v1164 = vsel %vm115, %v1158, 0.0
    %1165 = vadd.xlane.f32.xlu0 %v1164
    %v1166 = vpop.xlane.xlu0 %1165
    %v1167 = vsel %vm115, %v1159, 0.0
    %1168 = vadd.xlane.f32.xlu0 %v1167
    %v1169 = vpop.xlane.xlu0 %1168
    %v1170 = vsel %vm115, %v1160, 0.0
    %1171 = vadd.xlane.f32.xlu0 %v1170
    %v1172 = vpop.xlane.xlu0 %1171
    %v1173 = vrcp.pop 32.0
    %v1174 = vmul.f32 %v1163, %v1173
    %v1175 = vmul.f32 %v1166, %v1173
    %v1176 = vmul.f32 %v1169, %v1173
    %v1177 = vmul.f32 %v1172, %v1173
    %v1178 = vsub.f32 %v1157, %v1174
    %v1179 = vsub.f32 %v1158, %v1175
    %v1180 = vsub.f32 %v1159, %v1176
    %v1181 = vsub.f32 %v1160, %v1177
    %v1182 = vmul.f32 %v1178, %v1178
    %v1183 = vmul.f32 %v1179, %v1179
    %v1184 = vmul.f32 %v1180, %v1180
    %v1185 = vmul.f32 %v1181, %v1181
    %v1186 = vsel %vm115, %v1182, 0.0
    %1187 = vadd.xlane.f32.xlu0 %v1186
    %v1188 = vpop.xlane.xlu0 %1187
    %v1189 = vsel %vm115, %v1183, 0.0
    %1190 = vadd.xlane.f32.xlu0 %v1189
    %v1191 = vpop.xlane.xlu0 %1190
    %v1192 = vsel %vm115, %v1184, 0.0
    %1193 = vadd.xlane.f32.xlu0 %v1192
    %v1194 = vpop.xlane.xlu0 %1193
    %v1195 = vsel %vm115, %v1185, 0.0
    %1196 = vadd.xlane.f32.xlu0 %v1195
    %v1197 = vpop.xlane.xlu0 %1196
    %v1198 = vmul.f32 %v1188, %v1173
    %v1199 = vmul.f32 %v1191, %v1173
    %v1200 = vmul.f32 %v1194, %v1173
    %v1201 = vmul.f32 %v1197, %v1173
    %v1202 = vadd.f32 %v1198, 1e-05
    %v1203 = vadd.f32 %v1199, 1e-05
    %v1204 = vadd.f32 %v1200, 1e-05
    %v1205 = vadd.f32 %v1201, 1e-05
    %v1206 = vrsqrt.pop %v1202
    %v1207 = vrsqrt.pop %v1203
    %v1208 = vrsqrt.pop %v1204
    %v1209 = vrsqrt.pop %v1205
    %v1210 = vmul.f32 %v1178, %v1206
    %v1211 = vmul.f32 %v1179, %v1207
    %v1212 = vmul.f32 %v1180, %v1208
    %v1213 = vmul.f32 %v1181, %v1209
    %v1214 = vlaneseq
    %v1215 = vshrl.u32 %v1214, 7
    %v1216 = vsub.s32 0, %v1215
    %v1217 = vrot.slane %v114, %v1216
    %v1218 = vmul.f32 %v1210, %v1217
    %v1219 = vmul.f32 %v1211, %v1217
    %v1220 = vmul.f32 %v1212, %v1217
    %v1221 = vmul.f32 %v1213, %v1217
    %v1222 = vlaneseq
    %v1223 = vshrl.u32 %v1222, 7
    %v1224 = vsub.s32 1, %v1223
    %v1225 = vrot.slane %v114, %v1224
    %v1226 = vadd.f32 %v1218, %v1225
    %v1227 = vadd.f32 %v1219, %v1225
    %v1228 = vadd.f32 %v1220, %v1225
    %v1229 = vadd.f32 %v1221, %v1225
    %v1230 = vlaneseq
    %v1231 = vshrl.u32 %v1230, 7
    %v1232 = vsub.s32 5, %v1231
    %v1233 = vrot.slane %v114, %v1232
    %v1235 = vsel %vm115, %v1226, 0
    %v1238 = vsel %vm115, %v1227, 0
    %v1241 = vsel %vm115, %v1228, 0
    %v1244 = vsel %vm115, %v1229, 0
    %1246 = vmatprep.subr.mxu0 0.0
    %1247 = vmatpush1.msra.mxu0 %v108
    %1248 = vmatprep.subr.mxu0 0.0
    %1249 = vmatpush1.msra.mxu0 %v109
    %1250 = vmatprep.subr.mxu0 0.0
    %1251 = vmatpush1.msra.mxu0 %v110
    %1252 = vmatprep.subr.mxu0 0.0
    %1253 = vmatpush1.msra.mxu0 %v111
    %1254 = vmatprep.subr.mxu0 0.0
    %1255 = vmatpush1.msra.mxu0 0.0
    %1256 = vmatprep.subr.mxu0 0.0
    %1257 = vmatpush1.msra.mxu0 0.0
    %1258 = vmatprep.subr.mxu0 0.0
    %1259 = vmatpush1.msra.mxu0 0.0
    %1260 = vmatprep.subr.mxu0 0.0
    %1261 = vmatpush1.msra.mxu0 0.0
    %1262 = vmatprep.subr.mxu0 0.0
    %1263 = vmatpush1.msra.mxu0 0.0
    %1264 = vmatprep.subr.mxu0 0.0
    %1265 = vmatpush1.msra.mxu0 0.0
    %1266 = vmatprep.subr.mxu0 0.0
    %1267 = vmatpush1.msra.mxu0 0.0
    %1268 = vmatprep.subr.mxu0 0.0
    %1269 = vmatpush1.msra.mxu0 0.0
    %1270 = vmatprep.subr.mxu0 0.0
    %1271 = vmatpush1.msra.mxu0 0.0
    %1272 = vmatprep.subr.mxu0 0.0
    %1273 = vmatpush1.msra.mxu0 0.0
    %1274 = vmatprep.subr.mxu0 0.0
    %1275 = vmatpush1.msra.mxu0 0.0
    %1276 = vmatprep.subr.mxu0 0.0
    %1277 = vmatpush1.msra.mxu0 0.0
    %1278 = vmatprep.subr.mxu0 0.0
    %1279 = vmatpush1.msra.mxu0 0.0
    %1280 = vmatprep.subr.mxu0 0.0
    %1281 = vmatpush1.msra.mxu0 0.0
    %1282 = vmatprep.subr.mxu0 0.0
    %1283 = vmatpush1.msra.mxu0 0.0
    %1284 = vmatprep.subr.mxu0 0.0
    %1285 = vmatpush1.msra.mxu0 0.0
    %1286 = vmatprep.subr.mxu0 0.0
    %1287 = vmatpush1.msra.mxu0 0.0
    %1288 = vmatprep.subr.mxu0 0.0
    %1289 = vmatpush1.msra.mxu0 0.0
    %1290 = vmatprep.subr.mxu0 0.0
    %1291 = vmatpush1.msra.mxu0 0.0
    %1292 = vmatprep.subr.mxu0 0.0
    %1293 = vmatpush1.msra.mxu0 0.0
    %1294 = vmatprep.subr.mxu0 0.0
    %1295 = vmatpush1.msra.mxu0 0.0
    %1296 = vmatprep.subr.mxu0 0.0
    %1297 = vmatpush1.msra.mxu0 0.0
    %1298 = vmatprep.subr.mxu0 0.0
    %1299 = vmatpush1.msra.mxu0 0.0
    %1300 = vmatprep.subr.mxu0 0.0
    %1301 = vmatpush1.msra.mxu0 0.0
    %1302 = vmatprep.subr.mxu0 0.0
    %1303 = vmatpush1.msra.mxu0 0.0
    %1304 = vmatprep.subr.mxu0 0.0
    %1305 = vmatpush1.msra.mxu0 0.0
    %1306 = vmatprep.subr.mxu0 0.0
    %1307 = vmatpush1.msra.mxu0 0.0
    %1308 = vmatprep.subr.mxu0 0.0
    %1309 = vmatpush1.msra.mxu0 0.0
    %1310 = vmatprep.mubr.f32.mxu0 0.0
    %1311 = vmatmul.mubr.f32.gmra.mrb[0].mxu0 %v1235
    %v1312 = vpop.f32.mrb[0].mxu0
    %v1313 = vadd.f32 %v1233, %v1312
    %v1314 = vpop.f32.mrb[0].mxu0
    %1315 = vmatprep.mubr.f32.mxu0 0.0
    %1316 = vmatmul.mubr.f32.gmra.mrb[0].mxu0 %v1238
    %v1317 = vpop.f32.mrb[0].mxu0
    %v1318 = vadd.f32 %v1233, %v1317
    %v1319 = vpop.f32.mrb[0].mxu0
    %1320 = vmatprep.mubr.f32.mxu0 0.0
    %1321 = vmatmul.mubr.f32.gmra.mrb[0].mxu0 %v1241
    %v1322 = vpop.f32.mrb[0].mxu0
    %v1323 = vadd.f32 %v1233, %v1322
    %v1324 = vpop.f32.mrb[0].mxu0
    %1325 = vmatprep.mubr.f32.mxu0 0.0
    %1326 = vmatmul.mubr.f32.gmra.mrb[0].mxu0 %v1244
    %v1327 = vpop.f32.mrb[0].mxu0
    %v1328 = vadd.f32 %v1233, %v1327
    %v1329 = vpop.f32.mrb[0].mxu0
    %1330 = vdwg.mxu0
    %v1331 = vmax.f32 %v1313, 0.0
    %v1332 = vmax.f32 %v1318, 0.0
    %v1333 = vmax.f32 %v1323, 0.0
    %v1334 = vmax.f32 %v1328, 0.0
    %v1335 = vlaneseq
    %v1336 = vshrl.u32 %v1335, 7
    %v1337 = vsub.s32 4, %v1336
    %v1338 = vrot.slane %v114, %v1337
    %v1340 = vsel %vm278, %v1331, 0
    %v1343 = vsel %vm278, %v1332, 0
    %v1346 = vsel %vm278, %v1333, 0
    %v1349 = vsel %vm278, %v1334, 0
    %1351 = vmatprep.subr.mxu0 0.0
    %1352 = vmatpush1.msra.mxu0 %v112
    %1353 = vmatprep.subr.mxu0 0.0
    %1354 = vmatpush1.msra.mxu0 %v113
    %1355 = vmatprep.subr.mxu0 0.0
    %1356 = vmatpush1.msra.mxu0 0.0
    %1357 = vmatprep.subr.mxu0 0.0
    %1358 = vmatpush1.msra.mxu0 0.0
    %1359 = vmatprep.subr.mxu0 0.0
    %1360 = vmatpush1.msra.mxu0 0.0
    %1361 = vmatprep.subr.mxu0 0.0
    %1362 = vmatpush1.msra.mxu0 0.0
    %1363 = vmatprep.subr.mxu0 0.0
    %1364 = vmatpush1.msra.mxu0 0.0
    %1365 = vmatprep.subr.mxu0 0.0
    %1366 = vmatpush1.msra.mxu0 0.0
    %1367 = vmatprep.subr.mxu0 0.0
    %1368 = vmatpush1.msra.mxu0 0.0
    %1369 = vmatprep.subr.mxu0 0.0
    %1370 = vmatpush1.msra.mxu0 0.0
    %1371 = vmatprep.subr.mxu0 0.0
    %1372 = vmatpush1.msra.mxu0 0.0
    %1373 = vmatprep.subr.mxu0 0.0
    %1374 = vmatpush1.msra.mxu0 0.0
    %1375 = vmatprep.subr.mxu0 0.0
    %1376 = vmatpush1.msra.mxu0 0.0
    %1377 = vmatprep.subr.mxu0 0.0
    %1378 = vmatpush1.msra.mxu0 0.0
    %1379 = vmatprep.subr.mxu0 0.0
    %1380 = vmatpush1.msra.mxu0 0.0
    %1381 = vmatprep.subr.mxu0 0.0
    %1382 = vmatpush1.msra.mxu0 0.0
    %1383 = vmatprep.subr.mxu0 0.0
    %1384 = vmatpush1.msra.mxu0 0.0
    %1385 = vmatprep.subr.mxu0 0.0
    %1386 = vmatpush1.msra.mxu0 0.0
    %1387 = vmatprep.subr.mxu0 0.0
    %1388 = vmatpush1.msra.mxu0 0.0
    %1389 = vmatprep.subr.mxu0 0.0
    %1390 = vmatpush1.msra.mxu0 0.0
    %1391 = vmatprep.subr.mxu0 0.0
    %1392 = vmatpush1.msra.mxu0 0.0
    %1393 = vmatprep.subr.mxu0 0.0
    %1394 = vmatpush1.msra.mxu0 0.0
    %1395 = vmatprep.subr.mxu0 0.0
    %1396 = vmatpush1.msra.mxu0 0.0
    %1397 = vmatprep.subr.mxu0 0.0
    %1398 = vmatpush1.msra.mxu0 0.0
    %1399 = vmatprep.subr.mxu0 0.0
    %1400 = vmatpush1.msra.mxu0 0.0
    %1401 = vmatprep.subr.mxu0 0.0
    %1402 = vmatpush1.msra.mxu0 0.0
    %1403 = vmatprep.subr.mxu0 0.0
    %1404 = vmatpush1.msra.mxu0 0.0
    %1405 = vmatprep.subr.mxu0 0.0
    %1406 = vmatpush1.msra.mxu0 0.0
    %1407 = vmatprep.subr.mxu0 0.0
    %1408 = vmatpush1.msra.mxu0 0.0
    %1409 = vmatprep.subr.mxu0 0.0
    %1410 = vmatpush1.msra.mxu0 0.0
    %1411 = vmatprep.subr.mxu0 0.0
    %1412 = vmatpush1.msra.mxu0 0.0
    %1413 = vmatprep.subr.mxu0 0.0
    %1414 = vmatpush1.msra.mxu0 0.0
    %1415 = vmatprep.mubr.f32.mxu0 0.0
    %1416 = vmatmul.mubr.f32.gmra.mrb[0].mxu0 %v1340
    %v1417 = vpop.f32.mrb[0].mxu0
    %v1418 = vadd.f32 %v1338, %v1417
    %v1419 = vpop.f32.mrb[0].mxu0
    %1420 = vmatprep.mubr.f32.mxu0 0.0
    %1421 = vmatmul.mubr.f32.gmra.mrb[0].mxu0 %v1343
    %v1422 = vpop.f32.mrb[0].mxu0
    %v1423 = vadd.f32 %v1338, %v1422
    %v1424 = vpop.f32.mrb[0].mxu0
    %1425 = vmatprep.mubr.f32.mxu0 0.0
    %1426 = vmatmul.mubr.f32.gmra.mrb[0].mxu0 %v1346
    %v1427 = vpop.f32.mrb[0].mxu0
    %v1428 = vadd.f32 %v1338, %v1427
    %v1429 = vpop.f32.mrb[0].mxu0
    %1430 = vmatprep.mubr.f32.mxu0 0.0
    %1431 = vmatmul.mubr.f32.gmra.mrb[0].mxu0 %v1349
    %v1432 = vpop.f32.mrb[0].mxu0
    %v1433 = vadd.f32 %v1338, %v1432
    %v1434 = vpop.f32.mrb[0].mxu0
    %1435 = vdwg.mxu0
    %v1436 = vadd.f32 %v1226, %v1418
    %v1437 = vadd.f32 %v1227, %v1423
    %v1438 = vadd.f32 %v1228, %v1428
    %v1439 = vadd.f32 %v1229, %v1433
    %v1440 = vsel %vm115, %v1436, 0.0
    %1441 = vadd.xlane.f32.xlu0 %v1440
    %v1442 = vpop.xlane.xlu0 %1441
    %v1443 = vsel %vm115, %v1437, 0.0
    %1444 = vadd.xlane.f32.xlu0 %v1443
    %v1445 = vpop.xlane.xlu0 %1444
    %v1446 = vsel %vm115, %v1438, 0.0
    %1447 = vadd.xlane.f32.xlu0 %v1446
    %v1448 = vpop.xlane.xlu0 %1447
    %v1449 = vsel %vm115, %v1439, 0.0
    %1450 = vadd.xlane.f32.xlu0 %v1449
    %v1451 = vpop.xlane.xlu0 %1450
    %v1452 = vmul.f32 %v1442, %v1173
    %v1453 = vmul.f32 %v1445, %v1173
    %v1454 = vmul.f32 %v1448, %v1173
    %v1455 = vmul.f32 %v1451, %v1173
    %v1456 = vsub.f32 %v1436, %v1452
    %v1457 = vsub.f32 %v1437, %v1453
    %v1458 = vsub.f32 %v1438, %v1454
    %v1459 = vsub.f32 %v1439, %v1455
    %v1460 = vmul.f32 %v1456, %v1456
    %v1461 = vmul.f32 %v1457, %v1457
    %v1462 = vmul.f32 %v1458, %v1458
    %v1463 = vmul.f32 %v1459, %v1459
    %v1464 = vsel %vm115, %v1460, 0.0
    %1465 = vadd.xlane.f32.xlu0 %v1464
    %v1466 = vpop.xlane.xlu0 %1465
    %v1467 = vsel %vm115, %v1461, 0.0
    %1468 = vadd.xlane.f32.xlu0 %v1467
    %v1469 = vpop.xlane.xlu0 %1468
    %v1470 = vsel %vm115, %v1462, 0.0
    %1471 = vadd.xlane.f32.xlu0 %v1470
    %v1472 = vpop.xlane.xlu0 %1471
    %v1473 = vsel %vm115, %v1463, 0.0
    %1474 = vadd.xlane.f32.xlu0 %v1473
    %v1475 = vpop.xlane.xlu0 %1474
    %v1476 = vmul.f32 %v1466, %v1173
    %v1477 = vmul.f32 %v1469, %v1173
    %v1478 = vmul.f32 %v1472, %v1173
    %v1479 = vmul.f32 %v1475, %v1173
    %v1480 = vadd.f32 %v1476, 1e-05
    %v1481 = vadd.f32 %v1477, 1e-05
    %v1482 = vadd.f32 %v1478, 1e-05
    %v1483 = vadd.f32 %v1479, 1e-05
    %v1484 = vrsqrt.pop %v1480
    %v1485 = vrsqrt.pop %v1481
    %v1486 = vrsqrt.pop %v1482
    %v1487 = vrsqrt.pop %v1483
    %v1488 = vmul.f32 %v1456, %v1484
    %v1489 = vmul.f32 %v1457, %v1485
    %v1490 = vmul.f32 %v1458, %v1486
    %v1491 = vmul.f32 %v1459, %v1487
    %v1492 = vlaneseq
    %v1493 = vshrl.u32 %v1492, 7
    %v1494 = vsub.s32 2, %v1493
    %v1495 = vrot.slane %v114, %v1494
    %v1496 = vmul.f32 %v1488, %v1495
    %v1497 = vmul.f32 %v1489, %v1495
    %v1498 = vmul.f32 %v1490, %v1495
    %v1499 = vmul.f32 %v1491, %v1495
    %v1500 = vlaneseq
    %v1501 = vshrl.u32 %v1500, 7
    %v1502 = vsub.s32 3, %v1501
    %v1503 = vrot.slane %v114, %v1502
    %v1504 = vadd.f32 %v1496, %v1503
    %v1505 = vadd.f32 %v1497, %v1503
    %v1506 = vadd.f32 %v1498, %v1503
    %v1507 = vadd.f32 %v1499, %v1503
    %s1508 = scalar_lea.vmem %s3, 32
    %v1509 = vld [vmem:[%s1508] sm:$0xff]
    %v1510 = vld [vmem:[%s1508 + $0x8] sm:$0xff]
    %v1511 = vld [vmem:[%s1508 + $0x10] sm:$0xff]
    %v1512 = vld [vmem:[%s1508 + $0x18] sm:$0xff]
    %s1513 = scalar_lea.vmem %s4, 32
    %v1514 = vld [vmem:[%s1513] sm:$0xff]
    %v1515 = vld [vmem:[%s1513 + $0x8] sm:$0xff]
    %v1516 = vld [vmem:[%s1513 + $0x10] sm:$0xff]
    %v1517 = vld [vmem:[%s1513 + $0x18] sm:$0xff]
    %s1518 = scalar_lea.vmem [#allocation6], 32
    %v1519 = vld [vmem:[%s1518] sm:$0xff]
    %v1520 = vld [vmem:[%s1518 + $0x8] sm:$0xff]
    %v1521 = vld [vmem:[%s1518 + $0x10] sm:$0xff]
    %v1522 = vld [vmem:[%s1518 + $0x18] sm:$0xff]
    %s1523 = scalar_lea.vmem %s6, 32
    %v1524 = vld [vmem:[%s1523] sm:$0xff]
    %v1525 = vld [vmem:[%s1523 + $0x8] sm:$0xff]
    %v1526 = vld [vmem:[%s1523 + $0x10] sm:$0xff]
    %v1527 = vld [vmem:[%s1523 + $0x18] sm:$0xff]
    %s1528 = scalar_lea.vmem [#allocation7], 16
    %v1529 = vld [vmem:[%s1528] sm:$0xff]
    %v1530 = vld [vmem:[%s1528 + $0x8] sm:$0xff]
    %s1531 = scalar_lea.vmem %s8, 8
    %v1532 = vld [vmem:[%s1531] sm:$0x3f]
    %1533 = vmatprep.subr.mxu0 0.0
    %1534 = vmatpush1.msra.mxu0 %v1509
    %1535 = vmatprep.subr.mxu0 0.0
    %1536 = vmatpush1.msra.mxu0 %v1510
    %1537 = vmatprep.subr.mxu0 0.0
    %1538 = vmatpush1.msra.mxu0 %v1511
    %1539 = vmatprep.subr.mxu0 0.0
    %1540 = vmatpush1.msra.mxu0 %v1512
    %1541 = vmatprep.subr.mxu0 0.0
    %1542 = vmatpush1.msra.mxu0 0.0
    %1543 = vmatprep.subr.mxu0 0.0
    %1544 = vmatpush1.msra.mxu0 0.0
    %1545 = vmatprep.subr.mxu0 0.0
    %1546 = vmatpush1.msra.mxu0 0.0
    %1547 = vmatprep.subr.mxu0 0.0
    %1548 = vmatpush1.msra.mxu0 0.0
    %1549 = vmatprep.subr.mxu0 0.0
    %1550 = vmatpush1.msra.mxu0 0.0
    %1551 = vmatprep.subr.mxu0 0.0
    %1552 = vmatpush1.msra.mxu0 0.0
    %1553 = vmatprep.subr.mxu0 0.0
    %1554 = vmatpush1.msra.mxu0 0.0
    %1555 = vmatprep.subr.mxu0 0.0
    %1556 = vmatpush1.msra.mxu0 0.0
    %1557 = vmatprep.subr.mxu0 0.0
    %1558 = vmatpush1.msra.mxu0 0.0
    %1559 = vmatprep.subr.mxu0 0.0
    %1560 = vmatpush1.msra.mxu0 0.0
    %1561 = vmatprep.subr.mxu0 0.0
    %1562 = vmatpush1.msra.mxu0 0.0
    %1563 = vmatprep.subr.mxu0 0.0
    %1564 = vmatpush1.msra.mxu0 0.0
    %1565 = vmatprep.subr.mxu0 0.0
    %1566 = vmatpush1.msra.mxu0 0.0
    %1567 = vmatprep.subr.mxu0 0.0
    %1568 = vmatpush1.msra.mxu0 0.0
    %1569 = vmatprep.subr.mxu0 0.0
    %1570 = vmatpush1.msra.mxu0 0.0
    %1571 = vmatprep.subr.mxu0 0.0
    %1572 = vmatpush1.msra.mxu0 0.0
    %1573 = vmatprep.subr.mxu0 0.0
    %1574 = vmatpush1.msra.mxu0 0.0
    %1575 = vmatprep.subr.mxu0 0.0
    %1576 = vmatpush1.msra.mxu0 0.0
    %1577 = vmatprep.subr.mxu0 0.0
    %1578 = vmatpush1.msra.mxu0 0.0
    %1579 = vmatprep.subr.mxu0 0.0
    %1580 = vmatpush1.msra.mxu0 0.0
    %1581 = vmatprep.subr.mxu0 0.0
    %1582 = vmatpush1.msra.mxu0 0.0
    %1583 = vmatprep.subr.mxu0 0.0
    %1584 = vmatpush1.msra.mxu0 0.0
    %1585 = vmatprep.subr.mxu0 0.0
    %1586 = vmatpush1.msra.mxu0 0.0
    %1587 = vmatprep.subr.mxu0 0.0
    %1588 = vmatpush1.msra.mxu0 0.0
    %1589 = vmatprep.subr.mxu0 0.0
    %1590 = vmatpush1.msra.mxu0 0.0
    %1591 = vmatprep.subr.mxu0 0.0
    %1592 = vmatpush1.msra.mxu0 0.0
    %1593 = vmatprep.subr.mxu0 0.0
    %1594 = vmatpush1.msra.mxu0 0.0
    %1595 = vmatprep.subr.mxu0 0.0
    %1596 = vmatpush1.msra.mxu0 0.0
    %1597 = vmatprep.mubr.f32.mxu0 0.0
    %1598 = vmatmul.mubr.f32.gmra.mrb[0].mxu0 %v198
    %v1599 = vpop.f32.mrb[0].mxu0
    %v1600 = vadd.f32 0.0, %v1599
    %v1601 = vpop.f32.mrb[0].mxu0
    %1602 = vmatprep.mubr.f32.mxu0 0.0
    %1603 = vmatmul.mubr.f32.gmra.mrb[0].mxu0 %v201
    %v1604 = vpop.f32.mrb[0].mxu0
    %v1605 = vadd.f32 0.0, %v1604
    %v1606 = vpop.f32.mrb[0].mxu0
    %1607 = vdwg.mxu0
    %v1609 = vsel %vm115, %v1504, 0
    %v1612 = vsel %vm115, %v1505, 0
    %v1615 = vsel %vm115, %v1506, 0
    %v1618 = vsel %vm115, %v1507, 0
    %1620 = vmatprep.subr.mxu0 0.0
    %1621 = vmatpush1.msra.mxu0 %v1514
    %1622 = vmatprep.subr.mxu0 0.0
    %1623 = vmatpush1.msra.mxu0 %v1515
    %1624 = vmatprep.subr.mxu0 0.0
    %1625 = vmatpush1.msra.mxu0 %v1516
    %1626 = vmatprep.subr.mxu0 0.0
    %1627 = vmatpush1.msra.mxu0 %v1517
    %1628 = vmatprep.subr.mxu0 0.0
    %1629 = vmatpush1.msra.mxu0 0.0
    %1630 = vmatprep.subr.mxu0 0.0
    %1631 = vmatpush1.msra.mxu0 0.0
    %1632 = vmatprep.subr.mxu0 0.0
    %1633 = vmatpush1.msra.mxu0 0.0
    %1634 = vmatprep.subr.mxu0 0.0
    %1635 = vmatpush1.msra.mxu0 0.0
    %1636 = vmatprep.subr.mxu0 0.0
    %1637 = vmatpush1.msra.mxu0 0.0
    %1638 = vmatprep.subr.mxu0 0.0
    %1639 = vmatpush1.msra.mxu0 0.0
    %1640 = vmatprep.subr.mxu0 0.0
    %1641 = vmatpush1.msra.mxu0 0.0
    %1642 = vmatprep.subr.mxu0 0.0
    %1643 = vmatpush1.msra.mxu0 0.0
    %1644 = vmatprep.subr.mxu0 0.0
    %1645 = vmatpush1.msra.mxu0 0.0
    %1646 = vmatprep.subr.mxu0 0.0
    %1647 = vmatpush1.msra.mxu0 0.0
    %1648 = vmatprep.subr.mxu0 0.0
    %1649 = vmatpush1.msra.mxu0 0.0
    %1650 = vmatprep.subr.mxu0 0.0
    %1651 = vmatpush1.msra.mxu0 0.0
    %1652 = vmatprep.subr.mxu0 0.0
    %1653 = vmatpush1.msra.mxu0 0.0
    %1654 = vmatprep.subr.mxu0 0.0
    %1655 = vmatpush1.msra.mxu0 0.0
    %1656 = vmatprep.subr.mxu0 0.0
    %1657 = vmatpush1.msra.mxu0 0.0
    %1658 = vmatprep.subr.mxu0 0.0
    %1659 = vmatpush1.msra.mxu0 0.0
    %1660 = vmatprep.subr.mxu0 0.0
    %1661 = vmatpush1.msra.mxu0 0.0
    %1662 = vmatprep.subr.mxu0 0.0
    %1663 = vmatpush1.msra.mxu0 0.0
    %1664 = vmatprep.subr.mxu0 0.0
    %1665 = vmatpush1.msra.mxu0 0.0
    %1666 = vmatprep.subr.mxu0 0.0
    %1667 = vmatpush1.msra.mxu0 0.0
    %1668 = vmatprep.subr.mxu0 0.0
    %1669 = vmatpush1.msra.mxu0 0.0
    %1670 = vmatprep.subr.mxu0 0.0
    %1671 = vmatpush1.msra.mxu0 0.0
    %1672 = vmatprep.subr.mxu0 0.0
    %1673 = vmatpush1.msra.mxu0 0.0
    %1674 = vmatprep.subr.mxu0 0.0
    %1675 = vmatpush1.msra.mxu0 0.0
    %1676 = vmatprep.subr.mxu0 0.0
    %1677 = vmatpush1.msra.mxu0 0.0
    %1678 = vmatprep.subr.mxu0 0.0
    %1679 = vmatpush1.msra.mxu0 0.0
    %1680 = vmatprep.subr.mxu0 0.0
    %1681 = vmatpush1.msra.mxu0 0.0
    %1682 = vmatprep.subr.mxu0 0.0
    %1683 = vmatpush1.msra.mxu0 0.0
    %1684 = vmatprep.mubr.f32.mxu0 0.0
    %1685 = vmatmul.mubr.f32.gmra.mrb[0].mxu0 %v1609
    %v1686 = vpop.f32.mrb[0].mxu0
    %v1687 = vadd.f32 0.0, %v1686
    %v1688 = vpop.f32.mrb[0].mxu0
    %1689 = vmatprep.mubr.f32.mxu0 0.0
    %1690 = vmatmul.mubr.f32.gmra.mrb[0].mxu0 %v1612
    %v1691 = vpop.f32.mrb[0].mxu0
    %v1692 = vadd.f32 0.0, %v1691
    %v1693 = vpop.f32.mrb[0].mxu0
    %1694 = vmatprep.mubr.f32.mxu0 0.0
    %1695 = vmatmul.mubr.f32.gmra.mrb[0].mxu0 %v1615
    %v1696 = vpop.f32.mrb[0].mxu0
    %v1697 = vadd.f32 0.0, %v1696
    %v1698 = vpop.f32.mrb[0].mxu0
    %1699 = vmatprep.mubr.f32.mxu0 0.0
    %1700 = vmatmul.mubr.f32.gmra.mrb[0].mxu0 %v1618
    %v1701 = vpop.f32.mrb[0].mxu0
    %v1702 = vadd.f32 0.0, %v1701
    %v1703 = vpop.f32.mrb[0].mxu0
    %1704 = vdwg.mxu0
    %v1706 = vsel %vm278, %v1600, 0
    %v1709 = vsel %vm278, %v1687, 0
    %v1712 = vsel %vm278, %v1692, 0
    %1714 = vmatprep.subr.mxu0 0.0
    %1715 = vmatpush1.xpose.msra.mxu0 %v1709
    %1716 = vmatprep.subr.mxu0 0.0
    %1717 = vmatpush1.xpose.msra.mxu0 %v1712
    %1718 = vmatprep.subr.mxu0 0.0
    %1719 = vmatpush1.xpose.msra.mxu0 0.0
    %1720 = vmatprep.subr.mxu0 0.0
    %1721 = vmatpush1.xpose.msra.mxu0 0.0
    %1722 = vmatprep.subr.mxu0 0.0
    %1723 = vmatpush1.xpose.msra.mxu0 0.0
    %1724 = vmatprep.subr.mxu0 0.0
    %1725 = vmatpush1.xpose.msra.mxu0 0.0
    %1726 = vmatprep.subr.mxu0 0.0
    %1727 = vmatpush1.xpose.msra.mxu0 0.0
    %1728 = vmatprep.subr.mxu0 0.0
    %1729 = vmatpush1.xpose.msra.mxu0 0.0
    %1730 = vmatprep.subr.mxu0 0.0
    %1731 = vmatpush1.xpose.msra.mxu0 0.0
    %1732 = vmatprep.subr.mxu0 0.0
    %1733 = vmatpush1.xpose.msra.mxu0 0.0
    %1734 = vmatprep.subr.mxu0 0.0
    %1735 = vmatpush1.xpose.msra.mxu0 0.0
    %1736 = vmatprep.subr.mxu0 0.0
    %1737 = vmatpush1.xpose.msra.mxu0 0.0
    %1738 = vmatprep.subr.mxu0 0.0
    %1739 = vmatpush1.xpose.msra.mxu0 0.0
    %1740 = vmatprep.subr.mxu0 0.0
    %1741 = vmatpush1.xpose.msra.mxu0 0.0
    %1742 = vmatprep.subr.mxu0 0.0
    %1743 = vmatpush1.xpose.msra.mxu0 0.0
    %1744 = vmatprep.subr.mxu0 0.0
    %1745 = vmatpush1.xpose.msra.mxu0 0.0
    %1746 = vmatprep.subr.mxu0 0.0
    %1747 = vmatpush1.xpose.msra.mxu0 0.0
    %1748 = vmatprep.subr.mxu0 0.0
    %1749 = vmatpush1.xpose.msra.mxu0 0.0
    %1750 = vmatprep.subr.mxu0 0.0
    %1751 = vmatpush1.xpose.msra.mxu0 0.0
    %1752 = vmatprep.subr.mxu0 0.0
    %1753 = vmatpush1.xpose.msra.mxu0 0.0
    %1754 = vmatprep.subr.mxu0 0.0
    %1755 = vmatpush1.xpose.msra.mxu0 0.0
    %1756 = vmatprep.subr.mxu0 0.0
    %1757 = vmatpush1.xpose.msra.mxu0 0.0
    %1758 = vmatprep.subr.mxu0 0.0
    %1759 = vmatpush1.xpose.msra.mxu0 0.0
    %1760 = vmatprep.subr.mxu0 0.0
    %1761 = vmatpush1.xpose.msra.mxu0 0.0
    %1762 = vmatprep.subr.mxu0 0.0
    %1763 = vmatpush1.xpose.msra.mxu0 0.0
    %1764 = vmatprep.subr.mxu0 0.0
    %1765 = vmatpush1.xpose.msra.mxu0 0.0
    %1766 = vmatprep.subr.mxu0 0.0
    %1767 = vmatpush1.xpose.msra.mxu0 0.0
    %1768 = vmatprep.subr.mxu0 0.0
    %1769 = vmatpush1.xpose.msra.mxu0 0.0
    %1770 = vmatprep.subr.mxu0 0.0
    %1771 = vmatpush1.xpose.msra.mxu0 0.0
    %1772 = vmatprep.subr.mxu0 0.0
    %1773 = vmatpush1.xpose.msra.mxu0 0.0
    %1774 = vmatprep.subr.mxu0 0.0
    %1775 = vmatpush1.xpose.msra.mxu0 0.0
    %1776 = vmatprep.subr.mxu0 0.0
    %1777 = vmatpush1.xpose.msra.mxu0 0.0
    %1778 = vmatprep.mubr.f32.mxu0 0.0
    %1779 = vmatmul.mubr.f32.gmra.mrb[0].mxu0 %v1706
    %v1780 = vpop.f32.mrb[0].mxu0
    %v1781 = vadd.f32 0.0, %v1780
    %v1782 = vpop.f32.mrb[0].mxu0
    %1783 = vdwg.mxu0
    %v1785 = vsel %vm278, %v1605, 0
    %v1788 = vsel %vm278, %v1697, 0
    %v1791 = vsel %vm278, %v1702, 0
    %1793 = vmatprep.subr.mxu0 0.0
    %1794 = vmatpush1.xpose.msra.mxu0 %v1788
    %1795 = vmatprep.subr.mxu0 0.0
    %1796 = vmatpush1.xpose.msra.mxu0 %v1791
    %1797 = vmatprep.subr.mxu0 0.0
    %1798 = vmatpush1.xpose.msra.mxu0 0.0
    %1799 = vmatprep.subr.mxu0 0.0
    %1800 = vmatpush1.xpose.msra.mxu0 0.0
    %1801 = vmatprep.subr.mxu0 0.0
    %1802 = vmatpush1.xpose.msra.mxu0 0.0
    %1803 = vmatprep.subr.mxu0 0.0
    %1804 = vmatpush1.xpose.msra.mxu0 0.0
    %1805 = vmatprep.subr.mxu0 0.0
    %1806 = vmatpush1.xpose.msra.mxu0 0.0
    %1807 = vmatprep.subr.mxu0 0.0
    %1808 = vmatpush1.xpose.msra.mxu0 0.0
    %1809 = vmatprep.subr.mxu0 0.0
    %1810 = vmatpush1.xpose.msra.mxu0 0.0
    %1811 = vmatprep.subr.mxu0 0.0
    %1812 = vmatpush1.xpose.msra.mxu0 0.0
    %1813 = vmatprep.subr.mxu0 0.0
    %1814 = vmatpush1.xpose.msra.mxu0 0.0
    %1815 = vmatprep.subr.mxu0 0.0
    %1816 = vmatpush1.xpose.msra.mxu0 0.0
    %1817 = vmatprep.subr.mxu0 0.0
    %1818 = vmatpush1.xpose.msra.mxu0 0.0
    %1819 = vmatprep.subr.mxu0 0.0
    %1820 = vmatpush1.xpose.msra.mxu0 0.0
    %1821 = vmatprep.subr.mxu0 0.0
    %1822 = vmatpush1.xpose.msra.mxu0 0.0
    %1823 = vmatprep.subr.mxu0 0.0
    %1824 = vmatpush1.xpose.msra.mxu0 0.0
    %1825 = vmatprep.subr.mxu0 0.0
    %1826 = vmatpush1.xpose.msra.mxu0 0.0
    %1827 = vmatprep.subr.mxu0 0.0
    %1828 = vmatpush1.xpose.msra.mxu0 0.0
    %1829 = vmatprep.subr.mxu0 0.0
    %1830 = vmatpush1.xpose.msra.mxu0 0.0
    %1831 = vmatprep.subr.mxu0 0.0
    %1832 = vmatpush1.xpose.msra.mxu0 0.0
    %1833 = vmatprep.subr.mxu0 0.0
    %1834 = vmatpush1.xpose.msra.mxu0 0.0
    %1835 = vmatprep.subr.mxu0 0.0
    %1836 = vmatpush1.xpose.msra.mxu0 0.0
    %1837 = vmatprep.subr.mxu0 0.0
    %1838 = vmatpush1.xpose.msra.mxu0 0.0
    %1839 = vmatprep.subr.mxu0 0.0
    %1840 = vmatpush1.xpose.msra.mxu0 0.0
    %1841 = vmatprep.subr.mxu0 0.0
    %1842 = vmatpush1.xpose.msra.mxu0 0.0
    %1843 = vmatprep.subr.mxu0 0.0
    %1844 = vmatpush1.xpose.msra.mxu0 0.0
    %1845 = vmatprep.subr.mxu0 0.0
    %1846 = vmatpush1.xpose.msra.mxu0 0.0
    %1847 = vmatprep.subr.mxu0 0.0
    %1848 = vmatpush1.xpose.msra.mxu0 0.0
    %1849 = vmatprep.subr.mxu0 0.0
    %1850 = vmatpush1.xpose.msra.mxu0 0.0
    %1851 = vmatprep.subr.mxu0 0.0
    %1852 = vmatpush1.xpose.msra.mxu0 0.0
    %1853 = vmatprep.subr.mxu0 0.0
    %1854 = vmatpush1.xpose.msra.mxu0 0.0
    %1855 = vmatprep.subr.mxu0 0.0
    %1856 = vmatpush1.xpose.msra.mxu0 0.0
    %1857 = vmatprep.mubr.f32.mxu0 0.0
    %1858 = vmatmul.mubr.f32.gmra.mrb[0].mxu0 %v1785
    %v1859 = vpop.f32.mrb[0].mxu0
    %v1860 = vadd.f32 0.0, %v1859
    %v1861 = vpop.f32.mrb[0].mxu0
    %1862 = vdwg.mxu0
    %v1863 = vmul.f32 %v1781, 0.25
    %v1864 = vmul.f32 %v1860, 0.25
    %v1865 = vsel %vm278, %v1863, -inf
    %1866 = vmax.xlane.f32.xlu0 %v1865
    %v1867 = vpop.xlane.xlu0 %1866
    %v1868 = vsel %vm278, %v1864, -inf
    %1869 = vmax.xlane.f32.xlu0 %v1868
    %v1870 = vpop.xlane.xlu0 %1869
    %v1871 = vsub.f32 %v1863, %v1867
    %v1872 = vsub.f32 %v1864, %v1870
    %v1873 = vmul.f32 %v1871, 1.442695
    %v1874 = vpow.pop %v1873
    %v1875 = vmul.f32 %v1872, 1.442695
    %v1876 = vpow.pop %v1875
    %v1877 = vsel %vm278, %v1874, 0.0
    %1878 = vadd.xlane.f32.xlu0 %v1877
    %v1879 = vpop.xlane.xlu0 %1878
    %v1880 = vsel %vm278, %v1876, 0.0
    %1881 = vadd.xlane.f32.xlu0 %v1880
    %v1882 = vpop.xlane.xlu0 %1881
    %v1883 = vrcp.pop %v1879
    %v1884 = vrcp.pop %v1882
    %v1885 = vmul.f32 %v1874, %v1883
    %v1886 = vmul.f32 %v1876, %v1884
    %1887 = vrot.lane.b32.xlu0 %v1687, 96
    %v1888 = vpop.permute.xlu0 %1887
    %1889 = vrot.lane.b32.xlu0 %v1692, 96
    %v1890 = vpop.permute.xlu0 %1889
    %v1894 = vsel %vm278, %v1885, 0
    %1896 = vmatprep.subr.mxu0 0.0
    %1897 = vmatpush1.msra.mxu0 %v1888
    %1898 = vmatprep.subr.mxu0 0.0
    %1899 = vmatpush1.msra.mxu0 %v1890
    %1900 = vmatprep.subr.mxu0 0.0
    %1901 = vmatpush1.msra.mxu0 0.0
    %1902 = vmatprep.subr.mxu0 0.0
    %1903 = vmatpush1.msra.mxu0 0.0
    %1904 = vmatprep.subr.mxu0 0.0
    %1905 = vmatpush1.msra.mxu0 0.0
    %1906 = vmatprep.subr.mxu0 0.0
    %1907 = vmatpush1.msra.mxu0 0.0
    %1908 = vmatprep.subr.mxu0 0.0
    %1909 = vmatpush1.msra.mxu0 0.0
    %1910 = vmatprep.subr.mxu0 0.0
    %1911 = vmatpush1.msra.mxu0 0.0
    %1912 = vmatprep.subr.mxu0 0.0
    %1913 = vmatpush1.msra.mxu0 0.0
    %1914 = vmatprep.subr.mxu0 0.0
    %1915 = vmatpush1.msra.mxu0 0.0
    %1916 = vmatprep.subr.mxu0 0.0
    %1917 = vmatpush1.msra.mxu0 0.0
    %1918 = vmatprep.subr.mxu0 0.0
    %1919 = vmatpush1.msra.mxu0 0.0
    %1920 = vmatprep.subr.mxu0 0.0
    %1921 = vmatpush1.msra.mxu0 0.0
    %1922 = vmatprep.subr.mxu0 0.0
    %1923 = vmatpush1.msra.mxu0 0.0
    %1924 = vmatprep.subr.mxu0 0.0
    %1925 = vmatpush1.msra.mxu0 0.0
    %1926 = vmatprep.subr.mxu0 0.0
    %1927 = vmatpush1.msra.mxu0 0.0
    %1928 = vmatprep.subr.mxu0 0.0
    %1929 = vmatpush1.msra.mxu0 0.0
    %1930 = vmatprep.subr.mxu0 0.0
    %1931 = vmatpush1.msra.mxu0 0.0
    %1932 = vmatprep.subr.mxu0 0.0
    %1933 = vmatpush1.msra.mxu0 0.0
    %1934 = vmatprep.subr.mxu0 0.0
    %1935 = vmatpush1.msra.mxu0 0.0
    %1936 = vmatprep.subr.mxu0 0.0
    %1937 = vmatpush1.msra.mxu0 0.0
    %1938 = vmatprep.subr.mxu0 0.0
    %1939 = vmatpush1.msra.mxu0 0.0
    %1940 = vmatprep.subr.mxu0 0.0
    %1941 = vmatpush1.msra.mxu0 0.0
    %1942 = vmatprep.subr.mxu0 0.0
    %1943 = vmatpush1.msra.mxu0 0.0
    %1944 = vmatprep.subr.mxu0 0.0
    %1945 = vmatpush1.msra.mxu0 0.0
    %1946 = vmatprep.subr.mxu0 0.0
    %1947 = vmatpush1.msra.mxu0 0.0
    %1948 = vmatprep.subr.mxu0 0.0
    %1949 = vmatpush1.msra.mxu0 0.0
    %1950 = vmatprep.subr.mxu0 0.0
    %1951 = vmatpush1.msra.mxu0 0.0
    %1952 = vmatprep.subr.mxu0 0.0
    %1953 = vmatpush1.msra.mxu0 0.0
    %1954 = vmatprep.subr.mxu0 0.0
    %1955 = vmatpush1.msra.mxu0 0.0
    %1956 = vmatprep.subr.mxu0 0.0
    %1957 = vmatpush1.msra.mxu0 0.0
    %1958 = vmatprep.subr.mxu0 0.0
    %1959 = vmatpush1.msra.mxu0 0.0
    %1960 = vmatprep.mubr.f32.mxu0 0.0
    %1961 = vmatmul.mubr.f32.gmra.mrb[0].mxu0 %v1894
    %v1962 = vpop.f32.mrb[0].mxu0
    %v1963 = vadd.f32 0.0, %v1962
    %v1964 = vpop.f32.mrb[0].mxu0
    %1965 = vdwg.mxu0
    %1966 = vrot.lane.b32.xlu0 %v1697, 96
    %v1967 = vpop.permute.xlu0 %1966
    %1968 = vrot.lane.b32.xlu0 %v1702, 96
    %v1969 = vpop.permute.xlu0 %1968
    %v1973 = vsel %vm278, %v1886, 0
    %1975 = vmatprep.subr.mxu0 0.0
    %1976 = vmatpush1.msra.mxu0 %v1967
    %1977 = vmatprep.subr.mxu0 0.0
    %1978 = vmatpush1.msra.mxu0 %v1969
    %1979 = vmatprep.subr.mxu0 0.0
    %1980 = vmatpush1.msra.mxu0 0.0
    %1981 = vmatprep.subr.mxu0 0.0
    %1982 = vmatpush1.msra.mxu0 0.0
    %1983 = vmatprep.subr.mxu0 0.0
    %1984 = vmatpush1.msra.mxu0 0.0
    %1985 = vmatprep.subr.mxu0 0.0
    %1986 = vmatpush1.msra.mxu0 0.0
    %1987 = vmatprep.subr.mxu0 0.0
    %1988 = vmatpush1.msra.mxu0 0.0
    %1989 = vmatprep.subr.mxu0 0.0
    %1990 = vmatpush1.msra.mxu0 0.0
    %1991 = vmatprep.subr.mxu0 0.0
    %1992 = vmatpush1.msra.mxu0 0.0
    %1993 = vmatprep.subr.mxu0 0.0
    %1994 = vmatpush1.msra.mxu0 0.0
    %1995 = vmatprep.subr.mxu0 0.0
    %1996 = vmatpush1.msra.mxu0 0.0
    %1997 = vmatprep.subr.mxu0 0.0
    %1998 = vmatpush1.msra.mxu0 0.0
    %1999 = vmatprep.subr.mxu0 0.0
    %2000 = vmatpush1.msra.mxu0 0.0
    %2001 = vmatprep.subr.mxu0 0.0
    %2002 = vmatpush1.msra.mxu0 0.0
    %2003 = vmatprep.subr.mxu0 0.0
    %2004 = vmatpush1.msra.mxu0 0.0
    %2005 = vmatprep.subr.mxu0 0.0
    %2006 = vmatpush1.msra.mxu0 0.0
    %2007 = vmatprep.subr.mxu0 0.0
    %2008 = vmatpush1.msra.mxu0 0.0
    %2009 = vmatprep.subr.mxu0 0.0
    %2010 = vmatpush1.msra.mxu0 0.0
    %2011 = vmatprep.subr.mxu0 0.0
    %2012 = vmatpush1.msra.mxu0 0.0
    %2013 = vmatprep.subr.mxu0 0.0
    %2014 = vmatpush1.msra.mxu0 0.0
    %2015 = vmatprep.subr.mxu0 0.0
    %2016 = vmatpush1.msra.mxu0 0.0
    %2017 = vmatprep.subr.mxu0 0.0
    %2018 = vmatpush1.msra.mxu0 0.0
    %2019 = vmatprep.subr.mxu0 0.0
    %2020 = vmatpush1.msra.mxu0 0.0
    %2021 = vmatprep.subr.mxu0 0.0
    %2022 = vmatpush1.msra.mxu0 0.0
    %2023 = vmatprep.subr.mxu0 0.0
    %2024 = vmatpush1.msra.mxu0 0.0
    %2025 = vmatprep.subr.mxu0 0.0
    %2026 = vmatpush1.msra.mxu0 0.0
    %2027 = vmatprep.subr.mxu0 0.0
    %2028 = vmatpush1.msra.mxu0 0.0
    %2029 = vmatprep.subr.mxu0 0.0
    %2030 = vmatpush1.msra.mxu0 0.0
    %2031 = vmatprep.subr.mxu0 0.0
    %2032 = vmatpush1.msra.mxu0 0.0
    %2033 = vmatprep.subr.mxu0 0.0
    %2034 = vmatpush1.msra.mxu0 0.0
    %2035 = vmatprep.subr.mxu0 0.0
    %2036 = vmatpush1.msra.mxu0 0.0
    %2037 = vmatprep.subr.mxu0 0.0
    %2038 = vmatpush1.msra.mxu0 0.0
    %2039 = vmatprep.mubr.f32.mxu0 0.0
    %2040 = vmatmul.mubr.f32.gmra.mrb[0].mxu0 %v1973
    %v2041 = vpop.f32.mrb[0].mxu0
    %v2042 = vadd.f32 0.0, %v2041
    %v2043 = vpop.f32.mrb[0].mxu0
    %2044 = vdwg.mxu0
    %2045 = vrot.lane.b32.xlu0 %v1600, 112
    %v2046 = vpop.permute.xlu0 %2045
    %2047 = vrot.lane.b32.xlu0 %v1687, 112
    %v2048 = vpop.permute.xlu0 %2047
    %2049 = vrot.lane.b32.xlu0 %v1692, 112
    %v2050 = vpop.permute.xlu0 %2049
    %v2051 = vsel %vm278, %v2046, 0
    %v2053 = vsel %vm278, %v2048, 0
    %v2055 = vsel %vm278, %v2050, 0
    %2057 = vmatprep.subr.mxu0 0.0
    %2058 = vmatpush1.xpose.msra.mxu0 %v2053
    %2059 = vmatprep.subr.mxu0 0.0
    %2060 = vmatpush1.xpose.msra.mxu0 %v2055
    %2061 = vmatprep.subr.mxu0 0.0
    %2062 = vmatpush1.xpose.msra.mxu0 0.0
    %2063 = vmatprep.subr.mxu0 0.0
    %2064 = vmatpush1.xpose.msra.mxu0 0.0
    %2065 = vmatprep.subr.mxu0 0.0
    %2066 = vmatpush1.xpose.msra.mxu0 0.0
    %2067 = vmatprep.subr.mxu0 0.0
    %2068 = vmatpush1.xpose.msra.mxu0 0.0
    %2069 = vmatprep.subr.mxu0 0.0
    %2070 = vmatpush1.xpose.msra.mxu0 0.0
    %2071 = vmatprep.subr.mxu0 0.0
    %2072 = vmatpush1.xpose.msra.mxu0 0.0
    %2073 = vmatprep.subr.mxu0 0.0
    %2074 = vmatpush1.xpose.msra.mxu0 0.0
    %2075 = vmatprep.subr.mxu0 0.0
    %2076 = vmatpush1.xpose.msra.mxu0 0.0
    %2077 = vmatprep.subr.mxu0 0.0
    %2078 = vmatpush1.xpose.msra.mxu0 0.0
    %2079 = vmatprep.subr.mxu0 0.0
    %2080 = vmatpush1.xpose.msra.mxu0 0.0
    %2081 = vmatprep.subr.mxu0 0.0
    %2082 = vmatpush1.xpose.msra.mxu0 0.0
    %2083 = vmatprep.subr.mxu0 0.0
    %2084 = vmatpush1.xpose.msra.mxu0 0.0
    %2085 = vmatprep.subr.mxu0 0.0
    %2086 = vmatpush1.xpose.msra.mxu0 0.0
    %2087 = vmatprep.subr.mxu0 0.0
    %2088 = vmatpush1.xpose.msra.mxu0 0.0
    %2089 = vmatprep.subr.mxu0 0.0
    %2090 = vmatpush1.xpose.msra.mxu0 0.0
    %2091 = vmatprep.subr.mxu0 0.0
    %2092 = vmatpush1.xpose.msra.mxu0 0.0
    %2093 = vmatprep.subr.mxu0 0.0
    %2094 = vmatpush1.xpose.msra.mxu0 0.0
    %2095 = vmatprep.subr.mxu0 0.0
    %2096 = vmatpush1.xpose.msra.mxu0 0.0
    %2097 = vmatprep.subr.mxu0 0.0
    %2098 = vmatpush1.xpose.msra.mxu0 0.0
    %2099 = vmatprep.subr.mxu0 0.0
    %2100 = vmatpush1.xpose.msra.mxu0 0.0
    %2101 = vmatprep.subr.mxu0 0.0
    %2102 = vmatpush1.xpose.msra.mxu0 0.0
    %2103 = vmatprep.subr.mxu0 0.0
    %2104 = vmatpush1.xpose.msra.mxu0 0.0
    %2105 = vmatprep.subr.mxu0 0.0
    %2106 = vmatpush1.xpose.msra.mxu0 0.0
    %2107 = vmatprep.subr.mxu0 0.0
    %2108 = vmatpush1.xpose.msra.mxu0 0.0
    %2109 = vmatprep.subr.mxu0 0.0
    %2110 = vmatpush1.xpose.msra.mxu0 0.0
    %2111 = vmatprep.subr.mxu0 0.0
    %2112 = vmatpush1.xpose.msra.mxu0 0.0
    %2113 = vmatprep.subr.mxu0 0.0
    %2114 = vmatpush1.xpose.msra.mxu0 0.0
    %2115 = vmatprep.subr.mxu0 0.0
    %2116 = vmatpush1.xpose.msra.mxu0 0.0
    %2117 = vmatprep.subr.mxu0 0.0
    %2118 = vmatpush1.xpose.msra.mxu0 0.0
    %2119 = vmatprep.subr.mxu0 0.0
    %2120 = vmatpush1.xpose.msra.mxu0 0.0
    %2121 = vmatprep.mubr.f32.mxu0 0.0
    %2122 = vmatmul.mubr.f32.gmra.mrb[0].mxu0 %v2051
    %v2123 = vpop.f32.mrb[0].mxu0
    %v2124 = vadd.f32 0.0, %v2123
    %v2125 = vpop.f32.mrb[0].mxu0
    %2126 = vdwg.mxu0
    %2127 = vrot.lane.b32.xlu0 %v1605, 112
    %v2128 = vpop.permute.xlu0 %2127
    %2129 = vrot.lane.b32.xlu0 %v1697, 112
    %v2130 = vpop.permute.xlu0 %2129
    %2131 = vrot.lane.b32.xlu0 %v1702, 112
    %v2132 = vpop.permute.xlu0 %2131
    %v2133 = vsel %vm278, %v2128, 0
    %v2135 = vsel %vm278, %v2130, 0
    %v2137 = vsel %vm278, %v2132, 0
    %2139 = vmatprep.subr.mxu0 0.0
    %2140 = vmatpush1.xpose.msra.mxu0 %v2135
    %2141 = vmatprep.subr.mxu0 0.0
    %2142 = vmatpush1.xpose.msra.mxu0 %v2137
    %2143 = vmatprep.subr.mxu0 0.0
    %2144 = vmatpush1.xpose.msra.mxu0 0.0
    %2145 = vmatprep.subr.mxu0 0.0
    %2146 = vmatpush1.xpose.msra.mxu0 0.0
    %2147 = vmatprep.subr.mxu0 0.0
    %2148 = vmatpush1.xpose.msra.mxu0 0.0
    %2149 = vmatprep.subr.mxu0 0.0
    %2150 = vmatpush1.xpose.msra.mxu0 0.0
    %2151 = vmatprep.subr.mxu0 0.0
    %2152 = vmatpush1.xpose.msra.mxu0 0.0
    %2153 = vmatprep.subr.mxu0 0.0
    %2154 = vmatpush1.xpose.msra.mxu0 0.0
    %2155 = vmatprep.subr.mxu0 0.0
    %2156 = vmatpush1.xpose.msra.mxu0 0.0
    %2157 = vmatprep.subr.mxu0 0.0
    %2158 = vmatpush1.xpose.msra.mxu0 0.0
    %2159 = vmatprep.subr.mxu0 0.0
    %2160 = vmatpush1.xpose.msra.mxu0 0.0
    %2161 = vmatprep.subr.mxu0 0.0
    %2162 = vmatpush1.xpose.msra.mxu0 0.0
    %2163 = vmatprep.subr.mxu0 0.0
    %2164 = vmatpush1.xpose.msra.mxu0 0.0
    %2165 = vmatprep.subr.mxu0 0.0
    %2166 = vmatpush1.xpose.msra.mxu0 0.0
    %2167 = vmatprep.subr.mxu0 0.0
    %2168 = vmatpush1.xpose.msra.mxu0 0.0
    %2169 = vmatprep.subr.mxu0 0.0
    %2170 = vmatpush1.xpose.msra.mxu0 0.0
    %2171 = vmatprep.subr.mxu0 0.0
    %2172 = vmatpush1.xpose.msra.mxu0 0.0
    %2173 = vmatprep.subr.mxu0 0.0
    %2174 = vmatpush1.xpose.msra.mxu0 0.0
    %2175 = vmatprep.subr.mxu0 0.0
    %2176 = vmatpush1.xpose.msra.mxu0 0.0
    %2177 = vmatprep.subr.mxu0 0.0
    %2178 = vmatpush1.xpose.msra.mxu0 0.0
    %2179 = vmatprep.subr.mxu0 0.0
    %2180 = vmatpush1.xpose.msra.mxu0 0.0
    %2181 = vmatprep.subr.mxu0 0.0
    %2182 = vmatpush1.xpose.msra.mxu0 0.0
    %2183 = vmatprep.subr.mxu0 0.0
    %2184 = vmatpush1.xpose.msra.mxu0 0.0
    %2185 = vmatprep.subr.mxu0 0.0
    %2186 = vmatpush1.xpose.msra.mxu0 0.0
    %2187 = vmatprep.subr.mxu0 0.0
    %2188 = vmatpush1.xpose.msra.mxu0 0.0
    %2189 = vmatprep.subr.mxu0 0.0
    %2190 = vmatpush1.xpose.msra.mxu0 0.0
    %2191 = vmatprep.subr.mxu0 0.0
    %2192 = vmatpush1.xpose.msra.mxu0 0.0
    %2193 = vmatprep.subr.mxu0 0.0
    %2194 = vmatpush1.xpose.msra.mxu0 0.0
    %2195 = vmatprep.subr.mxu0 0.0
    %2196 = vmatpush1.xpose.msra.mxu0 0.0
    %2197 = vmatprep.subr.mxu0 0.0
    %2198 = vmatpush1.xpose.msra.mxu0 0.0
    %2199 = vmatprep.subr.mxu0 0.0
    %2200 = vmatpush1.xpose.msra.mxu0 0.0
    %2201 = vmatprep.subr.mxu0 0.0
    %2202 = vmatpush1.xpose.msra.mxu0 0.0
    %2203 = vmatprep.mubr.f32.mxu0 0.0
    %2204 = vmatmul.mubr.f32.gmra.mrb[0].mxu0 %v2133
    %v2205 = vpop.f32.mrb[0].mxu0
    %v2206 = vadd.f32 0.0, %v2205
    %v2207 = vpop.f32.mrb[0].mxu0
    %2208 = vdwg.mxu0
    %v2209 = vmul.f32 %v2124, 0.25
    %v2210 = vmul.f32 %v2206, 0.25
    %v2211 = vsel %vm278, %v2209, -inf
    %2212 = vmax.xlane.f32.xlu0 %v2211
    %v2213 = vpop.xlane.xlu0 %2212
    %v2214 = vsel %vm278, %v2210, -inf
    %2215 = vmax.xlane.f32.xlu0 %v2214
    %v2216 = vpop.xlane.xlu0 %2215
    %v2217 = vsub.f32 %v2209, %v2213
    %v2218 = vsub.f32 %v2210, %v2216
    %v2219 = vmul.f32 %v2217, 1.442695
    %v2220 = vpow.pop %v2219
    %v2221 = vmul.f32 %v2218, 1.442695
    %v2222 = vpow.pop %v2221
    %v2223 = vsel %vm278, %v2220, 0.0
    %2224 = vadd.xlane.f32.xlu0 %v2223
    %v2225 = vpop.xlane.xlu0 %2224
    %v2226 = vsel %vm278, %v2222, 0.0
    %2227 = vadd.xlane.f32.xlu0 %v2226
    %v2228 = vpop.xlane.xlu0 %2227
    %v2229 = vrcp.pop %v2225
    %v2230 = vrcp.pop %v2228
    %v2231 = vmul.f32 %v2220, %v2229
    %v2232 = vmul.f32 %v2222, %v2230
    %2233 = vrot.lane.b32.xlu0 %v1687, 80
    %v2234 = vpop.permute.xlu0 %2233
    %2235 = vrot.lane.b32.xlu0 %v1692, 80
    %v2236 = vpop.permute.xlu0 %2235
    %v2240 = vsel %vm278, %v2231, 0
    %2242 = vmatprep.subr.mxu0 0.0
    %2243 = vmatpush1.msra.mxu0 %v2234
    %2244 = vmatprep.subr.mxu0 0.0
    %2245 = vmatpush1.msra.mxu0 %v2236
    %2246 = vmatprep.subr.mxu0 0.0
    %2247 = vmatpush1.msra.mxu0 0.0
    %2248 = vmatprep.subr.mxu0 0.0
    %2249 = vmatpush1.msra.mxu0 0.0
    %2250 = vmatprep.subr.mxu0 0.0
    %2251 = vmatpush1.msra.mxu0 0.0
    %2252 = vmatprep.subr.mxu0 0.0
    %2253 = vmatpush1.msra.mxu0 0.0
    %2254 = vmatprep.subr.mxu0 0.0
    %2255 = vmatpush1.msra.mxu0 0.0
    %2256 = vmatprep.subr.mxu0 0.0
    %2257 = vmatpush1.msra.mxu0 0.0
    %2258 = vmatprep.subr.mxu0 0.0
    %2259 = vmatpush1.msra.mxu0 0.0
    %2260 = vmatprep.subr.mxu0 0.0
    %2261 = vmatpush1.msra.mxu0 0.0
    %2262 = vmatprep.subr.mxu0 0.0
    %2263 = vmatpush1.msra.mxu0 0.0
    %2264 = vmatprep.subr.mxu0 0.0
    %2265 = vmatpush1.msra.mxu0 0.0
    %2266 = vmatprep.subr.mxu0 0.0
    %2267 = vmatpush1.msra.mxu0 0.0
    %2268 = vmatprep.subr.mxu0 0.0
    %2269 = vmatpush1.msra.mxu0 0.0
    %2270 = vmatprep.subr.mxu0 0.0
    %2271 = vmatpush1.msra.mxu0 0.0
    %2272 = vmatprep.subr.mxu0 0.0
    %2273 = vmatpush1.msra.mxu0 0.0
    %2274 = vmatprep.subr.mxu0 0.0
    %2275 = vmatpush1.msra.mxu0 0.0
    %2276 = vmatprep.subr.mxu0 0.0
    %2277 = vmatpush1.msra.mxu0 0.0
    %2278 = vmatprep.subr.mxu0 0.0
    %2279 = vmatpush1.msra.mxu0 0.0
    %2280 = vmatprep.subr.mxu0 0.0
    %2281 = vmatpush1.msra.mxu0 0.0
    %2282 = vmatprep.subr.mxu0 0.0
    %2283 = vmatpush1.msra.mxu0 0.0
    %2284 = vmatprep.subr.mxu0 0.0
    %2285 = vmatpush1.msra.mxu0 0.0
    %2286 = vmatprep.subr.mxu0 0.0
    %2287 = vmatpush1.msra.mxu0 0.0
    %2288 = vmatprep.subr.mxu0 0.0
    %2289 = vmatpush1.msra.mxu0 0.0
    %2290 = vmatprep.subr.mxu0 0.0
    %2291 = vmatpush1.msra.mxu0 0.0
    %2292 = vmatprep.subr.mxu0 0.0
    %2293 = vmatpush1.msra.mxu0 0.0
    %2294 = vmatprep.subr.mxu0 0.0
    %2295 = vmatpush1.msra.mxu0 0.0
    %2296 = vmatprep.subr.mxu0 0.0
    %2297 = vmatpush1.msra.mxu0 0.0
    %2298 = vmatprep.subr.mxu0 0.0
    %2299 = vmatpush1.msra.mxu0 0.0
    %2300 = vmatprep.subr.mxu0 0.0
    %2301 = vmatpush1.msra.mxu0 0.0
    %2302 = vmatprep.subr.mxu0 0.0
    %2303 = vmatpush1.msra.mxu0 0.0
    %2304 = vmatprep.subr.mxu0 0.0
    %2305 = vmatpush1.msra.mxu0 0.0
    %2306 = vmatprep.mubr.f32.mxu0 0.0
    %2307 = vmatmul.mubr.f32.gmra.mrb[0].mxu0 %v2240
    %v2308 = vpop.f32.mrb[0].mxu0
    %v2309 = vadd.f32 0.0, %v2308
    %v2310 = vpop.f32.mrb[0].mxu0
    %2311 = vdwg.mxu0
    %2312 = vrot.lane.b32.xlu0 %v1697, 80
    %v2313 = vpop.permute.xlu0 %2312
    %2314 = vrot.lane.b32.xlu0 %v1702, 80
    %v2315 = vpop.permute.xlu0 %2314
    %v2319 = vsel %vm278, %v2232, 0
    %2321 = vmatprep.subr.mxu0 0.0
    %2322 = vmatpush1.msra.mxu0 %v2313
    %2323 = vmatprep.subr.mxu0 0.0
    %2324 = vmatpush1.msra.mxu0 %v2315
    %2325 = vmatprep.subr.mxu0 0.0
    %2326 = vmatpush1.msra.mxu0 0.0
    %2327 = vmatprep.subr.mxu0 0.0
    %2328 = vmatpush1.msra.mxu0 0.0
    %2329 = vmatprep.subr.mxu0 0.0
    %2330 = vmatpush1.msra.mxu0 0.0
    %2331 = vmatprep.subr.mxu0 0.0
    %2332 = vmatpush1.msra.mxu0 0.0
    %2333 = vmatprep.subr.mxu0 0.0
    %2334 = vmatpush1.msra.mxu0 0.0
    %2335 = vmatprep.subr.mxu0 0.0
    %2336 = vmatpush1.msra.mxu0 0.0
    %2337 = vmatprep.subr.mxu0 0.0
    %2338 = vmatpush1.msra.mxu0 0.0
    %2339 = vmatprep.subr.mxu0 0.0
    %2340 = vmatpush1.msra.mxu0 0.0
    %2341 = vmatprep.subr.mxu0 0.0
    %2342 = vmatpush1.msra.mxu0 0.0
    %2343 = vmatprep.subr.mxu0 0.0
    %2344 = vmatpush1.msra.mxu0 0.0
    %2345 = vmatprep.subr.mxu0 0.0
    %2346 = vmatpush1.msra.mxu0 0.0
    %2347 = vmatprep.subr.mxu0 0.0
    %2348 = vmatpush1.msra.mxu0 0.0
    %2349 = vmatprep.subr.mxu0 0.0
    %2350 = vmatpush1.msra.mxu0 0.0
    %2351 = vmatprep.subr.mxu0 0.0
    %2352 = vmatpush1.msra.mxu0 0.0
    %2353 = vmatprep.subr.mxu0 0.0
    %2354 = vmatpush1.msra.mxu0 0.0
    %2355 = vmatprep.subr.mxu0 0.0
    %2356 = vmatpush1.msra.mxu0 0.0
    %2357 = vmatprep.subr.mxu0 0.0
    %2358 = vmatpush1.msra.mxu0 0.0
    %2359 = vmatprep.subr.mxu0 0.0
    %2360 = vmatpush1.msra.mxu0 0.0
    %2361 = vmatprep.subr.mxu0 0.0
    %2362 = vmatpush1.msra.mxu0 0.0
    %2363 = vmatprep.subr.mxu0 0.0
    %2364 = vmatpush1.msra.mxu0 0.0
    %2365 = vmatprep.subr.mxu0 0.0
    %2366 = vmatpush1.msra.mxu0 0.0
    %2367 = vmatprep.subr.mxu0 0.0
    %2368 = vmatpush1.msra.mxu0 0.0
    %2369 = vmatprep.subr.mxu0 0.0
    %2370 = vmatpush1.msra.mxu0 0.0
    %2371 = vmatprep.subr.mxu0 0.0
    %2372 = vmatpush1.msra.mxu0 0.0
    %2373 = vmatprep.subr.mxu0 0.0
    %2374 = vmatpush1.msra.mxu0 0.0
    %2375 = vmatprep.subr.mxu0 0.0
    %2376 = vmatpush1.msra.mxu0 0.0
    %2377 = vmatprep.subr.mxu0 0.0
    %2378 = vmatpush1.msra.mxu0 0.0
    %2379 = vmatprep.subr.mxu0 0.0
    %2380 = vmatpush1.msra.mxu0 0.0
    %2381 = vmatprep.subr.mxu0 0.0
    %2382 = vmatpush1.msra.mxu0 0.0
    %2383 = vmatprep.subr.mxu0 0.0
    %2384 = vmatpush1.msra.mxu0 0.0
    %2385 = vmatprep.mubr.f32.mxu0 0.0
    %2386 = vmatmul.mubr.f32.gmra.mrb[0].mxu0 %v2319
    %v2387 = vpop.f32.mrb[0].mxu0
    %v2388 = vadd.f32 0.0, %v2387
    %v2389 = vpop.f32.mrb[0].mxu0
    %2390 = vdwg.mxu0
    %2393 = vrot.lane.b32.xlu0 %v2309, 16
    %v2394 = vpop.permute.xlu0 %2393
    %2395 = vrot.lane.b32.xlu0 %v2388, 16
    %v2396 = vpop.permute.xlu0 %2395
    %v2399 = vsel %vm278, %v1963, %v2394
    %v2400 = vsel %vm278, %v2042, %v2396
    %v2402 = vsel %vm115, %v2399, 0
    %v2405 = vsel %vm115, %v2400, 0
    %2407 = vmatprep.subr.mxu0 0.0
    %2408 = vmatpush1.msra.mxu0 %v1519
    %2409 = vmatprep.subr.mxu0 0.0
    %2410 = vmatpush1.msra.mxu0 %v1520
    %2411 = vmatprep.subr.mxu0 0.0
    %2412 = vmatpush1.msra.mxu0 %v1521
    %2413 = vmatprep.subr.mxu0 0.0
    %2414 = vmatpush1.msra.mxu0 %v1522
    %2415 = vmatprep.subr.mxu0 0.0
    %2416 = vmatpush1.msra.mxu0 0.0
    %2417 = vmatprep.subr.mxu0 0.0
    %2418 = vmatpush1.msra.mxu0 0.0
    %2419 = vmatprep.subr.mxu0 0.0
    %2420 = vmatpush1.msra.mxu0 0.0
    %2421 = vmatprep.subr.mxu0 0.0
    %2422 = vmatpush1.msra.mxu0 0.0
    %2423 = vmatprep.subr.mxu0 0.0
    %2424 = vmatpush1.msra.mxu0 0.0
    %2425 = vmatprep.subr.mxu0 0.0
    %2426 = vmatpush1.msra.mxu0 0.0
    %2427 = vmatprep.subr.mxu0 0.0
    %2428 = vmatpush1.msra.mxu0 0.0
    %2429 = vmatprep.subr.mxu0 0.0
    %2430 = vmatpush1.msra.mxu0 0.0
    %2431 = vmatprep.subr.mxu0 0.0
    %2432 = vmatpush1.msra.mxu0 0.0
    %2433 = vmatprep.subr.mxu0 0.0
    %2434 = vmatpush1.msra.mxu0 0.0
    %2435 = vmatprep.subr.mxu0 0.0
    %2436 = vmatpush1.msra.mxu0 0.0
    %2437 = vmatprep.subr.mxu0 0.0
    %2438 = vmatpush1.msra.mxu0 0.0
    %2439 = vmatprep.subr.mxu0 0.0
    %2440 = vmatpush1.msra.mxu0 0.0
    %2441 = vmatprep.subr.mxu0 0.0
    %2442 = vmatpush1.msra.mxu0 0.0
    %2443 = vmatprep.subr.mxu0 0.0
    %2444 = vmatpush1.msra.mxu0 0.0
    %2445 = vmatprep.subr.mxu0 0.0
    %2446 = vmatpush1.msra.mxu0 0.0
    %2447 = vmatprep.subr.mxu0 0.0
    %2448 = vmatpush1.msra.mxu0 0.0
    %2449 = vmatprep.subr.mxu0 0.0
    %2450 = vmatpush1.msra.mxu0 0.0
    %2451 = vmatprep.subr.mxu0 0.0
    %2452 = vmatpush1.msra.mxu0 0.0
    %2453 = vmatprep.subr.mxu0 0.0
    %2454 = vmatpush1.msra.mxu0 0.0
    %2455 = vmatprep.subr.mxu0 0.0
    %2456 = vmatpush1.msra.mxu0 0.0
    %2457 = vmatprep.subr.mxu0 0.0
    %2458 = vmatpush1.msra.mxu0 0.0
    %2459 = vmatprep.subr.mxu0 0.0
    %2460 = vmatpush1.msra.mxu0 0.0
    %2461 = vmatprep.subr.mxu0 0.0
    %2462 = vmatpush1.msra.mxu0 0.0
    %2463 = vmatprep.subr.mxu0 0.0
    %2464 = vmatpush1.msra.mxu0 0.0
    %2465 = vmatprep.subr.mxu0 0.0
    %2466 = vmatpush1.msra.mxu0 0.0
    %2467 = vmatprep.subr.mxu0 0.0
    %2468 = vmatpush1.msra.mxu0 0.0
    %2469 = vmatprep.subr.mxu0 0.0
    %2470 = vmatpush1.msra.mxu0 0.0
    %2471 = vmatprep.mubr.f32.mxu0 0.0
    %2472 = vmatmul.mubr.f32.gmra.mrb[0].mxu0 %v2402
    %v2473 = vpop.f32.mrb[0].mxu0
    %v2474 = vadd.f32 0.0, %v2473
    %v2475 = vpop.f32.mrb[0].mxu0
    %2476 = vmatprep.mubr.f32.mxu0 0.0
    %2477 = vmatmul.mubr.f32.gmra.mrb[0].mxu0 %v2405
    %v2478 = vpop.f32.mrb[0].mxu0
    %v2479 = vadd.f32 0.0, %v2478
    %v2480 = vpop.f32.mrb[0].mxu0
    %2481 = vdwg.mxu0
    %v2482 = vadd.f32 %v2474, %v92
    %v2483 = vadd.f32 %v2479, %v93
    %v2484 = vsel %vm115, %v2482, 0.0
    %2485 = vadd.xlane.f32.xlu0 %v2484
    %v2486 = vpop.xlane.xlu0 %2485
    %v2487 = vsel %vm115, %v2483, 0.0
    %2488 = vadd.xlane.f32.xlu0 %v2487
    %v2489 = vpop.xlane.xlu0 %2488
    %v2490 = vmul.f32 %v2486, %v1173
    %v2491 = vmul.f32 %v2489, %v1173
    %v2492 = vsub.f32 %v2482, %v2490
    %v2493 = vsub.f32 %v2483, %v2491
    %v2494 = vmul.f32 %v2492, %v2492
    %v2495 = vmul.f32 %v2493, %v2493
    %v2496 = vsel %vm115, %v2494, 0.0
    %2497 = vadd.xlane.f32.xlu0 %v2496
    %v2498 = vpop.xlane.xlu0 %2497
    %v2499 = vsel %vm115, %v2495, 0.0
    %2500 = vadd.xlane.f32.xlu0 %v2499
    %v2501 = vpop.xlane.xlu0 %2500
    %v2502 = vmul.f32 %v2498, %v1173
    %v2503 = vmul.f32 %v2501, %v1173
    %v2504 = vadd.f32 %v2502, 1e-05
    %v2505 = vadd.f32 %v2503, 1e-05
    %v2506 = vrsqrt.pop %v2504
    %v2507 = vrsqrt.pop %v2505
    %v2508 = vmul.f32 %v2492, %v2506
    %v2509 = vmul.f32 %v2493, %v2507
    %v2510 = vlaneseq
    %v2511 = vshrl.u32 %v2510, 7
    %v2512 = vsub.s32 0, %v2511
    %v2513 = vrot.slane %v1532, %v2512
    %v2514 = vmul.f32 %v2508, %v2513
    %v2515 = vmul.f32 %v2509, %v2513
    %v2516 = vlaneseq
    %v2517 = vshrl.u32 %v2516, 7
    %v2518 = vsub.s32 1, %v2517
    %v2519 = vrot.slane %v1532, %v2518
    %v2520 = vadd.f32 %v2514, %v2519
    %v2521 = vadd.f32 %v2515, %v2519
    %v2522 = vlaneseq
    %v2523 = vshrl.u32 %v2522, 7
    %v2524 = vsub.s32 5, %v2523
    %v2525 = vrot.slane %v1532, %v2524
    %v2527 = vsel %vm115, %v2520, 0
    %v2530 = vsel %vm115, %v2521, 0
    %2532 = vmatprep.subr.mxu0 0.0
    %2533 = vmatpush1.msra.mxu0 %v1524
    %2534 = vmatprep.subr.mxu0 0.0
    %2535 = vmatpush1.msra.mxu0 %v1525
    %2536 = vmatprep.subr.mxu0 0.0
    %2537 = vmatpush1.msra.mxu0 %v1526
    %2538 = vmatprep.subr.mxu0 0.0
    %2539 = vmatpush1.msra.mxu0 %v1527
    %2540 = vmatprep.subr.mxu0 0.0
    %2541 = vmatpush1.msra.mxu0 0.0
    %2542 = vmatprep.subr.mxu0 0.0
    %2543 = vmatpush1.msra.mxu0 0.0
    %2544 = vmatprep.subr.mxu0 0.0
    %2545 = vmatpush1.msra.mxu0 0.0
    %2546 = vmatprep.subr.mxu0 0.0
    %2547 = vmatpush1.msra.mxu0 0.0
    %2548 = vmatprep.subr.mxu0 0.0
    %2549 = vmatpush1.msra.mxu0 0.0
    %2550 = vmatprep.subr.mxu0 0.0
    %2551 = vmatpush1.msra.mxu0 0.0
    %2552 = vmatprep.subr.mxu0 0.0
    %2553 = vmatpush1.msra.mxu0 0.0
    %2554 = vmatprep.subr.mxu0 0.0
    %2555 = vmatpush1.msra.mxu0 0.0
    %2556 = vmatprep.subr.mxu0 0.0
    %2557 = vmatpush1.msra.mxu0 0.0
    %2558 = vmatprep.subr.mxu0 0.0
    %2559 = vmatpush1.msra.mxu0 0.0
    %2560 = vmatprep.subr.mxu0 0.0
    %2561 = vmatpush1.msra.mxu0 0.0
    %2562 = vmatprep.subr.mxu0 0.0
    %2563 = vmatpush1.msra.mxu0 0.0
    %2564 = vmatprep.subr.mxu0 0.0
    %2565 = vmatpush1.msra.mxu0 0.0
    %2566 = vmatprep.subr.mxu0 0.0
    %2567 = vmatpush1.msra.mxu0 0.0
    %2568 = vmatprep.subr.mxu0 0.0
    %2569 = vmatpush1.msra.mxu0 0.0
    %2570 = vmatprep.subr.mxu0 0.0
    %2571 = vmatpush1.msra.mxu0 0.0
    %2572 = vmatprep.subr.mxu0 0.0
    %2573 = vmatpush1.msra.mxu0 0.0
    %2574 = vmatprep.subr.mxu0 0.0
    %2575 = vmatpush1.msra.mxu0 0.0
    %2576 = vmatprep.subr.mxu0 0.0
    %2577 = vmatpush1.msra.mxu0 0.0
    %2578 = vmatprep.subr.mxu0 0.0
    %2579 = vmatpush1.msra.mxu0 0.0
    %2580 = vmatprep.subr.mxu0 0.0
    %2581 = vmatpush1.msra.mxu0 0.0
    %2582 = vmatprep.subr.mxu0 0.0
    %2583 = vmatpush1.msra.mxu0 0.0
    %2584 = vmatprep.subr.mxu0 0.0
    %2585 = vmatpush1.msra.mxu0 0.0
    %2586 = vmatprep.subr.mxu0 0.0
    %2587 = vmatpush1.msra.mxu0 0.0
    %2588 = vmatprep.subr.mxu0 0.0
    %2589 = vmatpush1.msra.mxu0 0.0
    %2590 = vmatprep.subr.mxu0 0.0
    %2591 = vmatpush1.msra.mxu0 0.0
    %2592 = vmatprep.subr.mxu0 0.0
    %2593 = vmatpush1.msra.mxu0 0.0
    %2594 = vmatprep.subr.mxu0 0.0
    %2595 = vmatpush1.msra.mxu0 0.0
    %2596 = vmatprep.mubr.f32.mxu0 0.0
    %2597 = vmatmul.mubr.f32.gmra.mrb[0].mxu0 %v2527
    %v2598 = vpop.f32.mrb[0].mxu0
    %v2599 = vadd.f32 %v2525, %v2598
    %v2600 = vpop.f32.mrb[0].mxu0
    %2601 = vmatprep.mubr.f32.mxu0 0.0
    %2602 = vmatmul.mubr.f32.gmra.mrb[0].mxu0 %v2530
    %v2603 = vpop.f32.mrb[0].mxu0
    %v2604 = vadd.f32 %v2525, %v2603
    %v2605 = vpop.f32.mrb[0].mxu0
    %2606 = vdwg.mxu0
    %v2607 = vmax.f32 %v2599, 0.0
    %v2608 = vmax.f32 %v2604, 0.0
    %v2609 = vlaneseq
    %v2610 = vshrl.u32 %v2609, 7
    %v2611 = vsub.s32 4, %v2610
    %v2612 = vrot.slane %v1532, %v2611
    %v2614 = vsel %vm278, %v2607, 0
    %v2617 = vsel %vm278, %v2608, 0
    %2619 = vmatprep.subr.mxu0 0.0
    %2620 = vmatpush1.msra.mxu0 %v1529
    %2621 = vmatprep.subr.mxu0 0.0
    %2622 = vmatpush1.msra.mxu0 %v1530
    %2623 = vmatprep.subr.mxu0 0.0
    %2624 = vmatpush1.msra.mxu0 0.0
    %2625 = vmatprep.subr.mxu0 0.0
    %2626 = vmatpush1.msra.mxu0 0.0
    %2627 = vmatprep.subr.mxu0 0.0
    %2628 = vmatpush1.msra.mxu0 0.0
    %2629 = vmatprep.subr.mxu0 0.0
    %2630 = vmatpush1.msra.mxu0 0.0
    %2631 = vmatprep.subr.mxu0 0.0
    %2632 = vmatpush1.msra.mxu0 0.0
    %2633 = vmatprep.subr.mxu0 0.0
    %2634 = vmatpush1.msra.mxu0 0.0
    %2635 = vmatprep.subr.mxu0 0.0
    %2636 = vmatpush1.msra.mxu0 0.0
    %2637 = vmatprep.subr.mxu0 0.0
    %2638 = vmatpush1.msra.mxu0 0.0
    %2639 = vmatprep.subr.mxu0 0.0
    %2640 = vmatpush1.msra.mxu0 0.0
    %2641 = vmatprep.subr.mxu0 0.0
    %2642 = vmatpush1.msra.mxu0 0.0
    %2643 = vmatprep.subr.mxu0 0.0
    %2644 = vmatpush1.msra.mxu0 0.0
    %2645 = vmatprep.subr.mxu0 0.0
    %2646 = vmatpush1.msra.mxu0 0.0
    %2647 = vmatprep.subr.mxu0 0.0
    %2648 = vmatpush1.msra.mxu0 0.0
    %2649 = vmatprep.subr.mxu0 0.0
    %2650 = vmatpush1.msra.mxu0 0.0
    %2651 = vmatprep.subr.mxu0 0.0
    %2652 = vmatpush1.msra.mxu0 0.0
    %2653 = vmatprep.subr.mxu0 0.0
    %2654 = vmatpush1.msra.mxu0 0.0
    %2655 = vmatprep.subr.mxu0 0.0
    %2656 = vmatpush1.msra.mxu0 0.0
    %2657 = vmatprep.subr.mxu0 0.0
    %2658 = vmatpush1.msra.mxu0 0.0
    %2659 = vmatprep.subr.mxu0 0.0
    %2660 = vmatpush1.msra.mxu0 0.0
    %2661 = vmatprep.subr.mxu0 0.0
    %2662 = vmatpush1.msra.mxu0 0.0
    %2663 = vmatprep.subr.mxu0 0.0
    %2664 = vmatpush1.msra.mxu0 0.0
    %2665 = vmatprep.subr.mxu0 0.0
    %2666 = vmatpush1.msra.mxu0 0.0
    %2667 = vmatprep.subr.mxu0 0.0
    %2668 = vmatpush1.msra.mxu0 0.0
    %2669 = vmatprep.subr.mxu0 0.0
    %2670 = vmatpush1.msra.mxu0 0.0
    %2671 = vmatprep.subr.mxu0 0.0
    %2672 = vmatpush1.msra.mxu0 0.0
    %2673 = vmatprep.subr.mxu0 0.0
    %2674 = vmatpush1.msra.mxu0 0.0
    %2675 = vmatprep.subr.mxu0 0.0
    %2676 = vmatpush1.msra.mxu0 0.0
    %2677 = vmatprep.subr.mxu0 0.0
    %2678 = vmatpush1.msra.mxu0 0.0
    %2679 = vmatprep.subr.mxu0 0.0
    %2680 = vmatpush1.msra.mxu0 0.0
    %2681 = vmatprep.subr.mxu0 0.0
    %2682 = vmatpush1.msra.mxu0 0.0
    %2683 = vmatprep.mubr.f32.mxu0 0.0
    %2684 = vmatmul.mubr.f32.gmra.mrb[0].mxu0 %v2614
    %v2685 = vpop.f32.mrb[0].mxu0
    %v2686 = vadd.f32 %v2612, %v2685
    %v2687 = vpop.f32.mrb[0].mxu0
    %2688 = vmatprep.mubr.f32.mxu0 0.0
    %2689 = vmatmul.mubr.f32.gmra.mrb[0].mxu0 %v2617
    %v2690 = vpop.f32.mrb[0].mxu0
    %v2691 = vadd.f32 %v2612, %v2690
    %v2692 = vpop.f32.mrb[0].mxu0
    %2693 = vdwg.mxu0
    %v2694 = vadd.f32 %v2520, %v2686
    %v2695 = vadd.f32 %v2521, %v2691
    %v2696 = vsel %vm115, %v2694, 0.0
    %2697 = vadd.xlane.f32.xlu0 %v2696
    %v2698 = vpop.xlane.xlu0 %2697
    %v2699 = vsel %vm115, %v2695, 0.0
    %2700 = vadd.xlane.f32.xlu0 %v2699
    %v2701 = vpop.xlane.xlu0 %2700
    %v2702 = vmul.f32 %v2698, %v1173
    %v2703 = vmul.f32 %v2701, %v1173
    %v2704 = vsub.f32 %v2694, %v2702
    %v2705 = vsub.f32 %v2695, %v2703
    %v2706 = vmul.f32 %v2704, %v2704
    %v2707 = vmul.f32 %v2705, %v2705
    %v2708 = vsel %vm115, %v2706, 0.0
    %2709 = vadd.xlane.f32.xlu0 %v2708
    %v2710 = vpop.xlane.xlu0 %2709
    %v2711 = vsel %vm115, %v2707, 0.0
    %2712 = vadd.xlane.f32.xlu0 %v2711
    %v2713 = vpop.xlane.xlu0 %2712
    %v2714 = vmul.f32 %v2710, %v1173
    %v2715 = vmul.f32 %v2713, %v1173
    %v2716 = vadd.f32 %v2714, 1e-05
    %v2717 = vadd.f32 %v2715, 1e-05
    %v2718 = vrsqrt.pop %v2716
    %v2719 = vrsqrt.pop %v2717
    %v2720 = vmul.f32 %v2704, %v2718
    %v2721 = vmul.f32 %v2705, %v2719
    %v2722 = vlaneseq
    %v2723 = vshrl.u32 %v2722, 7
    %v2724 = vsub.s32 2, %v2723
    %v2725 = vrot.slane %v1532, %v2724
    %v2726 = vmul.f32 %v2720, %v2725
    %v2727 = vmul.f32 %v2721, %v2725
    %v2728 = vlaneseq
    %v2729 = vshrl.u32 %v2728, 7
    %v2730 = vsub.s32 3, %v2729
    %v2731 = vrot.slane %v1532, %v2730
    %v2732 = vadd.f32 %v2726, %v2731
    %v2733 = vadd.f32 %v2727, %v2731
    %2734 = vst.msk [vmem:[%s10] sm:$0xff] %vm115, %v2732
    %2735 = vst.msk [vmem:[%s10 + $0x8] sm:$0xff] %vm115, %v2733
    %v2736 = vld [vmem:[%s9] sm:$0x1]
    %v2738 = vsel %vm115, %v2736, 0
    %v2741 = vsel %vm115, %v2732, 0
    %2743 = vmatprep.subr.mxu0 0.0
    %2744 = vmatpush1.xpose.msra.mxu0 %v2741
    %2745 = vmatprep.subr.mxu0 0.0
    %2746 = vmatpush1.xpose.msra.mxu0 0.0
    %2747 = vmatprep.subr.mxu0 0.0
    %2748 = vmatpush1.xpose.msra.mxu0 0.0
    %2749 = vmatprep.subr.mxu0 0.0
    %2750 = vmatpush1.xpose.msra.mxu0 0.0
    %2751 = vmatprep.subr.mxu0 0.0
    %2752 = vmatpush1.xpose.msra.mxu0 0.0
    %2753 = vmatprep.subr.mxu0 0.0
    %2754 = vmatpush1.xpose.msra.mxu0 0.0
    %2755 = vmatprep.subr.mxu0 0.0
    %2756 = vmatpush1.xpose.msra.mxu0 0.0
    %2757 = vmatprep.subr.mxu0 0.0
    %2758 = vmatpush1.xpose.msra.mxu0 0.0
    %2759 = vmatprep.subr.mxu0 0.0
    %2760 = vmatpush1.xpose.msra.mxu0 0.0
    %2761 = vmatprep.subr.mxu0 0.0
    %2762 = vmatpush1.xpose.msra.mxu0 0.0
    %2763 = vmatprep.subr.mxu0 0.0
    %2764 = vmatpush1.xpose.msra.mxu0 0.0
    %2765 = vmatprep.subr.mxu0 0.0
    %2766 = vmatpush1.xpose.msra.mxu0 0.0
    %2767 = vmatprep.subr.mxu0 0.0
    %2768 = vmatpush1.xpose.msra.mxu0 0.0
    %2769 = vmatprep.subr.mxu0 0.0
    %2770 = vmatpush1.xpose.msra.mxu0 0.0
    %2771 = vmatprep.subr.mxu0 0.0
    %2772 = vmatpush1.xpose.msra.mxu0 0.0
    %2773 = vmatprep.subr.mxu0 0.0
    %2774 = vmatpush1.xpose.msra.mxu0 0.0
    %2775 = vmatprep.subr.mxu0 0.0
    %2776 = vmatpush1.xpose.msra.mxu0 0.0
    %2777 = vmatprep.subr.mxu0 0.0
    %2778 = vmatpush1.xpose.msra.mxu0 0.0
    %2779 = vmatprep.subr.mxu0 0.0
    %2780 = vmatpush1.xpose.msra.mxu0 0.0
    %2781 = vmatprep.subr.mxu0 0.0
    %2782 = vmatpush1.xpose.msra.mxu0 0.0
    %2783 = vmatprep.subr.mxu0 0.0
    %2784 = vmatpush1.xpose.msra.mxu0 0.0
    %2785 = vmatprep.subr.mxu0 0.0
    %2786 = vmatpush1.xpose.msra.mxu0 0.0
    %2787 = vmatprep.subr.mxu0 0.0
    %2788 = vmatpush1.xpose.msra.mxu0 0.0
    %2789 = vmatprep.subr.mxu0 0.0
    %2790 = vmatpush1.xpose.msra.mxu0 0.0
    %2791 = vmatprep.subr.mxu0 0.0
    %2792 = vmatpush1.xpose.msra.mxu0 0.0
    %2793 = vmatprep.subr.mxu0 0.0
    %2794 = vmatpush1.xpose.msra.mxu0 0.0
    %2795 = vmatprep.subr.mxu0 0.0
    %2796 = vmatpush1.xpose.msra.mxu0 0.0
    %2797 = vmatprep.subr.mxu0 0.0
    %2798 = vmatpush1.xpose.msra.mxu0 0.0
    %2799 = vmatprep.subr.mxu0 0.0
    %2800 = vmatpush1.xpose.msra.mxu0 0.0
    %2801 = vmatprep.subr.mxu0 0.0
    %2802 = vmatpush1.xpose.msra.mxu0 0.0
    %2803 = vmatprep.subr.mxu0 0.0
    %2804 = vmatpush1.xpose.msra.mxu0 0.0
    %2805 = vmatprep.subr.mxu0 0.0
    %2806 = vmatpush1.xpose.msra.mxu0 0.0
    %2807 = vmatprep.mubr.f32.mxu0 0.0
    %2808 = vmatmul.mubr.f32.gmra.mrb[0].mxu0 %v2738
    %v2809 = vpop.f32.mrb[0].mxu0
    %v2810 = vadd.f32 0.0, %v2809
    %v2811 = vpop.f32.mrb[0].mxu0
    %2812 = vdwg.mxu0
    %v2814 = vsel %vm115, %v2733, 0
    %2816 = vmatprep.subr.mxu0 0.0
    %2817 = vmatpush1.xpose.msra.mxu0 %v2814
    %2818 = vmatprep.subr.mxu0 0.0
    %2819 = vmatpush1.xpose.msra.mxu0 0.0
    %2820 = vmatprep.subr.mxu0 0.0
    %2821 = vmatpush1.xpose.msra.mxu0 0.0
    %2822 = vmatprep.subr.mxu0 0.0
    %2823 = vmatpush1.xpose.msra.mxu0 0.0
    %2824 = vmatprep.subr.mxu0 0.0
    %2825 = vmatpush1.xpose.msra.mxu0 0.0
    %2826 = vmatprep.subr.mxu0 0.0
    %2827 = vmatpush1.xpose.msra.mxu0 0.0
    %2828 = vmatprep.subr.mxu0 0.0
    %2829 = vmatpush1.xpose.msra.mxu0 0.0
    %2830 = vmatprep.subr.mxu0 0.0
    %2831 = vmatpush1.xpose.msra.mxu0 0.0
    %2832 = vmatprep.subr.mxu0 0.0
    %2833 = vmatpush1.xpose.msra.mxu0 0.0
    %2834 = vmatprep.subr.mxu0 0.0
    %2835 = vmatpush1.xpose.msra.mxu0 0.0
    %2836 = vmatprep.subr.mxu0 0.0
    %2837 = vmatpush1.xpose.msra.mxu0 0.0
    %2838 = vmatprep.subr.mxu0 0.0
    %2839 = vmatpush1.xpose.msra.mxu0 0.0
    %2840 = vmatprep.subr.mxu0 0.0
    %2841 = vmatpush1.xpose.msra.mxu0 0.0
    %2842 = vmatprep.subr.mxu0 0.0
    %2843 = vmatpush1.xpose.msra.mxu0 0.0
    %2844 = vmatprep.subr.mxu0 0.0
    %2845 = vmatpush1.xpose.msra.mxu0 0.0
    %2846 = vmatprep.subr.mxu0 0.0
    %2847 = vmatpush1.xpose.msra.mxu0 0.0
    %2848 = vmatprep.subr.mxu0 0.0
    %2849 = vmatpush1.xpose.msra.mxu0 0.0
    %2850 = vmatprep.subr.mxu0 0.0
    %2851 = vmatpush1.xpose.msra.mxu0 0.0
    %2852 = vmatprep.subr.mxu0 0.0
    %2853 = vmatpush1.xpose.msra.mxu0 0.0
    %2854 = vmatprep.subr.mxu0 0.0
    %2855 = vmatpush1.xpose.msra.mxu0 0.0
    %2856 = vmatprep.subr.mxu0 0.0
    %2857 = vmatpush1.xpose.msra.mxu0 0.0
    %2858 = vmatprep.subr.mxu0 0.0
    %2859 = vmatpush1.xpose.msra.mxu0 0.0
    %2860 = vmatprep.subr.mxu0 0.0
    %2861 = vmatpush1.xpose.msra.mxu0 0.0
    %2862 = vmatprep.subr.mxu0 0.0
    %2863 = vmatpush1.xpose.msra.mxu0 0.0
    %2864 = vmatprep.subr.mxu0 0.0
    %2865 = vmatpush1.xpose.msra.mxu0 0.0
    %2866 = vmatprep.subr.mxu0 0.0
    %2867 = vmatpush1.xpose.msra.mxu0 0.0
    %2868 = vmatprep.subr.mxu0 0.0
    %2869 = vmatpush1.xpose.msra.mxu0 0.0
    %2870 = vmatprep.subr.mxu0 0.0
    %2871 = vmatpush1.xpose.msra.mxu0 0.0
    %2872 = vmatprep.subr.mxu0 0.0
    %2873 = vmatpush1.xpose.msra.mxu0 0.0
    %2874 = vmatprep.subr.mxu0 0.0
    %2875 = vmatpush1.xpose.msra.mxu0 0.0
    %2876 = vmatprep.subr.mxu0 0.0
    %2877 = vmatpush1.xpose.msra.mxu0 0.0
    %2878 = vmatprep.subr.mxu0 0.0
    %2879 = vmatpush1.xpose.msra.mxu0 0.0
    %2880 = vmatprep.mubr.f32.mxu0 0.0
    %2881 = vmatmul.mubr.f32.gmra.mrb[0].mxu0 %v2738
    %v2882 = vpop.f32.mrb[0].mxu0
    %v2883 = vadd.f32 0.0, %v2882
    %v2884 = vpop.f32.mrb[0].mxu0
    %2885 = vdwg.mxu0
    %v2886 = vld [vmem:[#allocation2] sm:$0xff]
    %v2887 = vld [vmem:[#allocation2 + $0x8] sm:$0xff]
    %v2888 = vld [vmem:[%s9 + $0x1] sm:$0x1]
    %2890 = vset.pattern.permute.xlu0 0
    %2891 = vperm.xlu0 %2890, %v2888
    %v2892 = vpop.permute.xlu0 %2891
    %v2895 = vsel %vm445, %v2810, 0
    %v2898 = vsel %vm445, %v2886, 0
    %2900 = vmatprep.subr.mxu0 0.0
    %2901 = vmatpush1.xpose.msra.mxu0 %v2898
    %2902 = vmatprep.subr.mxu0 0.0
    %2903 = vmatpush1.xpose.msra.mxu0 0.0
    %2904 = vmatprep.subr.mxu0 0.0
    %2905 = vmatpush1.xpose.msra.mxu0 0.0
    %2906 = vmatprep.subr.mxu0 0.0
    %2907 = vmatpush1.xpose.msra.mxu0 0.0
    %2908 = vmatprep.subr.mxu0 0.0
    %2909 = vmatpush1.xpose.msra.mxu0 0.0
    %2910 = vmatprep.subr.mxu0 0.0
    %2911 = vmatpush1.xpose.msra.mxu0 0.0
    %2912 = vmatprep.subr.mxu0 0.0
    %2913 = vmatpush1.xpose.msra.mxu0 0.0
    %2914 = vmatprep.subr.mxu0 0.0
    %2915 = vmatpush1.xpose.msra.mxu0 0.0
    %2916 = vmatprep.subr.mxu0 0.0
    %2917 = vmatpush1.xpose.msra.mxu0 0.0
    %2918 = vmatprep.subr.mxu0 0.0
    %2919 = vmatpush1.xpose.msra.mxu0 0.0
    %2920 = vmatprep.subr.mxu0 0.0
    %2921 = vmatpush1.xpose.msra.mxu0 0.0
    %2922 = vmatprep.subr.mxu0 0.0
    %2923 = vmatpush1.xpose.msra.mxu0 0.0
    %2924 = vmatprep.subr.mxu0 0.0
    %2925 = vmatpush1.xpose.msra.mxu0 0.0
    %2926 = vmatprep.subr.mxu0 0.0
    %2927 = vmatpush1.xpose.msra.mxu0 0.0
    %2928 = vmatprep.subr.mxu0 0.0
    %2929 = vmatpush1.xpose.msra.mxu0 0.0
    %2930 = vmatprep.subr.mxu0 0.0
    %2931 = vmatpush1.xpose.msra.mxu0 0.0
    %2932 = vmatprep.subr.mxu0 0.0
    %2933 = vmatpush1.xpose.msra.mxu0 0.0
    %2934 = vmatprep.subr.mxu0 0.0
    %2935 = vmatpush1.xpose.msra.mxu0 0.0
    %2936 = vmatprep.subr.mxu0 0.0
    %2937 = vmatpush1.xpose.msra.mxu0 0.0
    %2938 = vmatprep.subr.mxu0 0.0
    %2939 = vmatpush1.xpose.msra.mxu0 0.0
    %2940 = vmatprep.subr.mxu0 0.0
    %2941 = vmatpush1.xpose.msra.mxu0 0.0
    %2942 = vmatprep.subr.mxu0 0.0
    %2943 = vmatpush1.xpose.msra.mxu0 0.0
    %2944 = vmatprep.subr.mxu0 0.0
    %2945 = vmatpush1.xpose.msra.mxu0 0.0
    %2946 = vmatprep.subr.mxu0 0.0
    %2947 = vmatpush1.xpose.msra.mxu0 0.0
    %2948 = vmatprep.subr.mxu0 0.0
    %2949 = vmatpush1.xpose.msra.mxu0 0.0
    %2950 = vmatprep.subr.mxu0 0.0
    %2951 = vmatpush1.xpose.msra.mxu0 0.0
    %2952 = vmatprep.subr.mxu0 0.0
    %2953 = vmatpush1.xpose.msra.mxu0 0.0
    %2954 = vmatprep.subr.mxu0 0.0
    %2955 = vmatpush1.xpose.msra.mxu0 0.0
    %2956 = vmatprep.subr.mxu0 0.0
    %2957 = vmatpush1.xpose.msra.mxu0 0.0
    %2958 = vmatprep.subr.mxu0 0.0
    %2959 = vmatpush1.xpose.msra.mxu0 0.0
    %2960 = vmatprep.subr.mxu0 0.0
    %2961 = vmatpush1.xpose.msra.mxu0 0.0
    %2962 = vmatprep.subr.mxu0 0.0
    %2963 = vmatpush1.xpose.msra.mxu0 0.0
    %2964 = vmatprep.mubr.f32.mxu0 0.0
    %2965 = vmatmul.mubr.f32.gmra.mrb[0].mxu0 %v2895
    %v2966 = vpop.f32.mrb[0].mxu0
    %v2967 = vadd.f32 %v2892, %v2966
    %v2968 = vpop.f32.mrb[0].mxu0
    %2969 = vdwg.mxu0
    %v2971 = vsel %vm445, %v2883, 0
    %v2974 = vsel %vm445, %v2887, 0
    %2976 = vmatprep.subr.mxu0 0.0
    %2977 = vmatpush1.xpose.msra.mxu0 %v2974
    %2978 = vmatprep.subr.mxu0 0.0
    %2979 = vmatpush1.xpose.msra.mxu0 0.0
    %2980 = vmatprep.subr.mxu0 0.0
    %2981 = vmatpush1.xpose.msra.mxu0 0.0
    %2982 = vmatprep.subr.mxu0 0.0
    %2983 = vmatpush1.xpose.msra.mxu0 0.0
    %2984 = vmatprep.subr.mxu0 0.0
    %2985 = vmatpush1.xpose.msra.mxu0 0.0
    %2986 = vmatprep.subr.mxu0 0.0
    %2987 = vmatpush1.xpose.msra.mxu0 0.0
    %2988 = vmatprep.subr.mxu0 0.0
    %2989 = vmatpush1.xpose.msra.mxu0 0.0
    %2990 = vmatprep.subr.mxu0 0.0
    %2991 = vmatpush1.xpose.msra.mxu0 0.0
    %2992 = vmatprep.subr.mxu0 0.0
    %2993 = vmatpush1.xpose.msra.mxu0 0.0
    %2994 = vmatprep.subr.mxu0 0.0
    %2995 = vmatpush1.xpose.msra.mxu0 0.0
    %2996 = vmatprep.subr.mxu0 0.0
    %2997 = vmatpush1.xpose.msra.mxu0 0.0
    %2998 = vmatprep.subr.mxu0 0.0
    %2999 = vmatpush1.xpose.msra.mxu0 0.0
    %3000 = vmatprep.subr.mxu0 0.0
    %3001 = vmatpush1.xpose.msra.mxu0 0.0
    %3002 = vmatprep.subr.mxu0 0.0
    %3003 = vmatpush1.xpose.msra.mxu0 0.0
    %3004 = vmatprep.subr.mxu0 0.0
    %3005 = vmatpush1.xpose.msra.mxu0 0.0
    %3006 = vmatprep.subr.mxu0 0.0
    %3007 = vmatpush1.xpose.msra.mxu0 0.0
    %3008 = vmatprep.subr.mxu0 0.0
    %3009 = vmatpush1.xpose.msra.mxu0 0.0
    %3010 = vmatprep.subr.mxu0 0.0
    %3011 = vmatpush1.xpose.msra.mxu0 0.0
    %3012 = vmatprep.subr.mxu0 0.0
    %3013 = vmatpush1.xpose.msra.mxu0 0.0
    %3014 = vmatprep.subr.mxu0 0.0
    %3015 = vmatpush1.xpose.msra.mxu0 0.0
    %3016 = vmatprep.subr.mxu0 0.0
    %3017 = vmatpush1.xpose.msra.mxu0 0.0
    %3018 = vmatprep.subr.mxu0 0.0
    %3019 = vmatpush1.xpose.msra.mxu0 0.0
    %3020 = vmatprep.subr.mxu0 0.0
    %3021 = vmatpush1.xpose.msra.mxu0 0.0
    %3022 = vmatprep.subr.mxu0 0.0
    %3023 = vmatpush1.xpose.msra.mxu0 0.0
    %3024 = vmatprep.subr.mxu0 0.0
    %3025 = vmatpush1.xpose.msra.mxu0 0.0
    %3026 = vmatprep.subr.mxu0 0.0
    %3027 = vmatpush1.xpose.msra.mxu0 0.0
    %3028 = vmatprep.subr.mxu0 0.0
    %3029 = vmatpush1.xpose.msra.mxu0 0.0
    %3030 = vmatprep.subr.mxu0 0.0
    %3031 = vmatpush1.xpose.msra.mxu0 0.0
    %3032 = vmatprep.subr.mxu0 0.0
    %3033 = vmatpush1.xpose.msra.mxu0 0.0
    %3034 = vmatprep.subr.mxu0 0.0
    %3035 = vmatpush1.xpose.msra.mxu0 0.0
    %3036 = vmatprep.subr.mxu0 0.0
    %3037 = vmatpush1.xpose.msra.mxu0 0.0
    %3038 = vmatprep.subr.mxu0 0.0
    %3039 = vmatpush1.xpose.msra.mxu0 0.0
    %3040 = vmatprep.mubr.f32.mxu0 0.0
    %3041 = vmatmul.mubr.f32.gmra.mrb[0].mxu0 %v2971
    %v3042 = vpop.f32.mrb[0].mxu0
    %v3043 = vadd.f32 %v2892, %v3042
    %v3044 = vpop.f32.mrb[0].mxu0
    %3045 = vdwg.mxu0
    %vm3046 = vcmask 57344
    %3047 = vst.msk [vmem:[%s11] sm:$0x1] %vm3046, %v2967
    %3048 = vst.msk [vmem:[%s11 + $0x1] sm:$0x1] %vm3046, %v3043
    // Predicated region
    $region58: #{transformer_sag_pool.2} parent=1 // pred_check
      _
    $region59: #{transformer_sag_pool.2} parent=1 // pred_check_branch
      %3050 = sbr.rel (0) target = $region61
    $region60: #{transformer_sag_pool.2} parent=1 // pred_region
      _
    $region61: #{transformer_sag_pool.2} parent=1 // pred_fallthru
      _
    // Predicated region
    $region62: #{transformer_sag_pool.2} parent=1 // pred_check
      _
    $region63: #{transformer_sag_pool.2} parent=1 // pred_check_branch
      %3052 = sbr.rel (0) target = $region65
    $region64: #{transformer_sag_pool.2} parent=1 // pred_region
      _
    $region65: #{transformer_sag_pool.2} parent=1 // pred_fallthru
      _
    // Predicated region
    $region66: #{transformer_sag_pool.2} parent=1 // pred_check
      _
    $region67: #{transformer_sag_pool.2} parent=1 // pred_check_branch
      %3054 = sbr.rel (0) target = $region69
    $region68: #{transformer_sag_pool.2} parent=1 // pred_region
      _
    $region69: #{transformer_sag_pool.2} parent=1 // pred_fallthru
      _
    // Predicated region
    $region70: #{transformer_sag_pool.2} parent=1 // pred_check
      _
    $region71: #{transformer_sag_pool.2} parent=1 // pred_check_branch
      %3056 = sbr.rel (0) target = $region73
    $region72: #{transformer_sag_pool.2} parent=1 // pred_region
      _
    $region73: #{transformer_sag_pool.2} parent=1 // pred_fallthru
      _
    %3057 = vsyncpa [#allocation3], 1
    %3058 = vsyncpa [#allocation5], 1
    %3059 = vsyncpa [#allocation8], 1

</llo_original>
